<compile_context>
chip_gen: v7x
topology: tpu7x:2x2x1
jax: 0.10.0
libtpu: 0.0.40
codegen_flags: <defaults>
</compile_context>

<pallas_src>
import jax
import jax.numpy as jnp
from jax import lax
from jax.experimental import pallas as pl
from jax.experimental.pallas import tpu as pltpu

EMBED_DIMENSION = 128   # D
EMBED_MAX_NORM = 1.0


def embed_mean_kernel(ids_ref, emb_hbm, x_ref, rows_buf, sems):
    """Stage 1 (gather): x[i*bn:(i+1)*bn, :] = mean_c renorm(emb[ids[n, c], :]).

    ids_ref : SMEM [N, C] int32 (scalar-prefetched token ids)
    emb_hbm : HBM  [K, D] f32   (untiled; rows DMA'd on demand)
    x_ref   : VMEM [bn, D] f32  (output block for this batch tile)
    rows_buf: VMEM [C, bn, D]   gather buffer
    sems    : DMA semaphores [C, bn]
    """
    i = pl.program_id(0)
    c_len, bn, _ = rows_buf.shape

    # Issue all N*C-per-tile row DMAs up front (they proceed concurrently), then wait.
    copies = []
    for b in range(bn):
        for cc in range(c_len):
            row = ids_ref[i * bn + b, cc]
            cp = pltpu.make_async_copy(
                emb_hbm.at[pl.ds(row, 1)],          # (1, D) HBM view, data-dependent row
                rows_buf.at[cc, pl.ds(b, 1)],       # (1, D) VMEM view
                sems.at[cc, b])
            cp.start()
            copies.append(cp)
    for cp in copies:
        cp.wait()

    rows = rows_buf[...]                                      # (C, bn, D) f32
    # torch.renorm(p=2) on just the gathered rows, exact reference formula.
    sumsq = jnp.sum(rows * rows, axis=-1, keepdims=True)      # (C, bn, 1)
    norm = jnp.sqrt(sumsq)
    scale = jnp.where(norm > EMBED_MAX_NORM,
                      EMBED_MAX_NORM / (norm + 1e-7),
                      1.0)
    # Context mean over C (leading axis) -> (bn, D).
    x_ref[...] = jnp.mean(rows * scale, axis=0)


def linear_kernel(x_ref, w_ref, b_ref, out_ref):
    """Stage 2: out[:, j*tk:(j+1)*tk] = x @ W_j^T + b_j.

    W stays in PyTorch [K, D] layout (bf16 stream); contraction is D-with-D on the
    MXU with f32 accumulation, so no transpose is ever materialized.
    """
    x_bf16 = x_ref[...].astype(jnp.bfloat16)                  # tiny resident (N, D) cast
    out_ref[...] = lax.dot_general(
        x_bf16, w_ref[...],
        dimension_numbers=(((1,), (1,)), ((), ())),           # contract D with D (== x @ W.T)
        preferred_element_type=jnp.float32) + b_ref[...]


def cbow_forward(inputs_, emb_table, lin_w, lin_b, *, bn=8, tk_out=2048):
    """inputs_: [N, C] int32; emb_table: [K, D] f32; lin_w: [K, D] (PyTorch layout); lin_b: [K]."""
    n, c = inputs_.shape
    k, d = emb_table.shape
    bn = min(bn, n)
    tk_o = min(tk_out, k)
    assert n % bn == 0, "batch must divide the batch tile size"
    assert k % tk_o == 0, "vocab size must divide the output K tile size"

    ids = inputs_.astype(jnp.int32)

    # ---- Stage 1: DMA row gather + renorm + context mean (only N*C rows touched). ----
    x = pl.pallas_call(
        embed_mean_kernel,
        out_shape=jax.ShapeDtypeStruct((n, d), jnp.float32),
        grid_spec=pltpu.PrefetchScalarGridSpec(
            num_scalar_prefetch=1,                            # ids -> SMEM
            grid=(n // bn,),
            in_specs=[pl.BlockSpec(memory_space=pl.ANY)],     # emb table stays in HBM
            out_specs=pl.BlockSpec((bn, d), lambda i, ids: (i, 0)),
            scratch_shapes=[
                pltpu.VMEM((c, bn, d), emb_table.dtype),      # gather buffer
                pltpu.SemaphoreType.DMA((c, bn)),
            ]),
        compiler_params=pltpu.CompilerParams(
            dimension_semantics=("parallel",)),               # batch tiles shard across TCs (v7x)
    )(ids, emb_table)

    # ---- Stage 2: linear layer over independent output vocab tiles (megacore-parallel). ----
    w_bf16 = lin_w.astype(jnp.bfloat16)                       # halve the dominant HBM stream
    b2 = lin_b.reshape(1, k).astype(jnp.float32)
    out = pl.pallas_call(
        linear_kernel,
        out_shape=jax.ShapeDtypeStruct((n, k), jnp.float32),
        grid_spec=pltpu.PrefetchScalarGridSpec(
            num_scalar_prefetch=0,
            grid=(k // tk_o,),
            in_specs=[
                pl.BlockSpec((n, d), lambda j: (0, 0)),       # x: resident
                pl.BlockSpec((tk_o, d), lambda j: (j, 0)),    # W tile, [K, D] layout, bf16
                pl.BlockSpec((1, tk_o), lambda j: (0, j)),    # bias tile, f32
            ],
            out_specs=pl.BlockSpec((n, tk_o), lambda j: (0, j)),  # lane-dense output
        ),
        compiler_params=pltpu.CompilerParams(
            dimension_semantics=("parallel",)),
    )(x, w_bf16, b2)
    return out


def cbow_reference(inputs_, emb_table, lin_w, lin_b):
    norms = jnp.linalg.norm(emb_table, axis=-1, keepdims=True)
    emb_n = jnp.where(norms > EMBED_MAX_NORM,
                      emb_table * (EMBED_MAX_NORM / (norms + 1e-7)),
                      emb_table)
    e = emb_n[inputs_]                # [N, C, D]
    x = e.mean(axis=1)                # [N, D]
    return x @ lin_w.T + lin_b        # [N, K]


if __name__ == "__main__":
    VOCAB_SIZE = 256                  # K  (production vocab is much larger; the gather
                                      #     stage scales with N*C, not K)
    N = 16                            # context windows per batch (production should use
                                      #     N >= 128-256 to feed the MXU rows)
    CBOW_N_WORDS = 4                  # R  -> context length C = 2R = 8
    C = 2 * CBOW_N_WORDS
    D = EMBED_DIMENSION

    key = jax.random.PRNGKey(0)
    k_idx, k_emb, k_w, k_b = jax.random.split(key, 4)

    inputs_ = jax.random.randint(k_idx, (N, C), 0, VOCAB_SIZE, dtype=jnp.int32)

    # nn.Embedding default init: N(0, 1)  (norms >> 1, so the max_norm path is exercised)
    emb_table = jax.random.normal(k_emb, (VOCAB_SIZE, D), dtype=jnp.float32)
    # nn.Linear default init: U(-1/sqrt(D), 1/sqrt(D))
    bound = 1.0 / (D ** 0.5)
    lin_w = jax.random.uniform(k_w, (VOCAB_SIZE, D), jnp.float32, -bound, bound)
    lin_b = jax.random.uniform(k_b, (VOCAB_SIZE,), jnp.float32, -bound, bound)

    # tk_out=128 only so the stage-2 grid has >1 step at this tiny vocab (exercises the
    # parallel output tiling); production default is 2048. bn=8 gives a 2-step stage-1
    # grid here, exercising the per-batch-tile gather path.
    out = cbow_forward(inputs_, emb_table, lin_w, lin_b, bn=8, tk_out=128)
    out = jax.block_until_ready(out)

    ref = cbow_reference(inputs_, emb_table, lin_w, lin_b)
    assert out.shape == (N, VOCAB_SIZE)
    # bf16 linear-weight stream => small quantization error vs the f32 reference.
    assert jnp.allclose(out, ref, atol=5e-3, rtol=1e-2), "mismatch vs reference"

    print("KERNEL_OK")
</pallas_src>

<mosaic_0001>
module attributes {stable_mosaic.version = 11 : i64} {
  func.func @embed_mean_kernel(%arg0: i32, %arg1: memref<16x8xi32, #tpu.memory_space<smem>>, %arg2: memref<256x128xf32, #tpu.memory_space<any>>, %arg3: memref<8x128xf32, #tpu.memory_space<vmem>>, %arg4: memref<8x8x128xf32, #tpu.memory_space<vmem>>, %arg5: memref<8x8x!tpu.dma_semaphore, #tpu.memory_space<semaphore_mem>>) attributes {dimension_semantics = [#tpu.dimension_semantics<parallel>], iteration_bounds = array<i64: 2>, scalar_prefetch = 1 : i64, scratch_operands = 2 : i64, tpu.core_type = #tpu.core_type<tc>, window_params = [{}, {transform_indices = @transform_1, window_bounds = array<i64: 8, 128>}]} {
    %c8_i32 = arith.constant 8 : i32
    %0 = arith.muli %arg0, %c8_i32 : i32
    %c0_i32 = arith.constant 0 : i32
    %1 = arith.addi %0, %c0_i32 : i32
    %2 = arith.index_cast %1 : i32 to index
    %c0 = arith.constant 0 : index
    %3 = memref.load %arg1[%2, %c0] : memref<16x8xi32, #tpu.memory_space<smem>>
    %c0_i32_0 = arith.constant 0 : i32
    %c0_i32_1 = arith.constant 0 : i32
    %c0_i32_2 = arith.constant 0 : i32
    %c0_i32_3 = arith.constant 0 : i32
    %4 = tpu.memref_slice %arg2[%3, %c0_i32_3] : memref<256x128xf32, #tpu.memory_space<any>> -> memref<1x128xf32, #tpu.memory_space<any>>
    %c0_i32_4 = arith.constant 0 : i32
    %c0_i32_5 = arith.constant 0 : i32
    %5 = tpu.memref_slice %arg4[%c0_i32_0, %c0_i32_4, %c0_i32_5] : memref<8x8x128xf32, #tpu.memory_space<vmem>> -> memref<1x1x128xf32, #tpu.memory_space<vmem>>
    %6 = tpu.memref_squeeze %5 : memref<1x1x128xf32, #tpu.memory_space<vmem>> -> memref<1x128xf32, #tpu.memory_space<vmem>>
    %7 = tpu.memref_slice %arg5[%c0_i32_1, %c0_i32_2] : memref<8x8x!tpu.dma_semaphore, #tpu.memory_space<semaphore_mem>> -> memref<1x1x!tpu.dma_semaphore, #tpu.memory_space<semaphore_mem>>
    %8 = tpu.memref_squeeze %7 : memref<1x1x!tpu.dma_semaphore, #tpu.memory_space<semaphore_mem>> -> memref<!tpu.dma_semaphore, #tpu.memory_space<semaphore_mem>>
    tpu.enqueue_dma source(%4 : memref<1x128xf32, #tpu.memory_space<any>>) target(%6 : memref<1x128xf32, #tpu.memory_space<vmem>>) target_semaphore(%8 : memref<!tpu.dma_semaphore, #tpu.memory_space<semaphore_mem>>)
    %c8_i32_6 = arith.constant 8 : i32
    %9 = arith.muli %arg0, %c8_i32_6 : i32
    %c0_i32_7 = arith.constant 0 : i32
    %10 = arith.addi %9, %c0_i32_7 : i32
    %11 = arith.index_cast %10 : i32 to index
    %c1 = arith.constant 1 : index
    %12 = memref.load %arg1[%11, %c1] : memref<16x8xi32, #tpu.memory_space<smem>>
    %c1_i32 = arith.constant 1 : i32
    %c1_i32_8 = arith.constant 1 : i32
    %c0_i32_9 = arith.constant 0 : i32
    %c0_i32_10 = arith.constant 0 : i32
    %13 = tpu.memref_slice %arg2[%12, %c0_i32_10] : memref<256x128xf32, #tpu.memory_space<any>> -> memref<1x128xf32, #tpu.memory_space<any>>
    %c0_i32_11 = arith.constant 0 : i32
    %c0_i32_12 = arith.constant 0 : i32
    %14 = tpu.memref_slice %arg4[%c1_i32, %c0_i32_11, %c0_i32_12] : memref<8x8x128xf32, #tpu.memory_space<vmem>> -> memref<1x1x128xf32, #tpu.memory_space<vmem>>
    %15 = tpu.memref_squeeze %14 : memref<1x1x128xf32, #tpu.memory_space<vmem>> -> memref<1x128xf32, #tpu.memory_space<vmem>>
    %16 = tpu.memref_slice %arg5[%c1_i32_8, %c0_i32_9] : memref<8x8x!tpu.dma_semaphore, #tpu.memory_space<semaphore_mem>> -> memref<1x1x!tpu.dma_semaphore, #tpu.memory_space<semaphore_mem>>
    %17 = tpu.memref_squeeze %16 : memref<1x1x!tpu.dma_semaphore, #tpu.memory_space<semaphore_mem>> -> memref<!tpu.dma_semaphore, #tpu.memory_space<semaphore_mem>>
    tpu.enqueue_dma source(%13 : memref<1x128xf32, #tpu.memory_space<any>>) target(%15 : memref<1x128xf32, #tpu.memory_space<vmem>>) target_semaphore(%17 : memref<!tpu.dma_semaphore, #tpu.memory_space<semaphore_mem>>)
    %c8_i32_13 = arith.constant 8 : i32
    %18 = arith.muli %arg0, %c8_i32_13 : i32
    %c0_i32_14 = arith.constant 0 : i32
    %19 = arith.addi %18, %c0_i32_14 : i32
    %20 = arith.index_cast %19 : i32 to index
    %c2 = arith.constant 2 : index
    %21 = memref.load %arg1[%20, %c2] : memref<16x8xi32, #tpu.memory_space<smem>>
    %c2_i32 = arith.constant 2 : i32
    %c2_i32_15 = arith.constant 2 : i32
    %c0_i32_16 = arith.constant 0 : i32
    %c0_i32_17 = arith.constant 0 : i32
    %22 = tpu.memref_slice %arg2[%21, %c0_i32_17] : memref<256x128xf32, #tpu.memory_space<any>> -> memref<1x128xf32, #tpu.memory_space<any>>
    %c0_i32_18 = arith.constant 0 : i32
    %c0_i32_19 = arith.constant 0 : i32
    %23 = tpu.memref_slice %arg4[%c2_i32, %c0_i32_18, %c0_i32_19] : memref<8x8x128xf32, #tpu.memory_space<vmem>> -> memref<1x1x128xf32, #tpu.memory_space<vmem>>
    %24 = tpu.memref_squeeze %23 : memref<1x1x128xf32, #tpu.memory_space<vmem>> -> memref<1x128xf32, #tpu.memory_space<vmem>>
    %25 = tpu.memref_slice %arg5[%c2_i32_15, %c0_i32_16] : memref<8x8x!tpu.dma_semaphore, #tpu.memory_space<semaphore_mem>> -> memref<1x1x!tpu.dma_semaphore, #tpu.memory_space<semaphore_mem>>
    %26 = tpu.memref_squeeze %25 : memref<1x1x!tpu.dma_semaphore, #tpu.memory_space<semaphore_mem>> -> memref<!tpu.dma_semaphore, #tpu.memory_space<semaphore_mem>>
    tpu.enqueue_dma source(%22 : memref<1x128xf32, #tpu.memory_space<any>>) target(%24 : memref<1x128xf32, #tpu.memory_space<vmem>>) target_semaphore(%26 : memref<!tpu.dma_semaphore, #tpu.memory_space<semaphore_mem>>)
    %c8_i32_20 = arith.constant 8 : i32
    %27 = arith.muli %arg0, %c8_i32_20 : i32
    %c0_i32_21 = arith.constant 0 : i32
    %28 = arith.addi %27, %c0_i32_21 : i32
    %29 = arith.index_cast %28 : i32 to index
    %c3 = arith.constant 3 : index
    %30 = memref.load %arg1[%29, %c3] : memref<16x8xi32, #tpu.memory_space<smem>>
    %c3_i32 = arith.constant 3 : i32
    %c3_i32_22 = arith.constant 3 : i32
    %c0_i32_23 = arith.constant 0 : i32
    %c0_i32_24 = arith.constant 0 : i32
    %31 = tpu.memref_slice %arg2[%30, %c0_i32_24] : memref<256x128xf32, #tpu.memory_space<any>> -> memref<1x128xf32, #tpu.memory_space<any>>
    %c0_i32_25 = arith.constant 0 : i32
    %c0_i32_26 = arith.constant 0 : i32
    %32 = tpu.memref_slice %arg4[%c3_i32, %c0_i32_25, %c0_i32_26] : memref<8x8x128xf32, #tpu.memory_space<vmem>> -> memref<1x1x128xf32, #tpu.memory_space<vmem>>
    %33 = tpu.memref_squeeze %32 : memref<1x1x128xf32, #tpu.memory_space<vmem>> -> memref<1x128xf32, #tpu.memory_space<vmem>>
    %34 = tpu.memref_slice %arg5[%c3_i32_22, %c0_i32_23] : memref<8x8x!tpu.dma_semaphore, #tpu.memory_space<semaphore_mem>> -> memref<1x1x!tpu.dma_semaphore, #tpu.memory_space<semaphore_mem>>
    %35 = tpu.memref_squeeze %34 : memref<1x1x!tpu.dma_semaphore, #tpu.memory_space<semaphore_mem>> -> memref<!tpu.dma_semaphore, #tpu.memory_space<semaphore_mem>>
    tpu.enqueue_dma source(%31 : memref<1x128xf32, #tpu.memory_space<any>>) target(%33 : memref<1x128xf32, #tpu.memory_space<vmem>>) target_semaphore(%35 : memref<!tpu.dma_semaphore, #tpu.memory_space<semaphore_mem>>)
    %c8_i32_27 = arith.constant 8 : i32
    %36 = arith.muli %arg0, %c8_i32_27 : i32
    %c0_i32_28 = arith.constant 0 : i32
    %37 = arith.addi %36, %c0_i32_28 : i32
    %38 = arith.index_cast %37 : i32 to index
    %c4 = arith.constant 4 : index
    %39 = memref.load %arg1[%38, %c4] : memref<16x8xi32, #tpu.memory_space<smem>>
    %c4_i32 = arith.constant 4 : i32
    %c4_i32_29 = arith.constant 4 : i32
    %c0_i32_30 = arith.constant 0 : i32
    %c0_i32_31 = arith.constant 0 : i32
    %40 = tpu.memref_slice %arg2[%39, %c0_i32_31] : memref<256x128xf32, #tpu.memory_space<any>> -> memref<1x128xf32, #tpu.memory_space<any>>
    %c0_i32_32 = arith.constant 0 : i32
    %c0_i32_33 = arith.constant 0 : i32
    %41 = tpu.memref_slice %arg4[%c4_i32, %c0_i32_32, %c0_i32_33] : memref<8x8x128xf32, #tpu.memory_space<vmem>> -> memref<1x1x128xf32, #tpu.memory_space<vmem>>
    %42 = tpu.memref_squeeze %41 : memref<1x1x128xf32, #tpu.memory_space<vmem>> -> memref<1x128xf32, #tpu.memory_space<vmem>>
    %43 = tpu.memref_slice %arg5[%c4_i32_29, %c0_i32_30] : memref<8x8x!tpu.dma_semaphore, #tpu.memory_space<semaphore_mem>> -> memref<1x1x!tpu.dma_semaphore, #tpu.memory_space<semaphore_mem>>
    %44 = tpu.memref_squeeze %43 : memref<1x1x!tpu.dma_semaphore, #tpu.memory_space<semaphore_mem>> -> memref<!tpu.dma_semaphore, #tpu.memory_space<semaphore_mem>>
    tpu.enqueue_dma source(%40 : memref<1x128xf32, #tpu.memory_space<any>>) target(%42 : memref<1x128xf32, #tpu.memory_space<vmem>>) target_semaphore(%44 : memref<!tpu.dma_semaphore, #tpu.memory_space<semaphore_mem>>)
    %c8_i32_34 = arith.constant 8 : i32
    %45 = arith.muli %arg0, %c8_i32_34 : i32
    %c0_i32_35 = arith.constant 0 : i32
    %46 = arith.addi %45, %c0_i32_35 : i32
    %47 = arith.index_cast %46 : i32 to index
    %c5 = arith.constant 5 : index
    %48 = memref.load %arg1[%47, %c5] : memref<16x8xi32, #tpu.memory_space<smem>>
    %c5_i32 = arith.constant 5 : i32
    %c5_i32_36 = arith.constant 5 : i32
    %c0_i32_37 = arith.constant 0 : i32
    %c0_i32_38 = arith.constant 0 : i32
    %49 = tpu.memref_slice %arg2[%48, %c0_i32_38] : memref<256x128xf32, #tpu.memory_space<any>> -> memref<1x128xf32, #tpu.memory_space<any>>
    %c0_i32_39 = arith.constant 0 : i32
    %c0_i32_40 = arith.constant 0 : i32
    %50 = tpu.memref_slice %arg4[%c5_i32, %c0_i32_39, %c0_i32_40] : memref<8x8x128xf32, #tpu.memory_space<vmem>> -> memref<1x1x128xf32, #tpu.memory_space<vmem>>
    %51 = tpu.memref_squeeze %50 : memref<1x1x128xf32, #tpu.memory_space<vmem>> -> memref<1x128xf32, #tpu.memory_space<vmem>>
    %52 = tpu.memref_slice %arg5[%c5_i32_36, %c0_i32_37] : memref<8x8x!tpu.dma_semaphore, #tpu.memory_space<semaphore_mem>> -> memref<1x1x!tpu.dma_semaphore, #tpu.memory_space<semaphore_mem>>
    %53 = tpu.memref_squeeze %52 : memref<1x1x!tpu.dma_semaphore, #tpu.memory_space<semaphore_mem>> -> memref<!tpu.dma_semaphore, #tpu.memory_space<semaphore_mem>>
    tpu.enqueue_dma source(%49 : memref<1x128xf32, #tpu.memory_space<any>>) target(%51 : memref<1x128xf32, #tpu.memory_space<vmem>>) target_semaphore(%53 : memref<!tpu.dma_semaphore, #tpu.memory_space<semaphore_mem>>)
    %c8_i32_41 = arith.constant 8 : i32
    %54 = arith.muli %arg0, %c8_i32_41 : i32
    %c0_i32_42 = arith.constant 0 : i32
    %55 = arith.addi %54, %c0_i32_42 : i32
    %56 = arith.index_cast %55 : i32 to index
    %c6 = arith.constant 6 : index
    %57 = memref.load %arg1[%56, %c6] : memref<16x8xi32, #tpu.memory_space<smem>>
    %c6_i32 = arith.constant 6 : i32
    %c6_i32_43 = arith.constant 6 : i32
    %c0_i32_44 = arith.constant 0 : i32
    %c0_i32_45 = arith.constant 0 : i32
    %58 = tpu.memref_slice %arg2[%57, %c0_i32_45] : memref<256x128xf32, #tpu.memory_space<any>> -> memref<1x128xf32, #tpu.memory_space<any>>
    %c0_i32_46 = arith.constant 0 : i32
    %c0_i32_47 = arith.constant 0 : i32
    %59 = tpu.memref_slice %arg4[%c6_i32, %c0_i32_46, %c0_i32_47] : memref<8x8x128xf32, #tpu.memory_space<vmem>> -> memref<1x1x128xf32, #tpu.memory_space<vmem>>
    %60 = tpu.memref_squeeze %59 : memref<1x1x128xf32, #tpu.memory_space<vmem>> -> memref<1x128xf32, #tpu.memory_space<vmem>>
    %61 = tpu.memref_slice %arg5[%c6_i32_43, %c0_i32_44] : memref<8x8x!tpu.dma_semaphore, #tpu.memory_space<semaphore_mem>> -> memref<1x1x!tpu.dma_semaphore, #tpu.memory_space<semaphore_mem>>
    %62 = tpu.memref_squeeze %61 : memref<1x1x!tpu.dma_semaphore, #tpu.memory_space<semaphore_mem>> -> memref<!tpu.dma_semaphore, #tpu.memory_space<semaphore_mem>>
    tpu.enqueue_dma source(%58 : memref<1x128xf32, #tpu.memory_space<any>>) target(%60 : memref<1x128xf32, #tpu.memory_space<vmem>>) target_semaphore(%62 : memref<!tpu.dma_semaphore, #tpu.memory_space<semaphore_mem>>)
    %c8_i32_48 = arith.constant 8 : i32
    %63 = arith.muli %arg0, %c8_i32_48 : i32
    %c0_i32_49 = arith.constant 0 : i32
    %64 = arith.addi %63, %c0_i32_49 : i32
    %65 = arith.index_cast %64 : i32 to index
    %c7 = arith.constant 7 : index
    %66 = memref.load %arg1[%65, %c7] : memref<16x8xi32, #tpu.memory_space<smem>>
    %c7_i32 = arith.constant 7 : i32
    %c7_i32_50 = arith.constant 7 : i32
    %c0_i32_51 = arith.constant 0 : i32
    %c0_i32_52 = arith.constant 0 : i32
    %67 = tpu.memref_slice %arg2[%66, %c0_i32_52] : memref<256x128xf32, #tpu.memory_space<any>> -> memref<1x128xf32, #tpu.memory_space<any>>
    %c0_i32_53 = arith.constant 0 : i32
    %c0_i32_54 = arith.constant 0 : i32
    %68 = tpu.memref_slice %arg4[%c7_i32, %c0_i32_53, %c0_i32_54] : memref<8x8x128xf32, #tpu.memory_space<vmem>> -> memref<1x1x128xf32, #tpu.memory_space<vmem>>
    %69 = tpu.memref_squeeze %68 : memref<1x1x128xf32, #tpu.memory_space<vmem>> -> memref<1x128xf32, #tpu.memory_space<vmem>>
    %70 = tpu.memref_slice %arg5[%c7_i32_50, %c0_i32_51] : memref<8x8x!tpu.dma_semaphore, #tpu.memory_space<semaphore_mem>> -> memref<1x1x!tpu.dma_semaphore, #tpu.memory_space<semaphore_mem>>
    %71 = tpu.memref_squeeze %70 : memref<1x1x!tpu.dma_semaphore, #tpu.memory_space<semaphore_mem>> -> memref<!tpu.dma_semaphore, #tpu.memory_space<semaphore_mem>>
    tpu.enqueue_dma source(%67 : memref<1x128xf32, #tpu.memory_space<any>>) target(%69 : memref<1x128xf32, #tpu.memory_space<vmem>>) target_semaphore(%71 : memref<!tpu.dma_semaphore, #tpu.memory_space<semaphore_mem>>)
    %c8_i32_55 = arith.constant 8 : i32
    %72 = arith.muli %arg0, %c8_i32_55 : i32
    %c1_i32_56 = arith.constant 1 : i32
    %73 = arith.addi %72, %c1_i32_56 : i32
    %74 = arith.index_cast %73 : i32 to index
    %c0_57 = arith.constant 0 : index
    %75 = memref.load %arg1[%74, %c0_57] : memref<16x8xi32, #tpu.memory_space<smem>>
    %c0_i32_58 = arith.constant 0 : i32
    %c0_i32_59 = arith.constant 0 : i32
    %c1_i32_60 = arith.constant 1 : i32
    %c0_i32_61 = arith.constant 0 : i32
    %76 = tpu.memref_slice %arg2[%75, %c0_i32_61] : memref<256x128xf32, #tpu.memory_space<any>> -> memref<1x128xf32, #tpu.memory_space<any>>
    %c1_i32_62 = arith.constant 1 : i32
    %c0_i32_63 = arith.constant 0 : i32
    %77 = tpu.memref_slice %arg4[%c0_i32_58, %c1_i32_62, %c0_i32_63] : memref<8x8x128xf32, #tpu.memory_space<vmem>> -> memref<1x1x128xf32, #tpu.memory_space<vmem>>
    %78 = tpu.memref_squeeze %77 : memref<1x1x128xf32, #tpu.memory_space<vmem>> -> memref<1x128xf32, #tpu.memory_space<vmem>>
    %79 = tpu.memref_slice %arg5[%c0_i32_59, %c1_i32_60] : memref<8x8x!tpu.dma_semaphore, #tpu.memory_space<semaphore_mem>> -> memref<1x1x!tpu.dma_semaphore, #tpu.memory_space<semaphore_mem>>
    %80 = tpu.memref_squeeze %79 : memref<1x1x!tpu.dma_semaphore, #tpu.memory_space<semaphore_mem>> -> memref<!tpu.dma_semaphore, #tpu.memory_space<semaphore_mem>>
    tpu.enqueue_dma source(%76 : memref<1x128xf32, #tpu.memory_space<any>>) target(%78 : memref<1x128xf32, #tpu.memory_space<vmem>>) target_semaphore(%80 : memref<!tpu.dma_semaphore, #tpu.memory_space<semaphore_mem>>)
    %c8_i32_64 = arith.constant 8 : i32
    %81 = arith.muli %arg0, %c8_i32_64 : i32
    %c1_i32_65 = arith.constant 1 : i32
    %82 = arith.addi %81, %c1_i32_65 : i32
    %83 = arith.index_cast %82 : i32 to index
    %c1_66 = arith.constant 1 : index
    %84 = memref.load %arg1[%83, %c1_66] : memref<16x8xi32, #tpu.memory_space<smem>>
    %c1_i32_67 = arith.constant 1 : i32
    %c1_i32_68 = arith.constant 1 : i32
    %c1_i32_69 = arith.constant 1 : i32
    %c0_i32_70 = arith.constant 0 : i32
    %85 = tpu.memref_slice %arg2[%84, %c0_i32_70] : memref<256x128xf32, #tpu.memory_space<any>> -> memref<1x128xf32, #tpu.memory_space<any>>
    %c1_i32_71 = arith.constant 1 : i32
    %c0_i32_72 = arith.constant 0 : i32
    %86 = tpu.memref_slice %arg4[%c1_i32_67, %c1_i32_71, %c0_i32_72] : memref<8x8x128xf32, #tpu.memory_space<vmem>> -> memref<1x1x128xf32, #tpu.memory_space<vmem>>
    %87 = tpu.memref_squeeze %86 : memref<1x1x128xf32, #tpu.memory_space<vmem>> -> memref<1x128xf32, #tpu.memory_space<vmem>>
    %88 = tpu.memref_slice %arg5[%c1_i32_68, %c1_i32_69] : memref<8x8x!tpu.dma_semaphore, #tpu.memory_space<semaphore_mem>> -> memref<1x1x!tpu.dma_semaphore, #tpu.memory_space<semaphore_mem>>
    %89 = tpu.memref_squeeze %88 : memref<1x1x!tpu.dma_semaphore, #tpu.memory_space<semaphore_mem>> -> memref<!tpu.dma_semaphore, #tpu.memory_space<semaphore_mem>>
    tpu.enqueue_dma source(%85 : memref<1x128xf32, #tpu.memory_space<any>>) target(%87 : memref<1x128xf32, #tpu.memory_space<vmem>>) target_semaphore(%89 : memref<!tpu.dma_semaphore, #tpu.memory_space<semaphore_mem>>)
    %c8_i32_73 = arith.constant 8 : i32
    %90 = arith.muli %arg0, %c8_i32_73 : i32
    %c1_i32_74 = arith.constant 1 : i32
    %91 = arith.addi %90, %c1_i32_74 : i32
    %92 = arith.index_cast %91 : i32 to index
    %c2_75 = arith.constant 2 : index
    %93 = memref.load %arg1[%92, %c2_75] : memref<16x8xi32, #tpu.memory_space<smem>>
    %c2_i32_76 = arith.constant 2 : i32
    %c2_i32_77 = arith.constant 2 : i32
    %c1_i32_78 = arith.constant 1 : i32
    %c0_i32_79 = arith.constant 0 : i32
    %94 = tpu.memref_slice %arg2[%93, %c0_i32_79] : memref<256x128xf32, #tpu.memory_space<any>> -> memref<1x128xf32, #tpu.memory_space<any>>
    %c1_i32_80 = arith.constant 1 : i32
    %c0_i32_81 = arith.constant 0 : i32
    %95 = tpu.memref_slice %arg4[%c2_i32_76, %c1_i32_80, %c0_i32_81] : memref<8x8x128xf32, #tpu.memory_space<vmem>> -> memref<1x1x128xf32, #tpu.memory_space<vmem>>
    %96 = tpu.memref_squeeze %95 : memref<1x1x128xf32, #tpu.memory_space<vmem>> -> memref<1x128xf32, #tpu.memory_space<vmem>>
    %97 = tpu.memref_slice %arg5[%c2_i32_77, %c1_i32_78] : memref<8x8x!tpu.dma_semaphore, #tpu.memory_space<semaphore_mem>> -> memref<1x1x!tpu.dma_semaphore, #tpu.memory_space<semaphore_mem>>
    %98 = tpu.memref_squeeze %97 : memref<1x1x!tpu.dma_semaphore, #tpu.memory_space<semaphore_mem>> -> memref<!tpu.dma_semaphore, #tpu.memory_space<semaphore_mem>>
    tpu.enqueue_dma source(%94 : memref<1x128xf32, #tpu.memory_space<any>>) target(%96 : memref<1x128xf32, #tpu.memory_space<vmem>>) target_semaphore(%98 : memref<!tpu.dma_semaphore, #tpu.memory_space<semaphore_mem>>)
    %c8_i32_82 = arith.constant 8 : i32
    %99 = arith.muli %arg0, %c8_i32_82 : i32
    %c1_i32_83 = arith.constant 1 : i32
    %100 = arith.addi %99, %c1_i32_83 : i32
    %101 = arith.index_cast %100 : i32 to index
    %c3_84 = arith.constant 3 : index
    %102 = memref.load %arg1[%101, %c3_84] : memref<16x8xi32, #tpu.memory_space<smem>>
    %c3_i32_85 = arith.constant 3 : i32
    %c3_i32_86 = arith.constant 3 : i32
    %c1_i32_87 = arith.constant 1 : i32
    %c0_i32_88 = arith.constant 0 : i32
    %103 = tpu.memref_slice %arg2[%102, %c0_i32_88] : memref<256x128xf32, #tpu.memory_space<any>> -> memref<1x128xf32, #tpu.memory_space<any>>
    %c1_i32_89 = arith.constant 1 : i32
    %c0_i32_90 = arith.constant 0 : i32
    %104 = tpu.memref_slice %arg4[%c3_i32_85, %c1_i32_89, %c0_i32_90] : memref<8x8x128xf32, #tpu.memory_space<vmem>> -> memref<1x1x128xf32, #tpu.memory_space<vmem>>
    %105 = tpu.memref_squeeze %104 : memref<1x1x128xf32, #tpu.memory_space<vmem>> -> memref<1x128xf32, #tpu.memory_space<vmem>>
    %106 = tpu.memref_slice %arg5[%c3_i32_86, %c1_i32_87] : memref<8x8x!tpu.dma_semaphore, #tpu.memory_space<semaphore_mem>> -> memref<1x1x!tpu.dma_semaphore, #tpu.memory_space<semaphore_mem>>
    %107 = tpu.memref_squeeze %106 : memref<1x1x!tpu.dma_semaphore, #tpu.memory_space<semaphore_mem>> -> memref<!tpu.dma_semaphore, #tpu.memory_space<semaphore_mem>>
    tpu.enqueue_dma source(%103 : memref<1x128xf32, #tpu.memory_space<any>>) target(%105 : memref<1x128xf32, #tpu.memory_space<vmem>>) target_semaphore(%107 : memref<!tpu.dma_semaphore, #tpu.memory_space<semaphore_mem>>)
    %c8_i32_91 = arith.constant 8 : i32
    %108 = arith.muli %arg0, %c8_i32_91 : i32
    %c1_i32_92 = arith.constant 1 : i32
    %109 = arith.addi %108, %c1_i32_92 : i32
    %110 = arith.index_cast %109 : i32 to index
    %c4_93 = arith.constant 4 : index
    %111 = memref.load %arg1[%110, %c4_93] : memref<16x8xi32, #tpu.memory_space<smem>>
    %c4_i32_94 = arith.constant 4 : i32
    %c4_i32_95 = arith.constant 4 : i32
    %c1_i32_96 = arith.constant 1 : i32
    %c0_i32_97 = arith.constant 0 : i32
    %112 = tpu.memref_slice %arg2[%111, %c0_i32_97] : memref<256x128xf32, #tpu.memory_space<any>> -> memref<1x128xf32, #tpu.memory_space<any>>
    %c1_i32_98 = arith.constant 1 : i32
    %c0_i32_99 = arith.constant 0 : i32
    %113 = tpu.memref_slice %arg4[%c4_i32_94, %c1_i32_98, %c0_i32_99] : memref<8x8x128xf32, #tpu.memory_space<vmem>> -> memref<1x1x128xf32, #tpu.memory_space<vmem>>
    %114 = tpu.memref_squeeze %113 : memref<1x1x128xf32, #tpu.memory_space<vmem>> -> memref<1x128xf32, #tpu.memory_space<vmem>>
    %115 = tpu.memref_slice %arg5[%c4_i32_95, %c1_i32_96] : memref<8x8x!tpu.dma_semaphore, #tpu.memory_space<semaphore_mem>> -> memref<1x1x!tpu.dma_semaphore, #tpu.memory_space<semaphore_mem>>
    %116 = tpu.memref_squeeze %115 : memref<1x1x!tpu.dma_semaphore, #tpu.memory_space<semaphore_mem>> -> memref<!tpu.dma_semaphore, #tpu.memory_space<semaphore_mem>>
    tpu.enqueue_dma source(%112 : memref<1x128xf32, #tpu.memory_space<any>>) target(%114 : memref<1x128xf32, #tpu.memory_space<vmem>>) target_semaphore(%116 : memref<!tpu.dma_semaphore, #tpu.memory_space<semaphore_mem>>)
    %c8_i32_100 = arith.constant 8 : i32
    %117 = arith.muli %arg0, %c8_i32_100 : i32
    %c1_i32_101 = arith.constant 1 : i32
    %118 = arith.addi %117, %c1_i32_101 : i32
    %119 = arith.index_cast %118 : i32 to index
    %c5_102 = arith.constant 5 : index
    %120 = memref.load %arg1[%119, %c5_102] : memref<16x8xi32, #tpu.memory_space<smem>>
    %c5_i32_103 = arith.constant 5 : i32
    %c5_i32_104 = arith.constant 5 : i32
    %c1_i32_105 = arith.constant 1 : i32
    %c0_i32_106 = arith.constant 0 : i32
    %121 = tpu.memref_slice %arg2[%120, %c0_i32_106] : memref<256x128xf32, #tpu.memory_space<any>> -> memref<1x128xf32, #tpu.memory_space<any>>
    %c1_i32_107 = arith.constant 1 : i32
    %c0_i32_108 = arith.constant 0 : i32
    %122 = tpu.memref_slice %arg4[%c5_i32_103, %c1_i32_107, %c0_i32_108] : memref<8x8x128xf32, #tpu.memory_space<vmem>> -> memref<1x1x128xf32, #tpu.memory_space<vmem>>
    %123 = tpu.memref_squeeze %122 : memref<1x1x128xf32, #tpu.memory_space<vmem>> -> memref<1x128xf32, #tpu.memory_space<vmem>>
    %124 = tpu.memref_slice %arg5[%c5_i32_104, %c1_i32_105] : memref<8x8x!tpu.dma_semaphore, #tpu.memory_space<semaphore_mem>> -> memref<1x1x!tpu.dma_semaphore, #tpu.memory_space<semaphore_mem>>
    %125 = tpu.memref_squeeze %124 : memref<1x1x!tpu.dma_semaphore, #tpu.memory_space<semaphore_mem>> -> memref<!tpu.dma_semaphore, #tpu.memory_space<semaphore_mem>>
    tpu.enqueue_dma source(%121 : memref<1x128xf32, #tpu.memory_space<any>>) target(%123 : memref<1x128xf32, #tpu.memory_space<vmem>>) target_semaphore(%125 : memref<!tpu.dma_semaphore, #tpu.memory_space<semaphore_mem>>)
    %c8_i32_109 = arith.constant 8 : i32
    %126 = arith.muli %arg0, %c8_i32_109 : i32
    %c1_i32_110 = arith.constant 1 : i32
    %127 = arith.addi %126, %c1_i32_110 : i32
    %128 = arith.index_cast %127 : i32 to index
    %c6_111 = arith.constant 6 : index
    %129 = memref.load %arg1[%128, %c6_111] : memref<16x8xi32, #tpu.memory_space<smem>>
    %c6_i32_112 = arith.constant 6 : i32
    %c6_i32_113 = arith.constant 6 : i32
    %c1_i32_114 = arith.constant 1 : i32
    %c0_i32_115 = arith.constant 0 : i32
    %130 = tpu.memref_slice %arg2[%129, %c0_i32_115] : memref<256x128xf32, #tpu.memory_space<any>> -> memref<1x128xf32, #tpu.memory_space<any>>
    %c1_i32_116 = arith.constant 1 : i32
    %c0_i32_117 = arith.constant 0 : i32
    %131 = tpu.memref_slice %arg4[%c6_i32_112, %c1_i32_116, %c0_i32_117] : memref<8x8x128xf32, #tpu.memory_space<vmem>> -> memref<1x1x128xf32, #tpu.memory_space<vmem>>
    %132 = tpu.memref_squeeze %131 : memref<1x1x128xf32, #tpu.memory_space<vmem>> -> memref<1x128xf32, #tpu.memory_space<vmem>>
    %133 = tpu.memref_slice %arg5[%c6_i32_113, %c1_i32_114] : memref<8x8x!tpu.dma_semaphore, #tpu.memory_space<semaphore_mem>> -> memref<1x1x!tpu.dma_semaphore, #tpu.memory_space<semaphore_mem>>
    %134 = tpu.memref_squeeze %133 : memref<1x1x!tpu.dma_semaphore, #tpu.memory_space<semaphore_mem>> -> memref<!tpu.dma_semaphore, #tpu.memory_space<semaphore_mem>>
    tpu.enqueue_dma source(%130 : memref<1x128xf32, #tpu.memory_space<any>>) target(%132 : memref<1x128xf32, #tpu.memory_space<vmem>>) target_semaphore(%134 : memref<!tpu.dma_semaphore, #tpu.memory_space<semaphore_mem>>)
    %c8_i32_118 = arith.constant 8 : i32
    %135 = arith.muli %arg0, %c8_i32_118 : i32
    %c1_i32_119 = arith.constant 1 : i32
    %136 = arith.addi %135, %c1_i32_119 : i32
    %137 = arith.index_cast %136 : i32 to index
    %c7_120 = arith.constant 7 : index
    %138 = memref.load %arg1[%137, %c7_120] : memref<16x8xi32, #tpu.memory_space<smem>>
    %c7_i32_121 = arith.constant 7 : i32
    %c7_i32_122 = arith.constant 7 : i32
    %c1_i32_123 = arith.constant 1 : i32
    %c0_i32_124 = arith.constant 0 : i32
    %139 = tpu.memref_slice %arg2[%138, %c0_i32_124] : memref<256x128xf32, #tpu.memory_space<any>> -> memref<1x128xf32, #tpu.memory_space<any>>
    %c1_i32_125 = arith.constant 1 : i32
    %c0_i32_126 = arith.constant 0 : i32
    %140 = tpu.memref_slice %arg4[%c7_i32_121, %c1_i32_125, %c0_i32_126] : memref<8x8x128xf32, #tpu.memory_space<vmem>> -> memref<1x1x128xf32, #tpu.memory_space<vmem>>
    %141 = tpu.memref_squeeze %140 : memref<1x1x128xf32, #tpu.memory_space<vmem>> -> memref<1x128xf32, #tpu.memory_space<vmem>>
    %142 = tpu.memref_slice %arg5[%c7_i32_122, %c1_i32_123] : memref<8x8x!tpu.dma_semaphore, #tpu.memory_space<semaphore_mem>> -> memref<1x1x!tpu.dma_semaphore, #tpu.memory_space<semaphore_mem>>
    %143 = tpu.memref_squeeze %142 : memref<1x1x!tpu.dma_semaphore, #tpu.memory_space<semaphore_mem>> -> memref<!tpu.dma_semaphore, #tpu.memory_space<semaphore_mem>>
    tpu.enqueue_dma source(%139 : memref<1x128xf32, #tpu.memory_space<any>>) target(%141 : memref<1x128xf32, #tpu.memory_space<vmem>>) target_semaphore(%143 : memref<!tpu.dma_semaphore, #tpu.memory_space<semaphore_mem>>)
    %c8_i32_127 = arith.constant 8 : i32
    %144 = arith.muli %arg0, %c8_i32_127 : i32
    %c2_i32_128 = arith.constant 2 : i32
    %145 = arith.addi %144, %c2_i32_128 : i32
    %146 = arith.index_cast %145 : i32 to index
    %c0_129 = arith.constant 0 : index
    %147 = memref.load %arg1[%146, %c0_129] : memref<16x8xi32, #tpu.memory_space<smem>>
    %c0_i32_130 = arith.constant 0 : i32
    %c0_i32_131 = arith.constant 0 : i32
    %c2_i32_132 = arith.constant 2 : i32
    %c0_i32_133 = arith.constant 0 : i32
    %148 = tpu.memref_slice %arg2[%147, %c0_i32_133] : memref<256x128xf32, #tpu.memory_space<any>> -> memref<1x128xf32, #tpu.memory_space<any>>
    %c2_i32_134 = arith.constant 2 : i32
    %c0_i32_135 = arith.constant 0 : i32
    %149 = tpu.memref_slice %arg4[%c0_i32_130, %c2_i32_134, %c0_i32_135] : memref<8x8x128xf32, #tpu.memory_space<vmem>> -> memref<1x1x128xf32, #tpu.memory_space<vmem>>
    %150 = tpu.memref_squeeze %149 : memref<1x1x128xf32, #tpu.memory_space<vmem>> -> memref<1x128xf32, #tpu.memory_space<vmem>>
    %151 = tpu.memref_slice %arg5[%c0_i32_131, %c2_i32_132] : memref<8x8x!tpu.dma_semaphore, #tpu.memory_space<semaphore_mem>> -> memref<1x1x!tpu.dma_semaphore, #tpu.memory_space<semaphore_mem>>
    %152 = tpu.memref_squeeze %151 : memref<1x1x!tpu.dma_semaphore, #tpu.memory_space<semaphore_mem>> -> memref<!tpu.dma_semaphore, #tpu.memory_space<semaphore_mem>>
    tpu.enqueue_dma source(%148 : memref<1x128xf32, #tpu.memory_space<any>>) target(%150 : memref<1x128xf32, #tpu.memory_space<vmem>>) target_semaphore(%152 : memref<!tpu.dma_semaphore, #tpu.memory_space<semaphore_mem>>)
    %c8_i32_136 = arith.constant 8 : i32
    %153 = arith.muli %arg0, %c8_i32_136 : i32
    %c2_i32_137 = arith.constant 2 : i32
    %154 = arith.addi %153, %c2_i32_137 : i32
    %155 = arith.index_cast %154 : i32 to index
    %c1_138 = arith.constant 1 : index
    %156 = memref.load %arg1[%155, %c1_138] : memref<16x8xi32, #tpu.memory_space<smem>>
    %c1_i32_139 = arith.constant 1 : i32
    %c1_i32_140 = arith.constant 1 : i32
    %c2_i32_141 = arith.constant 2 : i32
    %c0_i32_142 = arith.constant 0 : i32
    %157 = tpu.memref_slice %arg2[%156, %c0_i32_142] : memref<256x128xf32, #tpu.memory_space<any>> -> memref<1x128xf32, #tpu.memory_space<any>>
    %c2_i32_143 = arith.constant 2 : i32
    %c0_i32_144 = arith.constant 0 : i32
    %158 = tpu.memref_slice %arg4[%c1_i32_139, %c2_i32_143, %c0_i32_144] : memref<8x8x128xf32, #tpu.memory_space<vmem>> -> memref<1x1x128xf32, #tpu.memory_space<vmem>>
    %159 = tpu.memref_squeeze %158 : memref<1x1x128xf32, #tpu.memory_space<vmem>> -> memref<1x128xf32, #tpu.memory_space<vmem>>
    %160 = tpu.memref_slice %arg5[%c1_i32_140, %c2_i32_141] : memref<8x8x!tpu.dma_semaphore, #tpu.memory_space<semaphore_mem>> -> memref<1x1x!tpu.dma_semaphore, #tpu.memory_space<semaphore_mem>>
    %161 = tpu.memref_squeeze %160 : memref<1x1x!tpu.dma_semaphore, #tpu.memory_space<semaphore_mem>> -> memref<!tpu.dma_semaphore, #tpu.memory_space<semaphore_mem>>
    tpu.enqueue_dma source(%157 : memref<1x128xf32, #tpu.memory_space<any>>) target(%159 : memref<1x128xf32, #tpu.memory_space<vmem>>) target_semaphore(%161 : memref<!tpu.dma_semaphore, #tpu.memory_space<semaphore_mem>>)
    %c8_i32_145 = arith.constant 8 : i32
    %162 = arith.muli %arg0, %c8_i32_145 : i32
    %c2_i32_146 = arith.constant 2 : i32
    %163 = arith.addi %162, %c2_i32_146 : i32
    %164 = arith.index_cast %163 : i32 to index
    %c2_147 = arith.constant 2 : index
    %165 = memref.load %arg1[%164, %c2_147] : memref<16x8xi32, #tpu.memory_space<smem>>
    %c2_i32_148 = arith.constant 2 : i32
    %c2_i32_149 = arith.constant 2 : i32
    %c2_i32_150 = arith.constant 2 : i32
    %c0_i32_151 = arith.constant 0 : i32
    %166 = tpu.memref_slice %arg2[%165, %c0_i32_151] : memref<256x128xf32, #tpu.memory_space<any>> -> memref<1x128xf32, #tpu.memory_space<any>>
    %c2_i32_152 = arith.constant 2 : i32
    %c0_i32_153 = arith.constant 0 : i32
    %167 = tpu.memref_slice %arg4[%c2_i32_148, %c2_i32_152, %c0_i32_153] : memref<8x8x128xf32, #tpu.memory_space<vmem>> -> memref<1x1x128xf32, #tpu.memory_space<vmem>>
    %168 = tpu.memref_squeeze %167 : memref<1x1x128xf32, #tpu.memory_space<vmem>> -> memref<1x128xf32, #tpu.memory_space<vmem>>
    %169 = tpu.memref_slice %arg5[%c2_i32_149, %c2_i32_150] : memref<8x8x!tpu.dma_semaphore, #tpu.memory_space<semaphore_mem>> -> memref<1x1x!tpu.dma_semaphore, #tpu.memory_space<semaphore_mem>>
    %170 = tpu.memref_squeeze %169 : memref<1x1x!tpu.dma_semaphore, #tpu.memory_space<semaphore_mem>> -> memref<!tpu.dma_semaphore, #tpu.memory_space<semaphore_mem>>
    tpu.enqueue_dma source(%166 : memref<1x128xf32, #tpu.memory_space<any>>) target(%168 : memref<1x128xf32, #tpu.memory_space<vmem>>) target_semaphore(%170 : memref<!tpu.dma_semaphore, #tpu.memory_space<semaphore_mem>>)
    %c8_i32_154 = arith.constant 8 : i32
    %171 = arith.muli %arg0, %c8_i32_154 : i32
    %c2_i32_155 = arith.constant 2 : i32
    %172 = arith.addi %171, %c2_i32_155 : i32
    %173 = arith.index_cast %172 : i32 to index
    %c3_156 = arith.constant 3 : index
    %174 = memref.load %arg1[%173, %c3_156] : memref<16x8xi32, #tpu.memory_space<smem>>
    %c3_i32_157 = arith.constant 3 : i32
    %c3_i32_158 = arith.constant 3 : i32
    %c2_i32_159 = arith.constant 2 : i32
    %c0_i32_160 = arith.constant 0 : i32
    %175 = tpu.memref_slice %arg2[%174, %c0_i32_160] : memref<256x128xf32, #tpu.memory_space<any>> -> memref<1x128xf32, #tpu.memory_space<any>>
    %c2_i32_161 = arith.constant 2 : i32
    %c0_i32_162 = arith.constant 0 : i32
    %176 = tpu.memref_slice %arg4[%c3_i32_157, %c2_i32_161, %c0_i32_162] : memref<8x8x128xf32, #tpu.memory_space<vmem>> -> memref<1x1x128xf32, #tpu.memory_space<vmem>>
    %177 = tpu.memref_squeeze %176 : memref<1x1x128xf32, #tpu.memory_space<vmem>> -> memref<1x128xf32, #tpu.memory_space<vmem>>
    %178 = tpu.memref_slice %arg5[%c3_i32_158, %c2_i32_159] : memref<8x8x!tpu.dma_semaphore, #tpu.memory_space<semaphore_mem>> -> memref<1x1x!tpu.dma_semaphore, #tpu.memory_space<semaphore_mem>>
    %179 = tpu.memref_squeeze %178 : memref<1x1x!tpu.dma_semaphore, #tpu.memory_space<semaphore_mem>> -> memref<!tpu.dma_semaphore, #tpu.memory_space<semaphore_mem>>
    tpu.enqueue_dma source(%175 : memref<1x128xf32, #tpu.memory_space<any>>) target(%177 : memref<1x128xf32, #tpu.memory_space<vmem>>) target_semaphore(%179 : memref<!tpu.dma_semaphore, #tpu.memory_space<semaphore_mem>>)
    %c8_i32_163 = arith.constant 8 : i32
    %180 = arith.muli %arg0, %c8_i32_163 : i32
    %c2_i32_164 = arith.constant 2 : i32
    %181 = arith.addi %180, %c2_i32_164 : i32
    %182 = arith.index_cast %181 : i32 to index
    %c4_165 = arith.constant 4 : index
    %183 = memref.load %arg1[%182, %c4_165] : memref<16x8xi32, #tpu.memory_space<smem>>
    %c4_i32_166 = arith.constant 4 : i32
    %c4_i32_167 = arith.constant 4 : i32
    %c2_i32_168 = arith.constant 2 : i32
    %c0_i32_169 = arith.constant 0 : i32
    %184 = tpu.memref_slice %arg2[%183, %c0_i32_169] : memref<256x128xf32, #tpu.memory_space<any>> -> memref<1x128xf32, #tpu.memory_space<any>>
    %c2_i32_170 = arith.constant 2 : i32
    %c0_i32_171 = arith.constant 0 : i32
    %185 = tpu.memref_slice %arg4[%c4_i32_166, %c2_i32_170, %c0_i32_171] : memref<8x8x128xf32, #tpu.memory_space<vmem>> -> memref<1x1x128xf32, #tpu.memory_space<vmem>>
    %186 = tpu.memref_squeeze %185 : memref<1x1x128xf32, #tpu.memory_space<vmem>> -> memref<1x128xf32, #tpu.memory_space<vmem>>
    %187 = tpu.memref_slice %arg5[%c4_i32_167, %c2_i32_168] : memref<8x8x!tpu.dma_semaphore, #tpu.memory_space<semaphore_mem>> -> memref<1x1x!tpu.dma_semaphore, #tpu.memory_space<semaphore_mem>>
    %188 = tpu.memref_squeeze %187 : memref<1x1x!tpu.dma_semaphore, #tpu.memory_space<semaphore_mem>> -> memref<!tpu.dma_semaphore, #tpu.memory_space<semaphore_mem>>
    tpu.enqueue_dma source(%184 : memref<1x128xf32, #tpu.memory_space<any>>) target(%186 : memref<1x128xf32, #tpu.memory_space<vmem>>) target_semaphore(%188 : memref<!tpu.dma_semaphore, #tpu.memory_space<semaphore_mem>>)
    %c8_i32_172 = arith.constant 8 : i32
    %189 = arith.muli %arg0, %c8_i32_172 : i32
    %c2_i32_173 = arith.constant 2 : i32
    %190 = arith.addi %189, %c2_i32_173 : i32
    %191 = arith.index_cast %190 : i32 to index
    %c5_174 = arith.constant 5 : index
    %192 = memref.load %arg1[%191, %c5_174] : memref<16x8xi32, #tpu.memory_space<smem>>
    %c5_i32_175 = arith.constant 5 : i32
    %c5_i32_176 = arith.constant 5 : i32
    %c2_i32_177 = arith.constant 2 : i32
    %c0_i32_178 = arith.constant 0 : i32
    %193 = tpu.memref_slice %arg2[%192, %c0_i32_178] : memref<256x128xf32, #tpu.memory_space<any>> -> memref<1x128xf32, #tpu.memory_space<any>>
    %c2_i32_179 = arith.constant 2 : i32
    %c0_i32_180 = arith.constant 0 : i32
    %194 = tpu.memref_slice %arg4[%c5_i32_175, %c2_i32_179, %c0_i32_180] : memref<8x8x128xf32, #tpu.memory_space<vmem>> -> memref<1x1x128xf32, #tpu.memory_space<vmem>>
    %195 = tpu.memref_squeeze %194 : memref<1x1x128xf32, #tpu.memory_space<vmem>> -> memref<1x128xf32, #tpu.memory_space<vmem>>
    %196 = tpu.memref_slice %arg5[%c5_i32_176, %c2_i32_177] : memref<8x8x!tpu.dma_semaphore, #tpu.memory_space<semaphore_mem>> -> memref<1x1x!tpu.dma_semaphore, #tpu.memory_space<semaphore_mem>>
    %197 = tpu.memref_squeeze %196 : memref<1x1x!tpu.dma_semaphore, #tpu.memory_space<semaphore_mem>> -> memref<!tpu.dma_semaphore, #tpu.memory_space<semaphore_mem>>
    tpu.enqueue_dma source(%193 : memref<1x128xf32, #tpu.memory_space<any>>) target(%195 : memref<1x128xf32, #tpu.memory_space<vmem>>) target_semaphore(%197 : memref<!tpu.dma_semaphore, #tpu.memory_space<semaphore_mem>>)
    %c8_i32_181 = arith.constant 8 : i32
    %198 = arith.muli %arg0, %c8_i32_181 : i32
    %c2_i32_182 = arith.constant 2 : i32
    %199 = arith.addi %198, %c2_i32_182 : i32
    %200 = arith.index_cast %199 : i32 to index
    %c6_183 = arith.constant 6 : index
    %201 = memref.load %arg1[%200, %c6_183] : memref<16x8xi32, #tpu.memory_space<smem>>
    %c6_i32_184 = arith.constant 6 : i32
    %c6_i32_185 = arith.constant 6 : i32
    %c2_i32_186 = arith.constant 2 : i32
    %c0_i32_187 = arith.constant 0 : i32
    %202 = tpu.memref_slice %arg2[%201, %c0_i32_187] : memref<256x128xf32, #tpu.memory_space<any>> -> memref<1x128xf32, #tpu.memory_space<any>>
    %c2_i32_188 = arith.constant 2 : i32
    %c0_i32_189 = arith.constant 0 : i32
    %203 = tpu.memref_slice %arg4[%c6_i32_184, %c2_i32_188, %c0_i32_189] : memref<8x8x128xf32, #tpu.memory_space<vmem>> -> memref<1x1x128xf32, #tpu.memory_space<vmem>>
    %204 = tpu.memref_squeeze %203 : memref<1x1x128xf32, #tpu.memory_space<vmem>> -> memref<1x128xf32, #tpu.memory_space<vmem>>
    %205 = tpu.memref_slice %arg5[%c6_i32_185, %c2_i32_186] : memref<8x8x!tpu.dma_semaphore, #tpu.memory_space<semaphore_mem>> -> memref<1x1x!tpu.dma_semaphore, #tpu.memory_space<semaphore_mem>>
    %206 = tpu.memref_squeeze %205 : memref<1x1x!tpu.dma_semaphore, #tpu.memory_space<semaphore_mem>> -> memref<!tpu.dma_semaphore, #tpu.memory_space<semaphore_mem>>
    tpu.enqueue_dma source(%202 : memref<1x128xf32, #tpu.memory_space<any>>) target(%204 : memref<1x128xf32, #tpu.memory_space<vmem>>) target_semaphore(%206 : memref<!tpu.dma_semaphore, #tpu.memory_space<semaphore_mem>>)
    %c8_i32_190 = arith.constant 8 : i32
    %207 = arith.muli %arg0, %c8_i32_190 : i32
    %c2_i32_191 = arith.constant 2 : i32
    %208 = arith.addi %207, %c2_i32_191 : i32
    %209 = arith.index_cast %208 : i32 to index
    %c7_192 = arith.constant 7 : index
    %210 = memref.load %arg1[%209, %c7_192] : memref<16x8xi32, #tpu.memory_space<smem>>
    %c7_i32_193 = arith.constant 7 : i32
    %c7_i32_194 = arith.constant 7 : i32
    %c2_i32_195 = arith.constant 2 : i32
    %c0_i32_196 = arith.constant 0 : i32
    %211 = tpu.memref_slice %arg2[%210, %c0_i32_196] : memref<256x128xf32, #tpu.memory_space<any>> -> memref<1x128xf32, #tpu.memory_space<any>>
    %c2_i32_197 = arith.constant 2 : i32
    %c0_i32_198 = arith.constant 0 : i32
    %212 = tpu.memref_slice %arg4[%c7_i32_193, %c2_i32_197, %c0_i32_198] : memref<8x8x128xf32, #tpu.memory_space<vmem>> -> memref<1x1x128xf32, #tpu.memory_space<vmem>>
    %213 = tpu.memref_squeeze %212 : memref<1x1x128xf32, #tpu.memory_space<vmem>> -> memref<1x128xf32, #tpu.memory_space<vmem>>
    %214 = tpu.memref_slice %arg5[%c7_i32_194, %c2_i32_195] : memref<8x8x!tpu.dma_semaphore, #tpu.memory_space<semaphore_mem>> -> memref<1x1x!tpu.dma_semaphore, #tpu.memory_space<semaphore_mem>>
    %215 = tpu.memref_squeeze %214 : memref<1x1x!tpu.dma_semaphore, #tpu.memory_space<semaphore_mem>> -> memref<!tpu.dma_semaphore, #tpu.memory_space<semaphore_mem>>
    tpu.enqueue_dma source(%211 : memref<1x128xf32, #tpu.memory_space<any>>) target(%213 : memref<1x128xf32, #tpu.memory_space<vmem>>) target_semaphore(%215 : memref<!tpu.dma_semaphore, #tpu.memory_space<semaphore_mem>>)
    %c8_i32_199 = arith.constant 8 : i32
    %216 = arith.muli %arg0, %c8_i32_199 : i32
    %c3_i32_200 = arith.constant 3 : i32
    %217 = arith.addi %216, %c3_i32_200 : i32
    %218 = arith.index_cast %217 : i32 to index
    %c0_201 = arith.constant 0 : index
    %219 = memref.load %arg1[%218, %c0_201] : memref<16x8xi32, #tpu.memory_space<smem>>
    %c0_i32_202 = arith.constant 0 : i32
    %c0_i32_203 = arith.constant 0 : i32
    %c3_i32_204 = arith.constant 3 : i32
    %c0_i32_205 = arith.constant 0 : i32
    %220 = tpu.memref_slice %arg2[%219, %c0_i32_205] : memref<256x128xf32, #tpu.memory_space<any>> -> memref<1x128xf32, #tpu.memory_space<any>>
    %c3_i32_206 = arith.constant 3 : i32
    %c0_i32_207 = arith.constant 0 : i32
    %221 = tpu.memref_slice %arg4[%c0_i32_202, %c3_i32_206, %c0_i32_207] : memref<8x8x128xf32, #tpu.memory_space<vmem>> -> memref<1x1x128xf32, #tpu.memory_space<vmem>>
    %222 = tpu.memref_squeeze %221 : memref<1x1x128xf32, #tpu.memory_space<vmem>> -> memref<1x128xf32, #tpu.memory_space<vmem>>
    %223 = tpu.memref_slice %arg5[%c0_i32_203, %c3_i32_204] : memref<8x8x!tpu.dma_semaphore, #tpu.memory_space<semaphore_mem>> -> memref<1x1x!tpu.dma_semaphore, #tpu.memory_space<semaphore_mem>>
    %224 = tpu.memref_squeeze %223 : memref<1x1x!tpu.dma_semaphore, #tpu.memory_space<semaphore_mem>> -> memref<!tpu.dma_semaphore, #tpu.memory_space<semaphore_mem>>
    tpu.enqueue_dma source(%220 : memref<1x128xf32, #tpu.memory_space<any>>) target(%222 : memref<1x128xf32, #tpu.memory_space<vmem>>) target_semaphore(%224 : memref<!tpu.dma_semaphore, #tpu.memory_space<semaphore_mem>>)
    %c8_i32_208 = arith.constant 8 : i32
    %225 = arith.muli %arg0, %c8_i32_208 : i32
    %c3_i32_209 = arith.constant 3 : i32
    %226 = arith.addi %225, %c3_i32_209 : i32
    %227 = arith.index_cast %226 : i32 to index
    %c1_210 = arith.constant 1 : index
    %228 = memref.load %arg1[%227, %c1_210] : memref<16x8xi32, #tpu.memory_space<smem>>
    %c1_i32_211 = arith.constant 1 : i32
    %c1_i32_212 = arith.constant 1 : i32
    %c3_i32_213 = arith.constant 3 : i32
    %c0_i32_214 = arith.constant 0 : i32
    %229 = tpu.memref_slice %arg2[%228, %c0_i32_214] : memref<256x128xf32, #tpu.memory_space<any>> -> memref<1x128xf32, #tpu.memory_space<any>>
    %c3_i32_215 = arith.constant 3 : i32
    %c0_i32_216 = arith.constant 0 : i32
    %230 = tpu.memref_slice %arg4[%c1_i32_211, %c3_i32_215, %c0_i32_216] : memref<8x8x128xf32, #tpu.memory_space<vmem>> -> memref<1x1x128xf32, #tpu.memory_space<vmem>>
    %231 = tpu.memref_squeeze %230 : memref<1x1x128xf32, #tpu.memory_space<vmem>> -> memref<1x128xf32, #tpu.memory_space<vmem>>
    %232 = tpu.memref_slice %arg5[%c1_i32_212, %c3_i32_213] : memref<8x8x!tpu.dma_semaphore, #tpu.memory_space<semaphore_mem>> -> memref<1x1x!tpu.dma_semaphore, #tpu.memory_space<semaphore_mem>>
    %233 = tpu.memref_squeeze %232 : memref<1x1x!tpu.dma_semaphore, #tpu.memory_space<semaphore_mem>> -> memref<!tpu.dma_semaphore, #tpu.memory_space<semaphore_mem>>
    tpu.enqueue_dma source(%229 : memref<1x128xf32, #tpu.memory_space<any>>) target(%231 : memref<1x128xf32, #tpu.memory_space<vmem>>) target_semaphore(%233 : memref<!tpu.dma_semaphore, #tpu.memory_space<semaphore_mem>>)
    %c8_i32_217 = arith.constant 8 : i32
    %234 = arith.muli %arg0, %c8_i32_217 : i32
    %c3_i32_218 = arith.constant 3 : i32
    %235 = arith.addi %234, %c3_i32_218 : i32
    %236 = arith.index_cast %235 : i32 to index
    %c2_219 = arith.constant 2 : index
    %237 = memref.load %arg1[%236, %c2_219] : memref<16x8xi32, #tpu.memory_space<smem>>
    %c2_i32_220 = arith.constant 2 : i32
    %c2_i32_221 = arith.constant 2 : i32
    %c3_i32_222 = arith.constant 3 : i32
    %c0_i32_223 = arith.constant 0 : i32
    %238 = tpu.memref_slice %arg2[%237, %c0_i32_223] : memref<256x128xf32, #tpu.memory_space<any>> -> memref<1x128xf32, #tpu.memory_space<any>>
    %c3_i32_224 = arith.constant 3 : i32
    %c0_i32_225 = arith.constant 0 : i32
    %239 = tpu.memref_slice %arg4[%c2_i32_220, %c3_i32_224, %c0_i32_225] : memref<8x8x128xf32, #tpu.memory_space<vmem>> -> memref<1x1x128xf32, #tpu.memory_space<vmem>>
    %240 = tpu.memref_squeeze %239 : memref<1x1x128xf32, #tpu.memory_space<vmem>> -> memref<1x128xf32, #tpu.memory_space<vmem>>
    %241 = tpu.memref_slice %arg5[%c2_i32_221, %c3_i32_222] : memref<8x8x!tpu.dma_semaphore, #tpu.memory_space<semaphore_mem>> -> memref<1x1x!tpu.dma_semaphore, #tpu.memory_space<semaphore_mem>>
    %242 = tpu.memref_squeeze %241 : memref<1x1x!tpu.dma_semaphore, #tpu.memory_space<semaphore_mem>> -> memref<!tpu.dma_semaphore, #tpu.memory_space<semaphore_mem>>
    tpu.enqueue_dma source(%238 : memref<1x128xf32, #tpu.memory_space<any>>) target(%240 : memref<1x128xf32, #tpu.memory_space<vmem>>) target_semaphore(%242 : memref<!tpu.dma_semaphore, #tpu.memory_space<semaphore_mem>>)
    %c8_i32_226 = arith.constant 8 : i32
    %243 = arith.muli %arg0, %c8_i32_226 : i32
    %c3_i32_227 = arith.constant 3 : i32
    %244 = arith.addi %243, %c3_i32_227 : i32
    %245 = arith.index_cast %244 : i32 to index
    %c3_228 = arith.constant 3 : index
    %246 = memref.load %arg1[%245, %c3_228] : memref<16x8xi32, #tpu.memory_space<smem>>
    %c3_i32_229 = arith.constant 3 : i32
    %c3_i32_230 = arith.constant 3 : i32
    %c3_i32_231 = arith.constant 3 : i32
    %c0_i32_232 = arith.constant 0 : i32
    %247 = tpu.memref_slice %arg2[%246, %c0_i32_232] : memref<256x128xf32, #tpu.memory_space<any>> -> memref<1x128xf32, #tpu.memory_space<any>>
    %c3_i32_233 = arith.constant 3 : i32
    %c0_i32_234 = arith.constant 0 : i32
    %248 = tpu.memref_slice %arg4[%c3_i32_229, %c3_i32_233, %c0_i32_234] : memref<8x8x128xf32, #tpu.memory_space<vmem>> -> memref<1x1x128xf32, #tpu.memory_space<vmem>>
    %249 = tpu.memref_squeeze %248 : memref<1x1x128xf32, #tpu.memory_space<vmem>> -> memref<1x128xf32, #tpu.memory_space<vmem>>
    %250 = tpu.memref_slice %arg5[%c3_i32_230, %c3_i32_231] : memref<8x8x!tpu.dma_semaphore, #tpu.memory_space<semaphore_mem>> -> memref<1x1x!tpu.dma_semaphore, #tpu.memory_space<semaphore_mem>>
    %251 = tpu.memref_squeeze %250 : memref<1x1x!tpu.dma_semaphore, #tpu.memory_space<semaphore_mem>> -> memref<!tpu.dma_semaphore, #tpu.memory_space<semaphore_mem>>
    tpu.enqueue_dma source(%247 : memref<1x128xf32, #tpu.memory_space<any>>) target(%249 : memref<1x128xf32, #tpu.memory_space<vmem>>) target_semaphore(%251 : memref<!tpu.dma_semaphore, #tpu.memory_space<semaphore_mem>>)
    %c8_i32_235 = arith.constant 8 : i32
    %252 = arith.muli %arg0, %c8_i32_235 : i32
    %c3_i32_236 = arith.constant 3 : i32
    %253 = arith.addi %252, %c3_i32_236 : i32
    %254 = arith.index_cast %253 : i32 to index
    %c4_237 = arith.constant 4 : index
    %255 = memref.load %arg1[%254, %c4_237] : memref<16x8xi32, #tpu.memory_space<smem>>
    %c4_i32_238 = arith.constant 4 : i32
    %c4_i32_239 = arith.constant 4 : i32
    %c3_i32_240 = arith.constant 3 : i32
    %c0_i32_241 = arith.constant 0 : i32
    %256 = tpu.memref_slice %arg2[%255, %c0_i32_241] : memref<256x128xf32, #tpu.memory_space<any>> -> memref<1x128xf32, #tpu.memory_space<any>>
    %c3_i32_242 = arith.constant 3 : i32
    %c0_i32_243 = arith.constant 0 : i32
    %257 = tpu.memref_slice %arg4[%c4_i32_238, %c3_i32_242, %c0_i32_243] : memref<8x8x128xf32, #tpu.memory_space<vmem>> -> memref<1x1x128xf32, #tpu.memory_space<vmem>>
    %258 = tpu.memref_squeeze %257 : memref<1x1x128xf32, #tpu.memory_space<vmem>> -> memref<1x128xf32, #tpu.memory_space<vmem>>
    %259 = tpu.memref_slice %arg5[%c4_i32_239, %c3_i32_240] : memref<8x8x!tpu.dma_semaphore, #tpu.memory_space<semaphore_mem>> -> memref<1x1x!tpu.dma_semaphore, #tpu.memory_space<semaphore_mem>>
    %260 = tpu.memref_squeeze %259 : memref<1x1x!tpu.dma_semaphore, #tpu.memory_space<semaphore_mem>> -> memref<!tpu.dma_semaphore, #tpu.memory_space<semaphore_mem>>
    tpu.enqueue_dma source(%256 : memref<1x128xf32, #tpu.memory_space<any>>) target(%258 : memref<1x128xf32, #tpu.memory_space<vmem>>) target_semaphore(%260 : memref<!tpu.dma_semaphore, #tpu.memory_space<semaphore_mem>>)
    %c8_i32_244 = arith.constant 8 : i32
    %261 = arith.muli %arg0, %c8_i32_244 : i32
    %c3_i32_245 = arith.constant 3 : i32
    %262 = arith.addi %261, %c3_i32_245 : i32
    %263 = arith.index_cast %262 : i32 to index
    %c5_246 = arith.constant 5 : index
    %264 = memref.load %arg1[%263, %c5_246] : memref<16x8xi32, #tpu.memory_space<smem>>
    %c5_i32_247 = arith.constant 5 : i32
    %c5_i32_248 = arith.constant 5 : i32
    %c3_i32_249 = arith.constant 3 : i32
    %c0_i32_250 = arith.constant 0 : i32
    %265 = tpu.memref_slice %arg2[%264, %c0_i32_250] : memref<256x128xf32, #tpu.memory_space<any>> -> memref<1x128xf32, #tpu.memory_space<any>>
    %c3_i32_251 = arith.constant 3 : i32
    %c0_i32_252 = arith.constant 0 : i32
    %266 = tpu.memref_slice %arg4[%c5_i32_247, %c3_i32_251, %c0_i32_252] : memref<8x8x128xf32, #tpu.memory_space<vmem>> -> memref<1x1x128xf32, #tpu.memory_space<vmem>>
    %267 = tpu.memref_squeeze %266 : memref<1x1x128xf32, #tpu.memory_space<vmem>> -> memref<1x128xf32, #tpu.memory_space<vmem>>
    %268 = tpu.memref_slice %arg5[%c5_i32_248, %c3_i32_249] : memref<8x8x!tpu.dma_semaphore, #tpu.memory_space<semaphore_mem>> -> memref<1x1x!tpu.dma_semaphore, #tpu.memory_space<semaphore_mem>>
    %269 = tpu.memref_squeeze %268 : memref<1x1x!tpu.dma_semaphore, #tpu.memory_space<semaphore_mem>> -> memref<!tpu.dma_semaphore, #tpu.memory_space<semaphore_mem>>
    tpu.enqueue_dma source(%265 : memref<1x128xf32, #tpu.memory_space<any>>) target(%267 : memref<1x128xf32, #tpu.memory_space<vmem>>) target_semaphore(%269 : memref<!tpu.dma_semaphore, #tpu.memory_space<semaphore_mem>>)
    %c8_i32_253 = arith.constant 8 : i32
    %270 = arith.muli %arg0, %c8_i32_253 : i32
    %c3_i32_254 = arith.constant 3 : i32
    %271 = arith.addi %270, %c3_i32_254 : i32
    %272 = arith.index_cast %271 : i32 to index
    %c6_255 = arith.constant 6 : index
    %273 = memref.load %arg1[%272, %c6_255] : memref<16x8xi32, #tpu.memory_space<smem>>
    %c6_i32_256 = arith.constant 6 : i32
    %c6_i32_257 = arith.constant 6 : i32
    %c3_i32_258 = arith.constant 3 : i32
    %c0_i32_259 = arith.constant 0 : i32
    %274 = tpu.memref_slice %arg2[%273, %c0_i32_259] : memref<256x128xf32, #tpu.memory_space<any>> -> memref<1x128xf32, #tpu.memory_space<any>>
    %c3_i32_260 = arith.constant 3 : i32
    %c0_i32_261 = arith.constant 0 : i32
    %275 = tpu.memref_slice %arg4[%c6_i32_256, %c3_i32_260, %c0_i32_261] : memref<8x8x128xf32, #tpu.memory_space<vmem>> -> memref<1x1x128xf32, #tpu.memory_space<vmem>>
    %276 = tpu.memref_squeeze %275 : memref<1x1x128xf32, #tpu.memory_space<vmem>> -> memref<1x128xf32, #tpu.memory_space<vmem>>
    %277 = tpu.memref_slice %arg5[%c6_i32_257, %c3_i32_258] : memref<8x8x!tpu.dma_semaphore, #tpu.memory_space<semaphore_mem>> -> memref<1x1x!tpu.dma_semaphore, #tpu.memory_space<semaphore_mem>>
    %278 = tpu.memref_squeeze %277 : memref<1x1x!tpu.dma_semaphore, #tpu.memory_space<semaphore_mem>> -> memref<!tpu.dma_semaphore, #tpu.memory_space<semaphore_mem>>
    tpu.enqueue_dma source(%274 : memref<1x128xf32, #tpu.memory_space<any>>) target(%276 : memref<1x128xf32, #tpu.memory_space<vmem>>) target_semaphore(%278 : memref<!tpu.dma_semaphore, #tpu.memory_space<semaphore_mem>>)
    %c8_i32_262 = arith.constant 8 : i32
    %279 = arith.muli %arg0, %c8_i32_262 : i32
    %c3_i32_263 = arith.constant 3 : i32
    %280 = arith.addi %279, %c3_i32_263 : i32
    %281 = arith.index_cast %280 : i32 to index
    %c7_264 = arith.constant 7 : index
    %282 = memref.load %arg1[%281, %c7_264] : memref<16x8xi32, #tpu.memory_space<smem>>
    %c7_i32_265 = arith.constant 7 : i32
    %c7_i32_266 = arith.constant 7 : i32
    %c3_i32_267 = arith.constant 3 : i32
    %c0_i32_268 = arith.constant 0 : i32
    %283 = tpu.memref_slice %arg2[%282, %c0_i32_268] : memref<256x128xf32, #tpu.memory_space<any>> -> memref<1x128xf32, #tpu.memory_space<any>>
    %c3_i32_269 = arith.constant 3 : i32
    %c0_i32_270 = arith.constant 0 : i32
    %284 = tpu.memref_slice %arg4[%c7_i32_265, %c3_i32_269, %c0_i32_270] : memref<8x8x128xf32, #tpu.memory_space<vmem>> -> memref<1x1x128xf32, #tpu.memory_space<vmem>>
    %285 = tpu.memref_squeeze %284 : memref<1x1x128xf32, #tpu.memory_space<vmem>> -> memref<1x128xf32, #tpu.memory_space<vmem>>
    %286 = tpu.memref_slice %arg5[%c7_i32_266, %c3_i32_267] : memref<8x8x!tpu.dma_semaphore, #tpu.memory_space<semaphore_mem>> -> memref<1x1x!tpu.dma_semaphore, #tpu.memory_space<semaphore_mem>>
    %287 = tpu.memref_squeeze %286 : memref<1x1x!tpu.dma_semaphore, #tpu.memory_space<semaphore_mem>> -> memref<!tpu.dma_semaphore, #tpu.memory_space<semaphore_mem>>
    tpu.enqueue_dma source(%283 : memref<1x128xf32, #tpu.memory_space<any>>) target(%285 : memref<1x128xf32, #tpu.memory_space<vmem>>) target_semaphore(%287 : memref<!tpu.dma_semaphore, #tpu.memory_space<semaphore_mem>>)
    %c8_i32_271 = arith.constant 8 : i32
    %288 = arith.muli %arg0, %c8_i32_271 : i32
    %c4_i32_272 = arith.constant 4 : i32
    %289 = arith.addi %288, %c4_i32_272 : i32
    %290 = arith.index_cast %289 : i32 to index
    %c0_273 = arith.constant 0 : index
    %291 = memref.load %arg1[%290, %c0_273] : memref<16x8xi32, #tpu.memory_space<smem>>
    %c0_i32_274 = arith.constant 0 : i32
    %c0_i32_275 = arith.constant 0 : i32
    %c4_i32_276 = arith.constant 4 : i32
    %c0_i32_277 = arith.constant 0 : i32
    %292 = tpu.memref_slice %arg2[%291, %c0_i32_277] : memref<256x128xf32, #tpu.memory_space<any>> -> memref<1x128xf32, #tpu.memory_space<any>>
    %c4_i32_278 = arith.constant 4 : i32
    %c0_i32_279 = arith.constant 0 : i32
    %293 = tpu.memref_slice %arg4[%c0_i32_274, %c4_i32_278, %c0_i32_279] : memref<8x8x128xf32, #tpu.memory_space<vmem>> -> memref<1x1x128xf32, #tpu.memory_space<vmem>>
    %294 = tpu.memref_squeeze %293 : memref<1x1x128xf32, #tpu.memory_space<vmem>> -> memref<1x128xf32, #tpu.memory_space<vmem>>
    %295 = tpu.memref_slice %arg5[%c0_i32_275, %c4_i32_276] : memref<8x8x!tpu.dma_semaphore, #tpu.memory_space<semaphore_mem>> -> memref<1x1x!tpu.dma_semaphore, #tpu.memory_space<semaphore_mem>>
    %296 = tpu.memref_squeeze %295 : memref<1x1x!tpu.dma_semaphore, #tpu.memory_space<semaphore_mem>> -> memref<!tpu.dma_semaphore, #tpu.memory_space<semaphore_mem>>
    tpu.enqueue_dma source(%292 : memref<1x128xf32, #tpu.memory_space<any>>) target(%294 : memref<1x128xf32, #tpu.memory_space<vmem>>) target_semaphore(%296 : memref<!tpu.dma_semaphore, #tpu.memory_space<semaphore_mem>>)
    %c8_i32_280 = arith.constant 8 : i32
    %297 = arith.muli %arg0, %c8_i32_280 : i32
    %c4_i32_281 = arith.constant 4 : i32
    %298 = arith.addi %297, %c4_i32_281 : i32
    %299 = arith.index_cast %298 : i32 to index
    %c1_282 = arith.constant 1 : index
    %300 = memref.load %arg1[%299, %c1_282] : memref<16x8xi32, #tpu.memory_space<smem>>
    %c1_i32_283 = arith.constant 1 : i32
    %c1_i32_284 = arith.constant 1 : i32
    %c4_i32_285 = arith.constant 4 : i32
    %c0_i32_286 = arith.constant 0 : i32
    %301 = tpu.memref_slice %arg2[%300, %c0_i32_286] : memref<256x128xf32, #tpu.memory_space<any>> -> memref<1x128xf32, #tpu.memory_space<any>>
    %c4_i32_287 = arith.constant 4 : i32
    %c0_i32_288 = arith.constant 0 : i32
    %302 = tpu.memref_slice %arg4[%c1_i32_283, %c4_i32_287, %c0_i32_288] : memref<8x8x128xf32, #tpu.memory_space<vmem>> -> memref<1x1x128xf32, #tpu.memory_space<vmem>>
    %303 = tpu.memref_squeeze %302 : memref<1x1x128xf32, #tpu.memory_space<vmem>> -> memref<1x128xf32, #tpu.memory_space<vmem>>
    %304 = tpu.memref_slice %arg5[%c1_i32_284, %c4_i32_285] : memref<8x8x!tpu.dma_semaphore, #tpu.memory_space<semaphore_mem>> -> memref<1x1x!tpu.dma_semaphore, #tpu.memory_space<semaphore_mem>>
    %305 = tpu.memref_squeeze %304 : memref<1x1x!tpu.dma_semaphore, #tpu.memory_space<semaphore_mem>> -> memref<!tpu.dma_semaphore, #tpu.memory_space<semaphore_mem>>
    tpu.enqueue_dma source(%301 : memref<1x128xf32, #tpu.memory_space<any>>) target(%303 : memref<1x128xf32, #tpu.memory_space<vmem>>) target_semaphore(%305 : memref<!tpu.dma_semaphore, #tpu.memory_space<semaphore_mem>>)
    %c8_i32_289 = arith.constant 8 : i32
    %306 = arith.muli %arg0, %c8_i32_289 : i32
    %c4_i32_290 = arith.constant 4 : i32
    %307 = arith.addi %306, %c4_i32_290 : i32
    %308 = arith.index_cast %307 : i32 to index
    %c2_291 = arith.constant 2 : index
    %309 = memref.load %arg1[%308, %c2_291] : memref<16x8xi32, #tpu.memory_space<smem>>
    %c2_i32_292 = arith.constant 2 : i32
    %c2_i32_293 = arith.constant 2 : i32
    %c4_i32_294 = arith.constant 4 : i32
    %c0_i32_295 = arith.constant 0 : i32
    %310 = tpu.memref_slice %arg2[%309, %c0_i32_295] : memref<256x128xf32, #tpu.memory_space<any>> -> memref<1x128xf32, #tpu.memory_space<any>>
    %c4_i32_296 = arith.constant 4 : i32
    %c0_i32_297 = arith.constant 0 : i32
    %311 = tpu.memref_slice %arg4[%c2_i32_292, %c4_i32_296, %c0_i32_297] : memref<8x8x128xf32, #tpu.memory_space<vmem>> -> memref<1x1x128xf32, #tpu.memory_space<vmem>>
    %312 = tpu.memref_squeeze %311 : memref<1x1x128xf32, #tpu.memory_space<vmem>> -> memref<1x128xf32, #tpu.memory_space<vmem>>
    %313 = tpu.memref_slice %arg5[%c2_i32_293, %c4_i32_294] : memref<8x8x!tpu.dma_semaphore, #tpu.memory_space<semaphore_mem>> -> memref<1x1x!tpu.dma_semaphore, #tpu.memory_space<semaphore_mem>>
    %314 = tpu.memref_squeeze %313 : memref<1x1x!tpu.dma_semaphore, #tpu.memory_space<semaphore_mem>> -> memref<!tpu.dma_semaphore, #tpu.memory_space<semaphore_mem>>
    tpu.enqueue_dma source(%310 : memref<1x128xf32, #tpu.memory_space<any>>) target(%312 : memref<1x128xf32, #tpu.memory_space<vmem>>) target_semaphore(%314 : memref<!tpu.dma_semaphore, #tpu.memory_space<semaphore_mem>>)
    %c8_i32_298 = arith.constant 8 : i32
    %315 = arith.muli %arg0, %c8_i32_298 : i32
    %c4_i32_299 = arith.constant 4 : i32
    %316 = arith.addi %315, %c4_i32_299 : i32
    %317 = arith.index_cast %316 : i32 to index
    %c3_300 = arith.constant 3 : index
    %318 = memref.load %arg1[%317, %c3_300] : memref<16x8xi32, #tpu.memory_space<smem>>
    %c3_i32_301 = arith.constant 3 : i32
    %c3_i32_302 = arith.constant 3 : i32
    %c4_i32_303 = arith.constant 4 : i32
    %c0_i32_304 = arith.constant 0 : i32
    %319 = tpu.memref_slice %arg2[%318, %c0_i32_304] : memref<256x128xf32, #tpu.memory_space<any>> -> memref<1x128xf32, #tpu.memory_space<any>>
    %c4_i32_305 = arith.constant 4 : i32
    %c0_i32_306 = arith.constant 0 : i32
    %320 = tpu.memref_slice %arg4[%c3_i32_301, %c4_i32_305, %c0_i32_306] : memref<8x8x128xf32, #tpu.memory_space<vmem>> -> memref<1x1x128xf32, #tpu.memory_space<vmem>>
    %321 = tpu.memref_squeeze %320 : memref<1x1x128xf32, #tpu.memory_space<vmem>> -> memref<1x128xf32, #tpu.memory_space<vmem>>
    %322 = tpu.memref_slice %arg5[%c3_i32_302, %c4_i32_303] : memref<8x8x!tpu.dma_semaphore, #tpu.memory_space<semaphore_mem>> -> memref<1x1x!tpu.dma_semaphore, #tpu.memory_space<semaphore_mem>>
    %323 = tpu.memref_squeeze %322 : memref<1x1x!tpu.dma_semaphore, #tpu.memory_space<semaphore_mem>> -> memref<!tpu.dma_semaphore, #tpu.memory_space<semaphore_mem>>
    tpu.enqueue_dma source(%319 : memref<1x128xf32, #tpu.memory_space<any>>) target(%321 : memref<1x128xf32, #tpu.memory_space<vmem>>) target_semaphore(%323 : memref<!tpu.dma_semaphore, #tpu.memory_space<semaphore_mem>>)
    %c8_i32_307 = arith.constant 8 : i32
    %324 = arith.muli %arg0, %c8_i32_307 : i32
    %c4_i32_308 = arith.constant 4 : i32
    %325 = arith.addi %324, %c4_i32_308 : i32
    %326 = arith.index_cast %325 : i32 to index
    %c4_309 = arith.constant 4 : index
    %327 = memref.load %arg1[%326, %c4_309] : memref<16x8xi32, #tpu.memory_space<smem>>
    %c4_i32_310 = arith.constant 4 : i32
    %c4_i32_311 = arith.constant 4 : i32
    %c4_i32_312 = arith.constant 4 : i32
    %c0_i32_313 = arith.constant 0 : i32
    %328 = tpu.memref_slice %arg2[%327, %c0_i32_313] : memref<256x128xf32, #tpu.memory_space<any>> -> memref<1x128xf32, #tpu.memory_space<any>>
    %c4_i32_314 = arith.constant 4 : i32
    %c0_i32_315 = arith.constant 0 : i32
    %329 = tpu.memref_slice %arg4[%c4_i32_310, %c4_i32_314, %c0_i32_315] : memref<8x8x128xf32, #tpu.memory_space<vmem>> -> memref<1x1x128xf32, #tpu.memory_space<vmem>>
    %330 = tpu.memref_squeeze %329 : memref<1x1x128xf32, #tpu.memory_space<vmem>> -> memref<1x128xf32, #tpu.memory_space<vmem>>
    %331 = tpu.memref_slice %arg5[%c4_i32_311, %c4_i32_312] : memref<8x8x!tpu.dma_semaphore, #tpu.memory_space<semaphore_mem>> -> memref<1x1x!tpu.dma_semaphore, #tpu.memory_space<semaphore_mem>>
    %332 = tpu.memref_squeeze %331 : memref<1x1x!tpu.dma_semaphore, #tpu.memory_space<semaphore_mem>> -> memref<!tpu.dma_semaphore, #tpu.memory_space<semaphore_mem>>
    tpu.enqueue_dma source(%328 : memref<1x128xf32, #tpu.memory_space<any>>) target(%330 : memref<1x128xf32, #tpu.memory_space<vmem>>) target_semaphore(%332 : memref<!tpu.dma_semaphore, #tpu.memory_space<semaphore_mem>>)
    %c8_i32_316 = arith.constant 8 : i32
    %333 = arith.muli %arg0, %c8_i32_316 : i32
    %c4_i32_317 = arith.constant 4 : i32
    %334 = arith.addi %333, %c4_i32_317 : i32
    %335 = arith.index_cast %334 : i32 to index
    %c5_318 = arith.constant 5 : index
    %336 = memref.load %arg1[%335, %c5_318] : memref<16x8xi32, #tpu.memory_space<smem>>
    %c5_i32_319 = arith.constant 5 : i32
    %c5_i32_320 = arith.constant 5 : i32
    %c4_i32_321 = arith.constant 4 : i32
    %c0_i32_322 = arith.constant 0 : i32
    %337 = tpu.memref_slice %arg2[%336, %c0_i32_322] : memref<256x128xf32, #tpu.memory_space<any>> -> memref<1x128xf32, #tpu.memory_space<any>>
    %c4_i32_323 = arith.constant 4 : i32
    %c0_i32_324 = arith.constant 0 : i32
    %338 = tpu.memref_slice %arg4[%c5_i32_319, %c4_i32_323, %c0_i32_324] : memref<8x8x128xf32, #tpu.memory_space<vmem>> -> memref<1x1x128xf32, #tpu.memory_space<vmem>>
    %339 = tpu.memref_squeeze %338 : memref<1x1x128xf32, #tpu.memory_space<vmem>> -> memref<1x128xf32, #tpu.memory_space<vmem>>
    %340 = tpu.memref_slice %arg5[%c5_i32_320, %c4_i32_321] : memref<8x8x!tpu.dma_semaphore, #tpu.memory_space<semaphore_mem>> -> memref<1x1x!tpu.dma_semaphore, #tpu.memory_space<semaphore_mem>>
    %341 = tpu.memref_squeeze %340 : memref<1x1x!tpu.dma_semaphore, #tpu.memory_space<semaphore_mem>> -> memref<!tpu.dma_semaphore, #tpu.memory_space<semaphore_mem>>
    tpu.enqueue_dma source(%337 : memref<1x128xf32, #tpu.memory_space<any>>) target(%339 : memref<1x128xf32, #tpu.memory_space<vmem>>) target_semaphore(%341 : memref<!tpu.dma_semaphore, #tpu.memory_space<semaphore_mem>>)
    %c8_i32_325 = arith.constant 8 : i32
    %342 = arith.muli %arg0, %c8_i32_325 : i32
    %c4_i32_326 = arith.constant 4 : i32
    %343 = arith.addi %342, %c4_i32_326 : i32
    %344 = arith.index_cast %343 : i32 to index
    %c6_327 = arith.constant 6 : index
    %345 = memref.load %arg1[%344, %c6_327] : memref<16x8xi32, #tpu.memory_space<smem>>
    %c6_i32_328 = arith.constant 6 : i32
    %c6_i32_329 = arith.constant 6 : i32
    %c4_i32_330 = arith.constant 4 : i32
    %c0_i32_331 = arith.constant 0 : i32
    %346 = tpu.memref_slice %arg2[%345, %c0_i32_331] : memref<256x128xf32, #tpu.memory_space<any>> -> memref<1x128xf32, #tpu.memory_space<any>>
    %c4_i32_332 = arith.constant 4 : i32
    %c0_i32_333 = arith.constant 0 : i32
    %347 = tpu.memref_slice %arg4[%c6_i32_328, %c4_i32_332, %c0_i32_333] : memref<8x8x128xf32, #tpu.memory_space<vmem>> -> memref<1x1x128xf32, #tpu.memory_space<vmem>>
    %348 = tpu.memref_squeeze %347 : memref<1x1x128xf32, #tpu.memory_space<vmem>> -> memref<1x128xf32, #tpu.memory_space<vmem>>
    %349 = tpu.memref_slice %arg5[%c6_i32_329, %c4_i32_330] : memref<8x8x!tpu.dma_semaphore, #tpu.memory_space<semaphore_mem>> -> memref<1x1x!tpu.dma_semaphore, #tpu.memory_space<semaphore_mem>>
    %350 = tpu.memref_squeeze %349 : memref<1x1x!tpu.dma_semaphore, #tpu.memory_space<semaphore_mem>> -> memref<!tpu.dma_semaphore, #tpu.memory_space<semaphore_mem>>
    tpu.enqueue_dma source(%346 : memref<1x128xf32, #tpu.memory_space<any>>) target(%348 : memref<1x128xf32, #tpu.memory_space<vmem>>) target_semaphore(%350 : memref<!tpu.dma_semaphore, #tpu.memory_space<semaphore_mem>>)
    %c8_i32_334 = arith.constant 8 : i32
    %351 = arith.muli %arg0, %c8_i32_334 : i32
    %c4_i32_335 = arith.constant 4 : i32
    %352 = arith.addi %351, %c4_i32_335 : i32
    %353 = arith.index_cast %352 : i32 to index
    %c7_336 = arith.constant 7 : index
    %354 = memref.load %arg1[%353, %c7_336] : memref<16x8xi32, #tpu.memory_space<smem>>
    %c7_i32_337 = arith.constant 7 : i32
    %c7_i32_338 = arith.constant 7 : i32
    %c4_i32_339 = arith.constant 4 : i32
    %c0_i32_340 = arith.constant 0 : i32
    %355 = tpu.memref_slice %arg2[%354, %c0_i32_340] : memref<256x128xf32, #tpu.memory_space<any>> -> memref<1x128xf32, #tpu.memory_space<any>>
    %c4_i32_341 = arith.constant 4 : i32
    %c0_i32_342 = arith.constant 0 : i32
    %356 = tpu.memref_slice %arg4[%c7_i32_337, %c4_i32_341, %c0_i32_342] : memref<8x8x128xf32, #tpu.memory_space<vmem>> -> memref<1x1x128xf32, #tpu.memory_space<vmem>>
    %357 = tpu.memref_squeeze %356 : memref<1x1x128xf32, #tpu.memory_space<vmem>> -> memref<1x128xf32, #tpu.memory_space<vmem>>
    %358 = tpu.memref_slice %arg5[%c7_i32_338, %c4_i32_339] : memref<8x8x!tpu.dma_semaphore, #tpu.memory_space<semaphore_mem>> -> memref<1x1x!tpu.dma_semaphore, #tpu.memory_space<semaphore_mem>>
    %359 = tpu.memref_squeeze %358 : memref<1x1x!tpu.dma_semaphore, #tpu.memory_space<semaphore_mem>> -> memref<!tpu.dma_semaphore, #tpu.memory_space<semaphore_mem>>
    tpu.enqueue_dma source(%355 : memref<1x128xf32, #tpu.memory_space<any>>) target(%357 : memref<1x128xf32, #tpu.memory_space<vmem>>) target_semaphore(%359 : memref<!tpu.dma_semaphore, #tpu.memory_space<semaphore_mem>>)
    %c8_i32_343 = arith.constant 8 : i32
    %360 = arith.muli %arg0, %c8_i32_343 : i32
    %c5_i32_344 = arith.constant 5 : i32
    %361 = arith.addi %360, %c5_i32_344 : i32
    %362 = arith.index_cast %361 : i32 to index
    %c0_345 = arith.constant 0 : index
    %363 = memref.load %arg1[%362, %c0_345] : memref<16x8xi32, #tpu.memory_space<smem>>
    %c0_i32_346 = arith.constant 0 : i32
    %c0_i32_347 = arith.constant 0 : i32
    %c5_i32_348 = arith.constant 5 : i32
    %c0_i32_349 = arith.constant 0 : i32
    %364 = tpu.memref_slice %arg2[%363, %c0_i32_349] : memref<256x128xf32, #tpu.memory_space<any>> -> memref<1x128xf32, #tpu.memory_space<any>>
    %c5_i32_350 = arith.constant 5 : i32
    %c0_i32_351 = arith.constant 0 : i32
    %365 = tpu.memref_slice %arg4[%c0_i32_346, %c5_i32_350, %c0_i32_351] : memref<8x8x128xf32, #tpu.memory_space<vmem>> -> memref<1x1x128xf32, #tpu.memory_space<vmem>>
    %366 = tpu.memref_squeeze %365 : memref<1x1x128xf32, #tpu.memory_space<vmem>> -> memref<1x128xf32, #tpu.memory_space<vmem>>
    %367 = tpu.memref_slice %arg5[%c0_i32_347, %c5_i32_348] : memref<8x8x!tpu.dma_semaphore, #tpu.memory_space<semaphore_mem>> -> memref<1x1x!tpu.dma_semaphore, #tpu.memory_space<semaphore_mem>>
    %368 = tpu.memref_squeeze %367 : memref<1x1x!tpu.dma_semaphore, #tpu.memory_space<semaphore_mem>> -> memref<!tpu.dma_semaphore, #tpu.memory_space<semaphore_mem>>
    tpu.enqueue_dma source(%364 : memref<1x128xf32, #tpu.memory_space<any>>) target(%366 : memref<1x128xf32, #tpu.memory_space<vmem>>) target_semaphore(%368 : memref<!tpu.dma_semaphore, #tpu.memory_space<semaphore_mem>>)
    %c8_i32_352 = arith.constant 8 : i32
    %369 = arith.muli %arg0, %c8_i32_352 : i32
    %c5_i32_353 = arith.constant 5 : i32
    %370 = arith.addi %369, %c5_i32_353 : i32
    %371 = arith.index_cast %370 : i32 to index
    %c1_354 = arith.constant 1 : index
    %372 = memref.load %arg1[%371, %c1_354] : memref<16x8xi32, #tpu.memory_space<smem>>
    %c1_i32_355 = arith.constant 1 : i32
    %c1_i32_356 = arith.constant 1 : i32
    %c5_i32_357 = arith.constant 5 : i32
    %c0_i32_358 = arith.constant 0 : i32
    %373 = tpu.memref_slice %arg2[%372, %c0_i32_358] : memref<256x128xf32, #tpu.memory_space<any>> -> memref<1x128xf32, #tpu.memory_space<any>>
    %c5_i32_359 = arith.constant 5 : i32
    %c0_i32_360 = arith.constant 0 : i32
    %374 = tpu.memref_slice %arg4[%c1_i32_355, %c5_i32_359, %c0_i32_360] : memref<8x8x128xf32, #tpu.memory_space<vmem>> -> memref<1x1x128xf32, #tpu.memory_space<vmem>>
    %375 = tpu.memref_squeeze %374 : memref<1x1x128xf32, #tpu.memory_space<vmem>> -> memref<1x128xf32, #tpu.memory_space<vmem>>
    %376 = tpu.memref_slice %arg5[%c1_i32_356, %c5_i32_357] : memref<8x8x!tpu.dma_semaphore, #tpu.memory_space<semaphore_mem>> -> memref<1x1x!tpu.dma_semaphore, #tpu.memory_space<semaphore_mem>>
    %377 = tpu.memref_squeeze %376 : memref<1x1x!tpu.dma_semaphore, #tpu.memory_space<semaphore_mem>> -> memref<!tpu.dma_semaphore, #tpu.memory_space<semaphore_mem>>
    tpu.enqueue_dma source(%373 : memref<1x128xf32, #tpu.memory_space<any>>) target(%375 : memref<1x128xf32, #tpu.memory_space<vmem>>) target_semaphore(%377 : memref<!tpu.dma_semaphore, #tpu.memory_space<semaphore_mem>>)
    %c8_i32_361 = arith.constant 8 : i32
    %378 = arith.muli %arg0, %c8_i32_361 : i32
    %c5_i32_362 = arith.constant 5 : i32
    %379 = arith.addi %378, %c5_i32_362 : i32
    %380 = arith.index_cast %379 : i32 to index
    %c2_363 = arith.constant 2 : index
    %381 = memref.load %arg1[%380, %c2_363] : memref<16x8xi32, #tpu.memory_space<smem>>
    %c2_i32_364 = arith.constant 2 : i32
    %c2_i32_365 = arith.constant 2 : i32
    %c5_i32_366 = arith.constant 5 : i32
    %c0_i32_367 = arith.constant 0 : i32
    %382 = tpu.memref_slice %arg2[%381, %c0_i32_367] : memref<256x128xf32, #tpu.memory_space<any>> -> memref<1x128xf32, #tpu.memory_space<any>>
    %c5_i32_368 = arith.constant 5 : i32
    %c0_i32_369 = arith.constant 0 : i32
    %383 = tpu.memref_slice %arg4[%c2_i32_364, %c5_i32_368, %c0_i32_369] : memref<8x8x128xf32, #tpu.memory_space<vmem>> -> memref<1x1x128xf32, #tpu.memory_space<vmem>>
    %384 = tpu.memref_squeeze %383 : memref<1x1x128xf32, #tpu.memory_space<vmem>> -> memref<1x128xf32, #tpu.memory_space<vmem>>
    %385 = tpu.memref_slice %arg5[%c2_i32_365, %c5_i32_366] : memref<8x8x!tpu.dma_semaphore, #tpu.memory_space<semaphore_mem>> -> memref<1x1x!tpu.dma_semaphore, #tpu.memory_space<semaphore_mem>>
    %386 = tpu.memref_squeeze %385 : memref<1x1x!tpu.dma_semaphore, #tpu.memory_space<semaphore_mem>> -> memref<!tpu.dma_semaphore, #tpu.memory_space<semaphore_mem>>
    tpu.enqueue_dma source(%382 : memref<1x128xf32, #tpu.memory_space<any>>) target(%384 : memref<1x128xf32, #tpu.memory_space<vmem>>) target_semaphore(%386 : memref<!tpu.dma_semaphore, #tpu.memory_space<semaphore_mem>>)
    %c8_i32_370 = arith.constant 8 : i32
    %387 = arith.muli %arg0, %c8_i32_370 : i32
    %c5_i32_371 = arith.constant 5 : i32
    %388 = arith.addi %387, %c5_i32_371 : i32
    %389 = arith.index_cast %388 : i32 to index
    %c3_372 = arith.constant 3 : index
    %390 = memref.load %arg1[%389, %c3_372] : memref<16x8xi32, #tpu.memory_space<smem>>
    %c3_i32_373 = arith.constant 3 : i32
    %c3_i32_374 = arith.constant 3 : i32
    %c5_i32_375 = arith.constant 5 : i32
    %c0_i32_376 = arith.constant 0 : i32
    %391 = tpu.memref_slice %arg2[%390, %c0_i32_376] : memref<256x128xf32, #tpu.memory_space<any>> -> memref<1x128xf32, #tpu.memory_space<any>>
    %c5_i32_377 = arith.constant 5 : i32
    %c0_i32_378 = arith.constant 0 : i32
    %392 = tpu.memref_slice %arg4[%c3_i32_373, %c5_i32_377, %c0_i32_378] : memref<8x8x128xf32, #tpu.memory_space<vmem>> -> memref<1x1x128xf32, #tpu.memory_space<vmem>>
    %393 = tpu.memref_squeeze %392 : memref<1x1x128xf32, #tpu.memory_space<vmem>> -> memref<1x128xf32, #tpu.memory_space<vmem>>
    %394 = tpu.memref_slice %arg5[%c3_i32_374, %c5_i32_375] : memref<8x8x!tpu.dma_semaphore, #tpu.memory_space<semaphore_mem>> -> memref<1x1x!tpu.dma_semaphore, #tpu.memory_space<semaphore_mem>>
    %395 = tpu.memref_squeeze %394 : memref<1x1x!tpu.dma_semaphore, #tpu.memory_space<semaphore_mem>> -> memref<!tpu.dma_semaphore, #tpu.memory_space<semaphore_mem>>
    tpu.enqueue_dma source(%391 : memref<1x128xf32, #tpu.memory_space<any>>) target(%393 : memref<1x128xf32, #tpu.memory_space<vmem>>) target_semaphore(%395 : memref<!tpu.dma_semaphore, #tpu.memory_space<semaphore_mem>>)
    %c8_i32_379 = arith.constant 8 : i32
    %396 = arith.muli %arg0, %c8_i32_379 : i32
    %c5_i32_380 = arith.constant 5 : i32
    %397 = arith.addi %396, %c5_i32_380 : i32
    %398 = arith.index_cast %397 : i32 to index
    %c4_381 = arith.constant 4 : index
    %399 = memref.load %arg1[%398, %c4_381] : memref<16x8xi32, #tpu.memory_space<smem>>
    %c4_i32_382 = arith.constant 4 : i32
    %c4_i32_383 = arith.constant 4 : i32
    %c5_i32_384 = arith.constant 5 : i32
    %c0_i32_385 = arith.constant 0 : i32
    %400 = tpu.memref_slice %arg2[%399, %c0_i32_385] : memref<256x128xf32, #tpu.memory_space<any>> -> memref<1x128xf32, #tpu.memory_space<any>>
    %c5_i32_386 = arith.constant 5 : i32
    %c0_i32_387 = arith.constant 0 : i32
    %401 = tpu.memref_slice %arg4[%c4_i32_382, %c5_i32_386, %c0_i32_387] : memref<8x8x128xf32, #tpu.memory_space<vmem>> -> memref<1x1x128xf32, #tpu.memory_space<vmem>>
    %402 = tpu.memref_squeeze %401 : memref<1x1x128xf32, #tpu.memory_space<vmem>> -> memref<1x128xf32, #tpu.memory_space<vmem>>
    %403 = tpu.memref_slice %arg5[%c4_i32_383, %c5_i32_384] : memref<8x8x!tpu.dma_semaphore, #tpu.memory_space<semaphore_mem>> -> memref<1x1x!tpu.dma_semaphore, #tpu.memory_space<semaphore_mem>>
    %404 = tpu.memref_squeeze %403 : memref<1x1x!tpu.dma_semaphore, #tpu.memory_space<semaphore_mem>> -> memref<!tpu.dma_semaphore, #tpu.memory_space<semaphore_mem>>
    tpu.enqueue_dma source(%400 : memref<1x128xf32, #tpu.memory_space<any>>) target(%402 : memref<1x128xf32, #tpu.memory_space<vmem>>) target_semaphore(%404 : memref<!tpu.dma_semaphore, #tpu.memory_space<semaphore_mem>>)
    %c8_i32_388 = arith.constant 8 : i32
    %405 = arith.muli %arg0, %c8_i32_388 : i32
    %c5_i32_389 = arith.constant 5 : i32
    %406 = arith.addi %405, %c5_i32_389 : i32
    %407 = arith.index_cast %406 : i32 to index
    %c5_390 = arith.constant 5 : index
    %408 = memref.load %arg1[%407, %c5_390] : memref<16x8xi32, #tpu.memory_space<smem>>
    %c5_i32_391 = arith.constant 5 : i32
    %c5_i32_392 = arith.constant 5 : i32
    %c5_i32_393 = arith.constant 5 : i32
    %c0_i32_394 = arith.constant 0 : i32
    %409 = tpu.memref_slice %arg2[%408, %c0_i32_394] : memref<256x128xf32, #tpu.memory_space<any>> -> memref<1x128xf32, #tpu.memory_space<any>>
    %c5_i32_395 = arith.constant 5 : i32
    %c0_i32_396 = arith.constant 0 : i32
    %410 = tpu.memref_slice %arg4[%c5_i32_391, %c5_i32_395, %c0_i32_396] : memref<8x8x128xf32, #tpu.memory_space<vmem>> -> memref<1x1x128xf32, #tpu.memory_space<vmem>>
    %411 = tpu.memref_squeeze %410 : memref<1x1x128xf32, #tpu.memory_space<vmem>> -> memref<1x128xf32, #tpu.memory_space<vmem>>
    %412 = tpu.memref_slice %arg5[%c5_i32_392, %c5_i32_393] : memref<8x8x!tpu.dma_semaphore, #tpu.memory_space<semaphore_mem>> -> memref<1x1x!tpu.dma_semaphore, #tpu.memory_space<semaphore_mem>>
    %413 = tpu.memref_squeeze %412 : memref<1x1x!tpu.dma_semaphore, #tpu.memory_space<semaphore_mem>> -> memref<!tpu.dma_semaphore, #tpu.memory_space<semaphore_mem>>
    tpu.enqueue_dma source(%409 : memref<1x128xf32, #tpu.memory_space<any>>) target(%411 : memref<1x128xf32, #tpu.memory_space<vmem>>) target_semaphore(%413 : memref<!tpu.dma_semaphore, #tpu.memory_space<semaphore_mem>>)
    %c8_i32_397 = arith.constant 8 : i32
    %414 = arith.muli %arg0, %c8_i32_397 : i32
    %c5_i32_398 = arith.constant 5 : i32
    %415 = arith.addi %414, %c5_i32_398 : i32
    %416 = arith.index_cast %415 : i32 to index
    %c6_399 = arith.constant 6 : index
    %417 = memref.load %arg1[%416, %c6_399] : memref<16x8xi32, #tpu.memory_space<smem>>
    %c6_i32_400 = arith.constant 6 : i32
    %c6_i32_401 = arith.constant 6 : i32
    %c5_i32_402 = arith.constant 5 : i32
    %c0_i32_403 = arith.constant 0 : i32
    %418 = tpu.memref_slice %arg2[%417, %c0_i32_403] : memref<256x128xf32, #tpu.memory_space<any>> -> memref<1x128xf32, #tpu.memory_space<any>>
    %c5_i32_404 = arith.constant 5 : i32
    %c0_i32_405 = arith.constant 0 : i32
    %419 = tpu.memref_slice %arg4[%c6_i32_400, %c5_i32_404, %c0_i32_405] : memref<8x8x128xf32, #tpu.memory_space<vmem>> -> memref<1x1x128xf32, #tpu.memory_space<vmem>>
    %420 = tpu.memref_squeeze %419 : memref<1x1x128xf32, #tpu.memory_space<vmem>> -> memref<1x128xf32, #tpu.memory_space<vmem>>
    %421 = tpu.memref_slice %arg5[%c6_i32_401, %c5_i32_402] : memref<8x8x!tpu.dma_semaphore, #tpu.memory_space<semaphore_mem>> -> memref<1x1x!tpu.dma_semaphore, #tpu.memory_space<semaphore_mem>>
    %422 = tpu.memref_squeeze %421 : memref<1x1x!tpu.dma_semaphore, #tpu.memory_space<semaphore_mem>> -> memref<!tpu.dma_semaphore, #tpu.memory_space<semaphore_mem>>
    tpu.enqueue_dma source(%418 : memref<1x128xf32, #tpu.memory_space<any>>) target(%420 : memref<1x128xf32, #tpu.memory_space<vmem>>) target_semaphore(%422 : memref<!tpu.dma_semaphore, #tpu.memory_space<semaphore_mem>>)
    %c8_i32_406 = arith.constant 8 : i32
    %423 = arith.muli %arg0, %c8_i32_406 : i32
    %c5_i32_407 = arith.constant 5 : i32
    %424 = arith.addi %423, %c5_i32_407 : i32
    %425 = arith.index_cast %424 : i32 to index
    %c7_408 = arith.constant 7 : index
    %426 = memref.load %arg1[%425, %c7_408] : memref<16x8xi32, #tpu.memory_space<smem>>
    %c7_i32_409 = arith.constant 7 : i32
    %c7_i32_410 = arith.constant 7 : i32
    %c5_i32_411 = arith.constant 5 : i32
    %c0_i32_412 = arith.constant 0 : i32
    %427 = tpu.memref_slice %arg2[%426, %c0_i32_412] : memref<256x128xf32, #tpu.memory_space<any>> -> memref<1x128xf32, #tpu.memory_space<any>>
    %c5_i32_413 = arith.constant 5 : i32
    %c0_i32_414 = arith.constant 0 : i32
    %428 = tpu.memref_slice %arg4[%c7_i32_409, %c5_i32_413, %c0_i32_414] : memref<8x8x128xf32, #tpu.memory_space<vmem>> -> memref<1x1x128xf32, #tpu.memory_space<vmem>>
    %429 = tpu.memref_squeeze %428 : memref<1x1x128xf32, #tpu.memory_space<vmem>> -> memref<1x128xf32, #tpu.memory_space<vmem>>
    %430 = tpu.memref_slice %arg5[%c7_i32_410, %c5_i32_411] : memref<8x8x!tpu.dma_semaphore, #tpu.memory_space<semaphore_mem>> -> memref<1x1x!tpu.dma_semaphore, #tpu.memory_space<semaphore_mem>>
    %431 = tpu.memref_squeeze %430 : memref<1x1x!tpu.dma_semaphore, #tpu.memory_space<semaphore_mem>> -> memref<!tpu.dma_semaphore, #tpu.memory_space<semaphore_mem>>
    tpu.enqueue_dma source(%427 : memref<1x128xf32, #tpu.memory_space<any>>) target(%429 : memref<1x128xf32, #tpu.memory_space<vmem>>) target_semaphore(%431 : memref<!tpu.dma_semaphore, #tpu.memory_space<semaphore_mem>>)
    %c8_i32_415 = arith.constant 8 : i32
    %432 = arith.muli %arg0, %c8_i32_415 : i32
    %c6_i32_416 = arith.constant 6 : i32
    %433 = arith.addi %432, %c6_i32_416 : i32
    %434 = arith.index_cast %433 : i32 to index
    %c0_417 = arith.constant 0 : index
    %435 = memref.load %arg1[%434, %c0_417] : memref<16x8xi32, #tpu.memory_space<smem>>
    %c0_i32_418 = arith.constant 0 : i32
    %c0_i32_419 = arith.constant 0 : i32
    %c6_i32_420 = arith.constant 6 : i32
    %c0_i32_421 = arith.constant 0 : i32
    %436 = tpu.memref_slice %arg2[%435, %c0_i32_421] : memref<256x128xf32, #tpu.memory_space<any>> -> memref<1x128xf32, #tpu.memory_space<any>>
    %c6_i32_422 = arith.constant 6 : i32
    %c0_i32_423 = arith.constant 0 : i32
    %437 = tpu.memref_slice %arg4[%c0_i32_418, %c6_i32_422, %c0_i32_423] : memref<8x8x128xf32, #tpu.memory_space<vmem>> -> memref<1x1x128xf32, #tpu.memory_space<vmem>>
    %438 = tpu.memref_squeeze %437 : memref<1x1x128xf32, #tpu.memory_space<vmem>> -> memref<1x128xf32, #tpu.memory_space<vmem>>
    %439 = tpu.memref_slice %arg5[%c0_i32_419, %c6_i32_420] : memref<8x8x!tpu.dma_semaphore, #tpu.memory_space<semaphore_mem>> -> memref<1x1x!tpu.dma_semaphore, #tpu.memory_space<semaphore_mem>>
    %440 = tpu.memref_squeeze %439 : memref<1x1x!tpu.dma_semaphore, #tpu.memory_space<semaphore_mem>> -> memref<!tpu.dma_semaphore, #tpu.memory_space<semaphore_mem>>
    tpu.enqueue_dma source(%436 : memref<1x128xf32, #tpu.memory_space<any>>) target(%438 : memref<1x128xf32, #tpu.memory_space<vmem>>) target_semaphore(%440 : memref<!tpu.dma_semaphore, #tpu.memory_space<semaphore_mem>>)
    %c8_i32_424 = arith.constant 8 : i32
    %441 = arith.muli %arg0, %c8_i32_424 : i32
    %c6_i32_425 = arith.constant 6 : i32
    %442 = arith.addi %441, %c6_i32_425 : i32
    %443 = arith.index_cast %442 : i32 to index
    %c1_426 = arith.constant 1 : index
    %444 = memref.load %arg1[%443, %c1_426] : memref<16x8xi32, #tpu.memory_space<smem>>
    %c1_i32_427 = arith.constant 1 : i32
    %c1_i32_428 = arith.constant 1 : i32
    %c6_i32_429 = arith.constant 6 : i32
    %c0_i32_430 = arith.constant 0 : i32
    %445 = tpu.memref_slice %arg2[%444, %c0_i32_430] : memref<256x128xf32, #tpu.memory_space<any>> -> memref<1x128xf32, #tpu.memory_space<any>>
    %c6_i32_431 = arith.constant 6 : i32
    %c0_i32_432 = arith.constant 0 : i32
    %446 = tpu.memref_slice %arg4[%c1_i32_427, %c6_i32_431, %c0_i32_432] : memref<8x8x128xf32, #tpu.memory_space<vmem>> -> memref<1x1x128xf32, #tpu.memory_space<vmem>>
    %447 = tpu.memref_squeeze %446 : memref<1x1x128xf32, #tpu.memory_space<vmem>> -> memref<1x128xf32, #tpu.memory_space<vmem>>
    %448 = tpu.memref_slice %arg5[%c1_i32_428, %c6_i32_429] : memref<8x8x!tpu.dma_semaphore, #tpu.memory_space<semaphore_mem>> -> memref<1x1x!tpu.dma_semaphore, #tpu.memory_space<semaphore_mem>>
    %449 = tpu.memref_squeeze %448 : memref<1x1x!tpu.dma_semaphore, #tpu.memory_space<semaphore_mem>> -> memref<!tpu.dma_semaphore, #tpu.memory_space<semaphore_mem>>
    tpu.enqueue_dma source(%445 : memref<1x128xf32, #tpu.memory_space<any>>) target(%447 : memref<1x128xf32, #tpu.memory_space<vmem>>) target_semaphore(%449 : memref<!tpu.dma_semaphore, #tpu.memory_space<semaphore_mem>>)
    %c8_i32_433 = arith.constant 8 : i32
    %450 = arith.muli %arg0, %c8_i32_433 : i32
    %c6_i32_434 = arith.constant 6 : i32
    %451 = arith.addi %450, %c6_i32_434 : i32
    %452 = arith.index_cast %451 : i32 to index
    %c2_435 = arith.constant 2 : index
    %453 = memref.load %arg1[%452, %c2_435] : memref<16x8xi32, #tpu.memory_space<smem>>
    %c2_i32_436 = arith.constant 2 : i32
    %c2_i32_437 = arith.constant 2 : i32
    %c6_i32_438 = arith.constant 6 : i32
    %c0_i32_439 = arith.constant 0 : i32
    %454 = tpu.memref_slice %arg2[%453, %c0_i32_439] : memref<256x128xf32, #tpu.memory_space<any>> -> memref<1x128xf32, #tpu.memory_space<any>>
    %c6_i32_440 = arith.constant 6 : i32
    %c0_i32_441 = arith.constant 0 : i32
    %455 = tpu.memref_slice %arg4[%c2_i32_436, %c6_i32_440, %c0_i32_441] : memref<8x8x128xf32, #tpu.memory_space<vmem>> -> memref<1x1x128xf32, #tpu.memory_space<vmem>>
    %456 = tpu.memref_squeeze %455 : memref<1x1x128xf32, #tpu.memory_space<vmem>> -> memref<1x128xf32, #tpu.memory_space<vmem>>
    %457 = tpu.memref_slice %arg5[%c2_i32_437, %c6_i32_438] : memref<8x8x!tpu.dma_semaphore, #tpu.memory_space<semaphore_mem>> -> memref<1x1x!tpu.dma_semaphore, #tpu.memory_space<semaphore_mem>>
    %458 = tpu.memref_squeeze %457 : memref<1x1x!tpu.dma_semaphore, #tpu.memory_space<semaphore_mem>> -> memref<!tpu.dma_semaphore, #tpu.memory_space<semaphore_mem>>
    tpu.enqueue_dma source(%454 : memref<1x128xf32, #tpu.memory_space<any>>) target(%456 : memref<1x128xf32, #tpu.memory_space<vmem>>) target_semaphore(%458 : memref<!tpu.dma_semaphore, #tpu.memory_space<semaphore_mem>>)
    %c8_i32_442 = arith.constant 8 : i32
    %459 = arith.muli %arg0, %c8_i32_442 : i32
    %c6_i32_443 = arith.constant 6 : i32
    %460 = arith.addi %459, %c6_i32_443 : i32
    %461 = arith.index_cast %460 : i32 to index
    %c3_444 = arith.constant 3 : index
    %462 = memref.load %arg1[%461, %c3_444] : memref<16x8xi32, #tpu.memory_space<smem>>
    %c3_i32_445 = arith.constant 3 : i32
    %c3_i32_446 = arith.constant 3 : i32
    %c6_i32_447 = arith.constant 6 : i32
    %c0_i32_448 = arith.constant 0 : i32
    %463 = tpu.memref_slice %arg2[%462, %c0_i32_448] : memref<256x128xf32, #tpu.memory_space<any>> -> memref<1x128xf32, #tpu.memory_space<any>>
    %c6_i32_449 = arith.constant 6 : i32
    %c0_i32_450 = arith.constant 0 : i32
    %464 = tpu.memref_slice %arg4[%c3_i32_445, %c6_i32_449, %c0_i32_450] : memref<8x8x128xf32, #tpu.memory_space<vmem>> -> memref<1x1x128xf32, #tpu.memory_space<vmem>>
    %465 = tpu.memref_squeeze %464 : memref<1x1x128xf32, #tpu.memory_space<vmem>> -> memref<1x128xf32, #tpu.memory_space<vmem>>
    %466 = tpu.memref_slice %arg5[%c3_i32_446, %c6_i32_447] : memref<8x8x!tpu.dma_semaphore, #tpu.memory_space<semaphore_mem>> -> memref<1x1x!tpu.dma_semaphore, #tpu.memory_space<semaphore_mem>>
    %467 = tpu.memref_squeeze %466 : memref<1x1x!tpu.dma_semaphore, #tpu.memory_space<semaphore_mem>> -> memref<!tpu.dma_semaphore, #tpu.memory_space<semaphore_mem>>
    tpu.enqueue_dma source(%463 : memref<1x128xf32, #tpu.memory_space<any>>) target(%465 : memref<1x128xf32, #tpu.memory_space<vmem>>) target_semaphore(%467 : memref<!tpu.dma_semaphore, #tpu.memory_space<semaphore_mem>>)
    %c8_i32_451 = arith.constant 8 : i32
    %468 = arith.muli %arg0, %c8_i32_451 : i32
    %c6_i32_452 = arith.constant 6 : i32
    %469 = arith.addi %468, %c6_i32_452 : i32
    %470 = arith.index_cast %469 : i32 to index
    %c4_453 = arith.constant 4 : index
    %471 = memref.load %arg1[%470, %c4_453] : memref<16x8xi32, #tpu.memory_space<smem>>
    %c4_i32_454 = arith.constant 4 : i32
    %c4_i32_455 = arith.constant 4 : i32
    %c6_i32_456 = arith.constant 6 : i32
    %c0_i32_457 = arith.constant 0 : i32
    %472 = tpu.memref_slice %arg2[%471, %c0_i32_457] : memref<256x128xf32, #tpu.memory_space<any>> -> memref<1x128xf32, #tpu.memory_space<any>>
    %c6_i32_458 = arith.constant 6 : i32
    %c0_i32_459 = arith.constant 0 : i32
    %473 = tpu.memref_slice %arg4[%c4_i32_454, %c6_i32_458, %c0_i32_459] : memref<8x8x128xf32, #tpu.memory_space<vmem>> -> memref<1x1x128xf32, #tpu.memory_space<vmem>>
    %474 = tpu.memref_squeeze %473 : memref<1x1x128xf32, #tpu.memory_space<vmem>> -> memref<1x128xf32, #tpu.memory_space<vmem>>
    %475 = tpu.memref_slice %arg5[%c4_i32_455, %c6_i32_456] : memref<8x8x!tpu.dma_semaphore, #tpu.memory_space<semaphore_mem>> -> memref<1x1x!tpu.dma_semaphore, #tpu.memory_space<semaphore_mem>>
    %476 = tpu.memref_squeeze %475 : memref<1x1x!tpu.dma_semaphore, #tpu.memory_space<semaphore_mem>> -> memref<!tpu.dma_semaphore, #tpu.memory_space<semaphore_mem>>
    tpu.enqueue_dma source(%472 : memref<1x128xf32, #tpu.memory_space<any>>) target(%474 : memref<1x128xf32, #tpu.memory_space<vmem>>) target_semaphore(%476 : memref<!tpu.dma_semaphore, #tpu.memory_space<semaphore_mem>>)
    %c8_i32_460 = arith.constant 8 : i32
    %477 = arith.muli %arg0, %c8_i32_460 : i32
    %c6_i32_461 = arith.constant 6 : i32
    %478 = arith.addi %477, %c6_i32_461 : i32
    %479 = arith.index_cast %478 : i32 to index
    %c5_462 = arith.constant 5 : index
    %480 = memref.load %arg1[%479, %c5_462] : memref<16x8xi32, #tpu.memory_space<smem>>
    %c5_i32_463 = arith.constant 5 : i32
    %c5_i32_464 = arith.constant 5 : i32
    %c6_i32_465 = arith.constant 6 : i32
    %c0_i32_466 = arith.constant 0 : i32
    %481 = tpu.memref_slice %arg2[%480, %c0_i32_466] : memref<256x128xf32, #tpu.memory_space<any>> -> memref<1x128xf32, #tpu.memory_space<any>>
    %c6_i32_467 = arith.constant 6 : i32
    %c0_i32_468 = arith.constant 0 : i32
    %482 = tpu.memref_slice %arg4[%c5_i32_463, %c6_i32_467, %c0_i32_468] : memref<8x8x128xf32, #tpu.memory_space<vmem>> -> memref<1x1x128xf32, #tpu.memory_space<vmem>>
    %483 = tpu.memref_squeeze %482 : memref<1x1x128xf32, #tpu.memory_space<vmem>> -> memref<1x128xf32, #tpu.memory_space<vmem>>
    %484 = tpu.memref_slice %arg5[%c5_i32_464, %c6_i32_465] : memref<8x8x!tpu.dma_semaphore, #tpu.memory_space<semaphore_mem>> -> memref<1x1x!tpu.dma_semaphore, #tpu.memory_space<semaphore_mem>>
    %485 = tpu.memref_squeeze %484 : memref<1x1x!tpu.dma_semaphore, #tpu.memory_space<semaphore_mem>> -> memref<!tpu.dma_semaphore, #tpu.memory_space<semaphore_mem>>
    tpu.enqueue_dma source(%481 : memref<1x128xf32, #tpu.memory_space<any>>) target(%483 : memref<1x128xf32, #tpu.memory_space<vmem>>) target_semaphore(%485 : memref<!tpu.dma_semaphore, #tpu.memory_space<semaphore_mem>>)
    %c8_i32_469 = arith.constant 8 : i32
    %486 = arith.muli %arg0, %c8_i32_469 : i32
    %c6_i32_470 = arith.constant 6 : i32
    %487 = arith.addi %486, %c6_i32_470 : i32
    %488 = arith.index_cast %487 : i32 to index
    %c6_471 = arith.constant 6 : index
    %489 = memref.load %arg1[%488, %c6_471] : memref<16x8xi32, #tpu.memory_space<smem>>
    %c6_i32_472 = arith.constant 6 : i32
    %c6_i32_473 = arith.constant 6 : i32
    %c6_i32_474 = arith.constant 6 : i32
    %c0_i32_475 = arith.constant 0 : i32
    %490 = tpu.memref_slice %arg2[%489, %c0_i32_475] : memref<256x128xf32, #tpu.memory_space<any>> -> memref<1x128xf32, #tpu.memory_space<any>>
    %c6_i32_476 = arith.constant 6 : i32
    %c0_i32_477 = arith.constant 0 : i32
    %491 = tpu.memref_slice %arg4[%c6_i32_472, %c6_i32_476, %c0_i32_477] : memref<8x8x128xf32, #tpu.memory_space<vmem>> -> memref<1x1x128xf32, #tpu.memory_space<vmem>>
    %492 = tpu.memref_squeeze %491 : memref<1x1x128xf32, #tpu.memory_space<vmem>> -> memref<1x128xf32, #tpu.memory_space<vmem>>
    %493 = tpu.memref_slice %arg5[%c6_i32_473, %c6_i32_474] : memref<8x8x!tpu.dma_semaphore, #tpu.memory_space<semaphore_mem>> -> memref<1x1x!tpu.dma_semaphore, #tpu.memory_space<semaphore_mem>>
    %494 = tpu.memref_squeeze %493 : memref<1x1x!tpu.dma_semaphore, #tpu.memory_space<semaphore_mem>> -> memref<!tpu.dma_semaphore, #tpu.memory_space<semaphore_mem>>
    tpu.enqueue_dma source(%490 : memref<1x128xf32, #tpu.memory_space<any>>) target(%492 : memref<1x128xf32, #tpu.memory_space<vmem>>) target_semaphore(%494 : memref<!tpu.dma_semaphore, #tpu.memory_space<semaphore_mem>>)
    %c8_i32_478 = arith.constant 8 : i32
    %495 = arith.muli %arg0, %c8_i32_478 : i32
    %c6_i32_479 = arith.constant 6 : i32
    %496 = arith.addi %495, %c6_i32_479 : i32
    %497 = arith.index_cast %496 : i32 to index
    %c7_480 = arith.constant 7 : index
    %498 = memref.load %arg1[%497, %c7_480] : memref<16x8xi32, #tpu.memory_space<smem>>
    %c7_i32_481 = arith.constant 7 : i32
    %c7_i32_482 = arith.constant 7 : i32
    %c6_i32_483 = arith.constant 6 : i32
    %c0_i32_484 = arith.constant 0 : i32
    %499 = tpu.memref_slice %arg2[%498, %c0_i32_484] : memref<256x128xf32, #tpu.memory_space<any>> -> memref<1x128xf32, #tpu.memory_space<any>>
    %c6_i32_485 = arith.constant 6 : i32
    %c0_i32_486 = arith.constant 0 : i32
    %500 = tpu.memref_slice %arg4[%c7_i32_481, %c6_i32_485, %c0_i32_486] : memref<8x8x128xf32, #tpu.memory_space<vmem>> -> memref<1x1x128xf32, #tpu.memory_space<vmem>>
    %501 = tpu.memref_squeeze %500 : memref<1x1x128xf32, #tpu.memory_space<vmem>> -> memref<1x128xf32, #tpu.memory_space<vmem>>
    %502 = tpu.memref_slice %arg5[%c7_i32_482, %c6_i32_483] : memref<8x8x!tpu.dma_semaphore, #tpu.memory_space<semaphore_mem>> -> memref<1x1x!tpu.dma_semaphore, #tpu.memory_space<semaphore_mem>>
    %503 = tpu.memref_squeeze %502 : memref<1x1x!tpu.dma_semaphore, #tpu.memory_space<semaphore_mem>> -> memref<!tpu.dma_semaphore, #tpu.memory_space<semaphore_mem>>
    tpu.enqueue_dma source(%499 : memref<1x128xf32, #tpu.memory_space<any>>) target(%501 : memref<1x128xf32, #tpu.memory_space<vmem>>) target_semaphore(%503 : memref<!tpu.dma_semaphore, #tpu.memory_space<semaphore_mem>>)
    %c8_i32_487 = arith.constant 8 : i32
    %504 = arith.muli %arg0, %c8_i32_487 : i32
    %c7_i32_488 = arith.constant 7 : i32
    %505 = arith.addi %504, %c7_i32_488 : i32
    %506 = arith.index_cast %505 : i32 to index
    %c0_489 = arith.constant 0 : index
    %507 = memref.load %arg1[%506, %c0_489] : memref<16x8xi32, #tpu.memory_space<smem>>
    %c0_i32_490 = arith.constant 0 : i32
    %c0_i32_491 = arith.constant 0 : i32
    %c7_i32_492 = arith.constant 7 : i32
    %c0_i32_493 = arith.constant 0 : i32
    %508 = tpu.memref_slice %arg2[%507, %c0_i32_493] : memref<256x128xf32, #tpu.memory_space<any>> -> memref<1x128xf32, #tpu.memory_space<any>>
    %c7_i32_494 = arith.constant 7 : i32
    %c0_i32_495 = arith.constant 0 : i32
    %509 = tpu.memref_slice %arg4[%c0_i32_490, %c7_i32_494, %c0_i32_495] : memref<8x8x128xf32, #tpu.memory_space<vmem>> -> memref<1x1x128xf32, #tpu.memory_space<vmem>>
    %510 = tpu.memref_squeeze %509 : memref<1x1x128xf32, #tpu.memory_space<vmem>> -> memref<1x128xf32, #tpu.memory_space<vmem>>
    %511 = tpu.memref_slice %arg5[%c0_i32_491, %c7_i32_492] : memref<8x8x!tpu.dma_semaphore, #tpu.memory_space<semaphore_mem>> -> memref<1x1x!tpu.dma_semaphore, #tpu.memory_space<semaphore_mem>>
    %512 = tpu.memref_squeeze %511 : memref<1x1x!tpu.dma_semaphore, #tpu.memory_space<semaphore_mem>> -> memref<!tpu.dma_semaphore, #tpu.memory_space<semaphore_mem>>
    tpu.enqueue_dma source(%508 : memref<1x128xf32, #tpu.memory_space<any>>) target(%510 : memref<1x128xf32, #tpu.memory_space<vmem>>) target_semaphore(%512 : memref<!tpu.dma_semaphore, #tpu.memory_space<semaphore_mem>>)
    %c8_i32_496 = arith.constant 8 : i32
    %513 = arith.muli %arg0, %c8_i32_496 : i32
    %c7_i32_497 = arith.constant 7 : i32
    %514 = arith.addi %513, %c7_i32_497 : i32
    %515 = arith.index_cast %514 : i32 to index
    %c1_498 = arith.constant 1 : index
    %516 = memref.load %arg1[%515, %c1_498] : memref<16x8xi32, #tpu.memory_space<smem>>
    %c1_i32_499 = arith.constant 1 : i32
    %c1_i32_500 = arith.constant 1 : i32
    %c7_i32_501 = arith.constant 7 : i32
    %c0_i32_502 = arith.constant 0 : i32
    %517 = tpu.memref_slice %arg2[%516, %c0_i32_502] : memref<256x128xf32, #tpu.memory_space<any>> -> memref<1x128xf32, #tpu.memory_space<any>>
    %c7_i32_503 = arith.constant 7 : i32
    %c0_i32_504 = arith.constant 0 : i32
    %518 = tpu.memref_slice %arg4[%c1_i32_499, %c7_i32_503, %c0_i32_504] : memref<8x8x128xf32, #tpu.memory_space<vmem>> -> memref<1x1x128xf32, #tpu.memory_space<vmem>>
    %519 = tpu.memref_squeeze %518 : memref<1x1x128xf32, #tpu.memory_space<vmem>> -> memref<1x128xf32, #tpu.memory_space<vmem>>
    %520 = tpu.memref_slice %arg5[%c1_i32_500, %c7_i32_501] : memref<8x8x!tpu.dma_semaphore, #tpu.memory_space<semaphore_mem>> -> memref<1x1x!tpu.dma_semaphore, #tpu.memory_space<semaphore_mem>>
    %521 = tpu.memref_squeeze %520 : memref<1x1x!tpu.dma_semaphore, #tpu.memory_space<semaphore_mem>> -> memref<!tpu.dma_semaphore, #tpu.memory_space<semaphore_mem>>
    tpu.enqueue_dma source(%517 : memref<1x128xf32, #tpu.memory_space<any>>) target(%519 : memref<1x128xf32, #tpu.memory_space<vmem>>) target_semaphore(%521 : memref<!tpu.dma_semaphore, #tpu.memory_space<semaphore_mem>>)
    %c8_i32_505 = arith.constant 8 : i32
    %522 = arith.muli %arg0, %c8_i32_505 : i32
    %c7_i32_506 = arith.constant 7 : i32
    %523 = arith.addi %522, %c7_i32_506 : i32
    %524 = arith.index_cast %523 : i32 to index
    %c2_507 = arith.constant 2 : index
    %525 = memref.load %arg1[%524, %c2_507] : memref<16x8xi32, #tpu.memory_space<smem>>
    %c2_i32_508 = arith.constant 2 : i32
    %c2_i32_509 = arith.constant 2 : i32
    %c7_i32_510 = arith.constant 7 : i32
    %c0_i32_511 = arith.constant 0 : i32
    %526 = tpu.memref_slice %arg2[%525, %c0_i32_511] : memref<256x128xf32, #tpu.memory_space<any>> -> memref<1x128xf32, #tpu.memory_space<any>>
    %c7_i32_512 = arith.constant 7 : i32
    %c0_i32_513 = arith.constant 0 : i32
    %527 = tpu.memref_slice %arg4[%c2_i32_508, %c7_i32_512, %c0_i32_513] : memref<8x8x128xf32, #tpu.memory_space<vmem>> -> memref<1x1x128xf32, #tpu.memory_space<vmem>>
    %528 = tpu.memref_squeeze %527 : memref<1x1x128xf32, #tpu.memory_space<vmem>> -> memref<1x128xf32, #tpu.memory_space<vmem>>
    %529 = tpu.memref_slice %arg5[%c2_i32_509, %c7_i32_510] : memref<8x8x!tpu.dma_semaphore, #tpu.memory_space<semaphore_mem>> -> memref<1x1x!tpu.dma_semaphore, #tpu.memory_space<semaphore_mem>>
    %530 = tpu.memref_squeeze %529 : memref<1x1x!tpu.dma_semaphore, #tpu.memory_space<semaphore_mem>> -> memref<!tpu.dma_semaphore, #tpu.memory_space<semaphore_mem>>
    tpu.enqueue_dma source(%526 : memref<1x128xf32, #tpu.memory_space<any>>) target(%528 : memref<1x128xf32, #tpu.memory_space<vmem>>) target_semaphore(%530 : memref<!tpu.dma_semaphore, #tpu.memory_space<semaphore_mem>>)
    %c8_i32_514 = arith.constant 8 : i32
    %531 = arith.muli %arg0, %c8_i32_514 : i32
    %c7_i32_515 = arith.constant 7 : i32
    %532 = arith.addi %531, %c7_i32_515 : i32
    %533 = arith.index_cast %532 : i32 to index
    %c3_516 = arith.constant 3 : index
    %534 = memref.load %arg1[%533, %c3_516] : memref<16x8xi32, #tpu.memory_space<smem>>
    %c3_i32_517 = arith.constant 3 : i32
    %c3_i32_518 = arith.constant 3 : i32
    %c7_i32_519 = arith.constant 7 : i32
    %c0_i32_520 = arith.constant 0 : i32
    %535 = tpu.memref_slice %arg2[%534, %c0_i32_520] : memref<256x128xf32, #tpu.memory_space<any>> -> memref<1x128xf32, #tpu.memory_space<any>>
    %c7_i32_521 = arith.constant 7 : i32
    %c0_i32_522 = arith.constant 0 : i32
    %536 = tpu.memref_slice %arg4[%c3_i32_517, %c7_i32_521, %c0_i32_522] : memref<8x8x128xf32, #tpu.memory_space<vmem>> -> memref<1x1x128xf32, #tpu.memory_space<vmem>>
    %537 = tpu.memref_squeeze %536 : memref<1x1x128xf32, #tpu.memory_space<vmem>> -> memref<1x128xf32, #tpu.memory_space<vmem>>
    %538 = tpu.memref_slice %arg5[%c3_i32_518, %c7_i32_519] : memref<8x8x!tpu.dma_semaphore, #tpu.memory_space<semaphore_mem>> -> memref<1x1x!tpu.dma_semaphore, #tpu.memory_space<semaphore_mem>>
    %539 = tpu.memref_squeeze %538 : memref<1x1x!tpu.dma_semaphore, #tpu.memory_space<semaphore_mem>> -> memref<!tpu.dma_semaphore, #tpu.memory_space<semaphore_mem>>
    tpu.enqueue_dma source(%535 : memref<1x128xf32, #tpu.memory_space<any>>) target(%537 : memref<1x128xf32, #tpu.memory_space<vmem>>) target_semaphore(%539 : memref<!tpu.dma_semaphore, #tpu.memory_space<semaphore_mem>>)
    %c8_i32_523 = arith.constant 8 : i32
    %540 = arith.muli %arg0, %c8_i32_523 : i32
    %c7_i32_524 = arith.constant 7 : i32
    %541 = arith.addi %540, %c7_i32_524 : i32
    %542 = arith.index_cast %541 : i32 to index
    %c4_525 = arith.constant 4 : index
    %543 = memref.load %arg1[%542, %c4_525] : memref<16x8xi32, #tpu.memory_space<smem>>
    %c4_i32_526 = arith.constant 4 : i32
    %c4_i32_527 = arith.constant 4 : i32
    %c7_i32_528 = arith.constant 7 : i32
    %c0_i32_529 = arith.constant 0 : i32
    %544 = tpu.memref_slice %arg2[%543, %c0_i32_529] : memref<256x128xf32, #tpu.memory_space<any>> -> memref<1x128xf32, #tpu.memory_space<any>>
    %c7_i32_530 = arith.constant 7 : i32
    %c0_i32_531 = arith.constant 0 : i32
    %545 = tpu.memref_slice %arg4[%c4_i32_526, %c7_i32_530, %c0_i32_531] : memref<8x8x128xf32, #tpu.memory_space<vmem>> -> memref<1x1x128xf32, #tpu.memory_space<vmem>>
    %546 = tpu.memref_squeeze %545 : memref<1x1x128xf32, #tpu.memory_space<vmem>> -> memref<1x128xf32, #tpu.memory_space<vmem>>
    %547 = tpu.memref_slice %arg5[%c4_i32_527, %c7_i32_528] : memref<8x8x!tpu.dma_semaphore, #tpu.memory_space<semaphore_mem>> -> memref<1x1x!tpu.dma_semaphore, #tpu.memory_space<semaphore_mem>>
    %548 = tpu.memref_squeeze %547 : memref<1x1x!tpu.dma_semaphore, #tpu.memory_space<semaphore_mem>> -> memref<!tpu.dma_semaphore, #tpu.memory_space<semaphore_mem>>
    tpu.enqueue_dma source(%544 : memref<1x128xf32, #tpu.memory_space<any>>) target(%546 : memref<1x128xf32, #tpu.memory_space<vmem>>) target_semaphore(%548 : memref<!tpu.dma_semaphore, #tpu.memory_space<semaphore_mem>>)
    %c8_i32_532 = arith.constant 8 : i32
    %549 = arith.muli %arg0, %c8_i32_532 : i32
    %c7_i32_533 = arith.constant 7 : i32
    %550 = arith.addi %549, %c7_i32_533 : i32
    %551 = arith.index_cast %550 : i32 to index
    %c5_534 = arith.constant 5 : index
    %552 = memref.load %arg1[%551, %c5_534] : memref<16x8xi32, #tpu.memory_space<smem>>
    %c5_i32_535 = arith.constant 5 : i32
    %c5_i32_536 = arith.constant 5 : i32
    %c7_i32_537 = arith.constant 7 : i32
    %c0_i32_538 = arith.constant 0 : i32
    %553 = tpu.memref_slice %arg2[%552, %c0_i32_538] : memref<256x128xf32, #tpu.memory_space<any>> -> memref<1x128xf32, #tpu.memory_space<any>>
    %c7_i32_539 = arith.constant 7 : i32
    %c0_i32_540 = arith.constant 0 : i32
    %554 = tpu.memref_slice %arg4[%c5_i32_535, %c7_i32_539, %c0_i32_540] : memref<8x8x128xf32, #tpu.memory_space<vmem>> -> memref<1x1x128xf32, #tpu.memory_space<vmem>>
    %555 = tpu.memref_squeeze %554 : memref<1x1x128xf32, #tpu.memory_space<vmem>> -> memref<1x128xf32, #tpu.memory_space<vmem>>
    %556 = tpu.memref_slice %arg5[%c5_i32_536, %c7_i32_537] : memref<8x8x!tpu.dma_semaphore, #tpu.memory_space<semaphore_mem>> -> memref<1x1x!tpu.dma_semaphore, #tpu.memory_space<semaphore_mem>>
    %557 = tpu.memref_squeeze %556 : memref<1x1x!tpu.dma_semaphore, #tpu.memory_space<semaphore_mem>> -> memref<!tpu.dma_semaphore, #tpu.memory_space<semaphore_mem>>
    tpu.enqueue_dma source(%553 : memref<1x128xf32, #tpu.memory_space<any>>) target(%555 : memref<1x128xf32, #tpu.memory_space<vmem>>) target_semaphore(%557 : memref<!tpu.dma_semaphore, #tpu.memory_space<semaphore_mem>>)
    %c8_i32_541 = arith.constant 8 : i32
    %558 = arith.muli %arg0, %c8_i32_541 : i32
    %c7_i32_542 = arith.constant 7 : i32
    %559 = arith.addi %558, %c7_i32_542 : i32
    %560 = arith.index_cast %559 : i32 to index
    %c6_543 = arith.constant 6 : index
    %561 = memref.load %arg1[%560, %c6_543] : memref<16x8xi32, #tpu.memory_space<smem>>
    %c6_i32_544 = arith.constant 6 : i32
    %c6_i32_545 = arith.constant 6 : i32
    %c7_i32_546 = arith.constant 7 : i32
    %c0_i32_547 = arith.constant 0 : i32
    %562 = tpu.memref_slice %arg2[%561, %c0_i32_547] : memref<256x128xf32, #tpu.memory_space<any>> -> memref<1x128xf32, #tpu.memory_space<any>>
    %c7_i32_548 = arith.constant 7 : i32
    %c0_i32_549 = arith.constant 0 : i32
    %563 = tpu.memref_slice %arg4[%c6_i32_544, %c7_i32_548, %c0_i32_549] : memref<8x8x128xf32, #tpu.memory_space<vmem>> -> memref<1x1x128xf32, #tpu.memory_space<vmem>>
    %564 = tpu.memref_squeeze %563 : memref<1x1x128xf32, #tpu.memory_space<vmem>> -> memref<1x128xf32, #tpu.memory_space<vmem>>
    %565 = tpu.memref_slice %arg5[%c6_i32_545, %c7_i32_546] : memref<8x8x!tpu.dma_semaphore, #tpu.memory_space<semaphore_mem>> -> memref<1x1x!tpu.dma_semaphore, #tpu.memory_space<semaphore_mem>>
    %566 = tpu.memref_squeeze %565 : memref<1x1x!tpu.dma_semaphore, #tpu.memory_space<semaphore_mem>> -> memref<!tpu.dma_semaphore, #tpu.memory_space<semaphore_mem>>
    tpu.enqueue_dma source(%562 : memref<1x128xf32, #tpu.memory_space<any>>) target(%564 : memref<1x128xf32, #tpu.memory_space<vmem>>) target_semaphore(%566 : memref<!tpu.dma_semaphore, #tpu.memory_space<semaphore_mem>>)
    %c8_i32_550 = arith.constant 8 : i32
    %567 = arith.muli %arg0, %c8_i32_550 : i32
    %c7_i32_551 = arith.constant 7 : i32
    %568 = arith.addi %567, %c7_i32_551 : i32
    %569 = arith.index_cast %568 : i32 to index
    %c7_552 = arith.constant 7 : index
    %570 = memref.load %arg1[%569, %c7_552] : memref<16x8xi32, #tpu.memory_space<smem>>
    %c7_i32_553 = arith.constant 7 : i32
    %c7_i32_554 = arith.constant 7 : i32
    %c7_i32_555 = arith.constant 7 : i32
    %c0_i32_556 = arith.constant 0 : i32
    %571 = tpu.memref_slice %arg2[%570, %c0_i32_556] : memref<256x128xf32, #tpu.memory_space<any>> -> memref<1x128xf32, #tpu.memory_space<any>>
    %c7_i32_557 = arith.constant 7 : i32
    %c0_i32_558 = arith.constant 0 : i32
    %572 = tpu.memref_slice %arg4[%c7_i32_553, %c7_i32_557, %c0_i32_558] : memref<8x8x128xf32, #tpu.memory_space<vmem>> -> memref<1x1x128xf32, #tpu.memory_space<vmem>>
    %573 = tpu.memref_squeeze %572 : memref<1x1x128xf32, #tpu.memory_space<vmem>> -> memref<1x128xf32, #tpu.memory_space<vmem>>
    %574 = tpu.memref_slice %arg5[%c7_i32_554, %c7_i32_555] : memref<8x8x!tpu.dma_semaphore, #tpu.memory_space<semaphore_mem>> -> memref<1x1x!tpu.dma_semaphore, #tpu.memory_space<semaphore_mem>>
    %575 = tpu.memref_squeeze %574 : memref<1x1x!tpu.dma_semaphore, #tpu.memory_space<semaphore_mem>> -> memref<!tpu.dma_semaphore, #tpu.memory_space<semaphore_mem>>
    tpu.enqueue_dma source(%571 : memref<1x128xf32, #tpu.memory_space<any>>) target(%573 : memref<1x128xf32, #tpu.memory_space<vmem>>) target_semaphore(%575 : memref<!tpu.dma_semaphore, #tpu.memory_space<semaphore_mem>>)
    %c0_i32_559 = arith.constant 0 : i32
    %c0_i32_560 = arith.constant 0 : i32
    %c0_i32_561 = arith.constant 0 : i32
    %c0_i32_562 = arith.constant 0 : i32
    %576 = tpu.memref_slice %arg2[%3, %c0_i32_562] : memref<256x128xf32, #tpu.memory_space<any>> -> memref<1x128xf32, #tpu.memory_space<any>>
    %c0_i32_563 = arith.constant 0 : i32
    %c0_i32_564 = arith.constant 0 : i32
    %577 = tpu.memref_slice %arg4[%c0_i32_559, %c0_i32_563, %c0_i32_564] : memref<8x8x128xf32, #tpu.memory_space<vmem>> -> memref<1x1x128xf32, #tpu.memory_space<vmem>>
    %578 = tpu.memref_squeeze %577 : memref<1x1x128xf32, #tpu.memory_space<vmem>> -> memref<1x128xf32, #tpu.memory_space<vmem>>
    %579 = tpu.memref_slice %arg5[%c0_i32_560, %c0_i32_561] : memref<8x8x!tpu.dma_semaphore, #tpu.memory_space<semaphore_mem>> -> memref<1x1x!tpu.dma_semaphore, #tpu.memory_space<semaphore_mem>>
    %580 = tpu.memref_squeeze %579 : memref<1x1x!tpu.dma_semaphore, #tpu.memory_space<semaphore_mem>> -> memref<!tpu.dma_semaphore, #tpu.memory_space<semaphore_mem>>
    tpu.wait_dma2 semaphore(%580 : memref<!tpu.dma_semaphore, #tpu.memory_space<semaphore_mem>>) src(%576 : memref<1x128xf32, #tpu.memory_space<any>>) dst(%578 : memref<1x128xf32, #tpu.memory_space<vmem>>)
    %c1_i32_565 = arith.constant 1 : i32
    %c1_i32_566 = arith.constant 1 : i32
    %c0_i32_567 = arith.constant 0 : i32
    %c0_i32_568 = arith.constant 0 : i32
    %581 = tpu.memref_slice %arg2[%12, %c0_i32_568] : memref<256x128xf32, #tpu.memory_space<any>> -> memref<1x128xf32, #tpu.memory_space<any>>
    %c0_i32_569 = arith.constant 0 : i32
    %c0_i32_570 = arith.constant 0 : i32
    %582 = tpu.memref_slice %arg4[%c1_i32_565, %c0_i32_569, %c0_i32_570] : memref<8x8x128xf32, #tpu.memory_space<vmem>> -> memref<1x1x128xf32, #tpu.memory_space<vmem>>
    %583 = tpu.memref_squeeze %582 : memref<1x1x128xf32, #tpu.memory_space<vmem>> -> memref<1x128xf32, #tpu.memory_space<vmem>>
    %584 = tpu.memref_slice %arg5[%c1_i32_566, %c0_i32_567] : memref<8x8x!tpu.dma_semaphore, #tpu.memory_space<semaphore_mem>> -> memref<1x1x!tpu.dma_semaphore, #tpu.memory_space<semaphore_mem>>
    %585 = tpu.memref_squeeze %584 : memref<1x1x!tpu.dma_semaphore, #tpu.memory_space<semaphore_mem>> -> memref<!tpu.dma_semaphore, #tpu.memory_space<semaphore_mem>>
    tpu.wait_dma2 semaphore(%585 : memref<!tpu.dma_semaphore, #tpu.memory_space<semaphore_mem>>) src(%581 : memref<1x128xf32, #tpu.memory_space<any>>) dst(%583 : memref<1x128xf32, #tpu.memory_space<vmem>>)
    %c2_i32_571 = arith.constant 2 : i32
    %c2_i32_572 = arith.constant 2 : i32
    %c0_i32_573 = arith.constant 0 : i32
    %c0_i32_574 = arith.constant 0 : i32
    %586 = tpu.memref_slice %arg2[%21, %c0_i32_574] : memref<256x128xf32, #tpu.memory_space<any>> -> memref<1x128xf32, #tpu.memory_space<any>>
    %c0_i32_575 = arith.constant 0 : i32
    %c0_i32_576 = arith.constant 0 : i32
    %587 = tpu.memref_slice %arg4[%c2_i32_571, %c0_i32_575, %c0_i32_576] : memref<8x8x128xf32, #tpu.memory_space<vmem>> -> memref<1x1x128xf32, #tpu.memory_space<vmem>>
    %588 = tpu.memref_squeeze %587 : memref<1x1x128xf32, #tpu.memory_space<vmem>> -> memref<1x128xf32, #tpu.memory_space<vmem>>
    %589 = tpu.memref_slice %arg5[%c2_i32_572, %c0_i32_573] : memref<8x8x!tpu.dma_semaphore, #tpu.memory_space<semaphore_mem>> -> memref<1x1x!tpu.dma_semaphore, #tpu.memory_space<semaphore_mem>>
    %590 = tpu.memref_squeeze %589 : memref<1x1x!tpu.dma_semaphore, #tpu.memory_space<semaphore_mem>> -> memref<!tpu.dma_semaphore, #tpu.memory_space<semaphore_mem>>
    tpu.wait_dma2 semaphore(%590 : memref<!tpu.dma_semaphore, #tpu.memory_space<semaphore_mem>>) src(%586 : memref<1x128xf32, #tpu.memory_space<any>>) dst(%588 : memref<1x128xf32, #tpu.memory_space<vmem>>)
    %c3_i32_577 = arith.constant 3 : i32
    %c3_i32_578 = arith.constant 3 : i32
    %c0_i32_579 = arith.constant 0 : i32
    %c0_i32_580 = arith.constant 0 : i32
    %591 = tpu.memref_slice %arg2[%30, %c0_i32_580] : memref<256x128xf32, #tpu.memory_space<any>> -> memref<1x128xf32, #tpu.memory_space<any>>
    %c0_i32_581 = arith.constant 0 : i32
    %c0_i32_582 = arith.constant 0 : i32
    %592 = tpu.memref_slice %arg4[%c3_i32_577, %c0_i32_581, %c0_i32_582] : memref<8x8x128xf32, #tpu.memory_space<vmem>> -> memref<1x1x128xf32, #tpu.memory_space<vmem>>
    %593 = tpu.memref_squeeze %592 : memref<1x1x128xf32, #tpu.memory_space<vmem>> -> memref<1x128xf32, #tpu.memory_space<vmem>>
    %594 = tpu.memref_slice %arg5[%c3_i32_578, %c0_i32_579] : memref<8x8x!tpu.dma_semaphore, #tpu.memory_space<semaphore_mem>> -> memref<1x1x!tpu.dma_semaphore, #tpu.memory_space<semaphore_mem>>
    %595 = tpu.memref_squeeze %594 : memref<1x1x!tpu.dma_semaphore, #tpu.memory_space<semaphore_mem>> -> memref<!tpu.dma_semaphore, #tpu.memory_space<semaphore_mem>>
    tpu.wait_dma2 semaphore(%595 : memref<!tpu.dma_semaphore, #tpu.memory_space<semaphore_mem>>) src(%591 : memref<1x128xf32, #tpu.memory_space<any>>) dst(%593 : memref<1x128xf32, #tpu.memory_space<vmem>>)
    %c4_i32_583 = arith.constant 4 : i32
    %c4_i32_584 = arith.constant 4 : i32
    %c0_i32_585 = arith.constant 0 : i32
    %c0_i32_586 = arith.constant 0 : i32
    %596 = tpu.memref_slice %arg2[%39, %c0_i32_586] : memref<256x128xf32, #tpu.memory_space<any>> -> memref<1x128xf32, #tpu.memory_space<any>>
    %c0_i32_587 = arith.constant 0 : i32
    %c0_i32_588 = arith.constant 0 : i32
    %597 = tpu.memref_slice %arg4[%c4_i32_583, %c0_i32_587, %c0_i32_588] : memref<8x8x128xf32, #tpu.memory_space<vmem>> -> memref<1x1x128xf32, #tpu.memory_space<vmem>>
    %598 = tpu.memref_squeeze %597 : memref<1x1x128xf32, #tpu.memory_space<vmem>> -> memref<1x128xf32, #tpu.memory_space<vmem>>
    %599 = tpu.memref_slice %arg5[%c4_i32_584, %c0_i32_585] : memref<8x8x!tpu.dma_semaphore, #tpu.memory_space<semaphore_mem>> -> memref<1x1x!tpu.dma_semaphore, #tpu.memory_space<semaphore_mem>>
    %600 = tpu.memref_squeeze %599 : memref<1x1x!tpu.dma_semaphore, #tpu.memory_space<semaphore_mem>> -> memref<!tpu.dma_semaphore, #tpu.memory_space<semaphore_mem>>
    tpu.wait_dma2 semaphore(%600 : memref<!tpu.dma_semaphore, #tpu.memory_space<semaphore_mem>>) src(%596 : memref<1x128xf32, #tpu.memory_space<any>>) dst(%598 : memref<1x128xf32, #tpu.memory_space<vmem>>)
    %c5_i32_589 = arith.constant 5 : i32
    %c5_i32_590 = arith.constant 5 : i32
    %c0_i32_591 = arith.constant 0 : i32
    %c0_i32_592 = arith.constant 0 : i32
    %601 = tpu.memref_slice %arg2[%48, %c0_i32_592] : memref<256x128xf32, #tpu.memory_space<any>> -> memref<1x128xf32, #tpu.memory_space<any>>
    %c0_i32_593 = arith.constant 0 : i32
    %c0_i32_594 = arith.constant 0 : i32
    %602 = tpu.memref_slice %arg4[%c5_i32_589, %c0_i32_593, %c0_i32_594] : memref<8x8x128xf32, #tpu.memory_space<vmem>> -> memref<1x1x128xf32, #tpu.memory_space<vmem>>
    %603 = tpu.memref_squeeze %602 : memref<1x1x128xf32, #tpu.memory_space<vmem>> -> memref<1x128xf32, #tpu.memory_space<vmem>>
    %604 = tpu.memref_slice %arg5[%c5_i32_590, %c0_i32_591] : memref<8x8x!tpu.dma_semaphore, #tpu.memory_space<semaphore_mem>> -> memref<1x1x!tpu.dma_semaphore, #tpu.memory_space<semaphore_mem>>
    %605 = tpu.memref_squeeze %604 : memref<1x1x!tpu.dma_semaphore, #tpu.memory_space<semaphore_mem>> -> memref<!tpu.dma_semaphore, #tpu.memory_space<semaphore_mem>>
    tpu.wait_dma2 semaphore(%605 : memref<!tpu.dma_semaphore, #tpu.memory_space<semaphore_mem>>) src(%601 : memref<1x128xf32, #tpu.memory_space<any>>) dst(%603 : memref<1x128xf32, #tpu.memory_space<vmem>>)
    %c6_i32_595 = arith.constant 6 : i32
    %c6_i32_596 = arith.constant 6 : i32
    %c0_i32_597 = arith.constant 0 : i32
    %c0_i32_598 = arith.constant 0 : i32
    %606 = tpu.memref_slice %arg2[%57, %c0_i32_598] : memref<256x128xf32, #tpu.memory_space<any>> -> memref<1x128xf32, #tpu.memory_space<any>>
    %c0_i32_599 = arith.constant 0 : i32
    %c0_i32_600 = arith.constant 0 : i32
    %607 = tpu.memref_slice %arg4[%c6_i32_595, %c0_i32_599, %c0_i32_600] : memref<8x8x128xf32, #tpu.memory_space<vmem>> -> memref<1x1x128xf32, #tpu.memory_space<vmem>>
    %608 = tpu.memref_squeeze %607 : memref<1x1x128xf32, #tpu.memory_space<vmem>> -> memref<1x128xf32, #tpu.memory_space<vmem>>
    %609 = tpu.memref_slice %arg5[%c6_i32_596, %c0_i32_597] : memref<8x8x!tpu.dma_semaphore, #tpu.memory_space<semaphore_mem>> -> memref<1x1x!tpu.dma_semaphore, #tpu.memory_space<semaphore_mem>>
    %610 = tpu.memref_squeeze %609 : memref<1x1x!tpu.dma_semaphore, #tpu.memory_space<semaphore_mem>> -> memref<!tpu.dma_semaphore, #tpu.memory_space<semaphore_mem>>
    tpu.wait_dma2 semaphore(%610 : memref<!tpu.dma_semaphore, #tpu.memory_space<semaphore_mem>>) src(%606 : memref<1x128xf32, #tpu.memory_space<any>>) dst(%608 : memref<1x128xf32, #tpu.memory_space<vmem>>)
    %c7_i32_601 = arith.constant 7 : i32
    %c7_i32_602 = arith.constant 7 : i32
    %c0_i32_603 = arith.constant 0 : i32
    %c0_i32_604 = arith.constant 0 : i32
    %611 = tpu.memref_slice %arg2[%66, %c0_i32_604] : memref<256x128xf32, #tpu.memory_space<any>> -> memref<1x128xf32, #tpu.memory_space<any>>
    %c0_i32_605 = arith.constant 0 : i32
    %c0_i32_606 = arith.constant 0 : i32
    %612 = tpu.memref_slice %arg4[%c7_i32_601, %c0_i32_605, %c0_i32_606] : memref<8x8x128xf32, #tpu.memory_space<vmem>> -> memref<1x1x128xf32, #tpu.memory_space<vmem>>
    %613 = tpu.memref_squeeze %612 : memref<1x1x128xf32, #tpu.memory_space<vmem>> -> memref<1x128xf32, #tpu.memory_space<vmem>>
    %614 = tpu.memref_slice %arg5[%c7_i32_602, %c0_i32_603] : memref<8x8x!tpu.dma_semaphore, #tpu.memory_space<semaphore_mem>> -> memref<1x1x!tpu.dma_semaphore, #tpu.memory_space<semaphore_mem>>
    %615 = tpu.memref_squeeze %614 : memref<1x1x!tpu.dma_semaphore, #tpu.memory_space<semaphore_mem>> -> memref<!tpu.dma_semaphore, #tpu.memory_space<semaphore_mem>>
    tpu.wait_dma2 semaphore(%615 : memref<!tpu.dma_semaphore, #tpu.memory_space<semaphore_mem>>) src(%611 : memref<1x128xf32, #tpu.memory_space<any>>) dst(%613 : memref<1x128xf32, #tpu.memory_space<vmem>>)
    %c0_i32_607 = arith.constant 0 : i32
    %c0_i32_608 = arith.constant 0 : i32
    %c1_i32_609 = arith.constant 1 : i32
    %c0_i32_610 = arith.constant 0 : i32
    %616 = tpu.memref_slice %arg2[%75, %c0_i32_610] : memref<256x128xf32, #tpu.memory_space<any>> -> memref<1x128xf32, #tpu.memory_space<any>>
    %c1_i32_611 = arith.constant 1 : i32
    %c0_i32_612 = arith.constant 0 : i32
    %617 = tpu.memref_slice %arg4[%c0_i32_607, %c1_i32_611, %c0_i32_612] : memref<8x8x128xf32, #tpu.memory_space<vmem>> -> memref<1x1x128xf32, #tpu.memory_space<vmem>>
    %618 = tpu.memref_squeeze %617 : memref<1x1x128xf32, #tpu.memory_space<vmem>> -> memref<1x128xf32, #tpu.memory_space<vmem>>
    %619 = tpu.memref_slice %arg5[%c0_i32_608, %c1_i32_609] : memref<8x8x!tpu.dma_semaphore, #tpu.memory_space<semaphore_mem>> -> memref<1x1x!tpu.dma_semaphore, #tpu.memory_space<semaphore_mem>>
    %620 = tpu.memref_squeeze %619 : memref<1x1x!tpu.dma_semaphore, #tpu.memory_space<semaphore_mem>> -> memref<!tpu.dma_semaphore, #tpu.memory_space<semaphore_mem>>
    tpu.wait_dma2 semaphore(%620 : memref<!tpu.dma_semaphore, #tpu.memory_space<semaphore_mem>>) src(%616 : memref<1x128xf32, #tpu.memory_space<any>>) dst(%618 : memref<1x128xf32, #tpu.memory_space<vmem>>)
    %c1_i32_613 = arith.constant 1 : i32
    %c1_i32_614 = arith.constant 1 : i32
    %c1_i32_615 = arith.constant 1 : i32
    %c0_i32_616 = arith.constant 0 : i32
    %621 = tpu.memref_slice %arg2[%84, %c0_i32_616] : memref<256x128xf32, #tpu.memory_space<any>> -> memref<1x128xf32, #tpu.memory_space<any>>
    %c1_i32_617 = arith.constant 1 : i32
    %c0_i32_618 = arith.constant 0 : i32
    %622 = tpu.memref_slice %arg4[%c1_i32_613, %c1_i32_617, %c0_i32_618] : memref<8x8x128xf32, #tpu.memory_space<vmem>> -> memref<1x1x128xf32, #tpu.memory_space<vmem>>
    %623 = tpu.memref_squeeze %622 : memref<1x1x128xf32, #tpu.memory_space<vmem>> -> memref<1x128xf32, #tpu.memory_space<vmem>>
    %624 = tpu.memref_slice %arg5[%c1_i32_614, %c1_i32_615] : memref<8x8x!tpu.dma_semaphore, #tpu.memory_space<semaphore_mem>> -> memref<1x1x!tpu.dma_semaphore, #tpu.memory_space<semaphore_mem>>
    %625 = tpu.memref_squeeze %624 : memref<1x1x!tpu.dma_semaphore, #tpu.memory_space<semaphore_mem>> -> memref<!tpu.dma_semaphore, #tpu.memory_space<semaphore_mem>>
    tpu.wait_dma2 semaphore(%625 : memref<!tpu.dma_semaphore, #tpu.memory_space<semaphore_mem>>) src(%621 : memref<1x128xf32, #tpu.memory_space<any>>) dst(%623 : memref<1x128xf32, #tpu.memory_space<vmem>>)
    %c2_i32_619 = arith.constant 2 : i32
    %c2_i32_620 = arith.constant 2 : i32
    %c1_i32_621 = arith.constant 1 : i32
    %c0_i32_622 = arith.constant 0 : i32
    %626 = tpu.memref_slice %arg2[%93, %c0_i32_622] : memref<256x128xf32, #tpu.memory_space<any>> -> memref<1x128xf32, #tpu.memory_space<any>>
    %c1_i32_623 = arith.constant 1 : i32
    %c0_i32_624 = arith.constant 0 : i32
    %627 = tpu.memref_slice %arg4[%c2_i32_619, %c1_i32_623, %c0_i32_624] : memref<8x8x128xf32, #tpu.memory_space<vmem>> -> memref<1x1x128xf32, #tpu.memory_space<vmem>>
    %628 = tpu.memref_squeeze %627 : memref<1x1x128xf32, #tpu.memory_space<vmem>> -> memref<1x128xf32, #tpu.memory_space<vmem>>
    %629 = tpu.memref_slice %arg5[%c2_i32_620, %c1_i32_621] : memref<8x8x!tpu.dma_semaphore, #tpu.memory_space<semaphore_mem>> -> memref<1x1x!tpu.dma_semaphore, #tpu.memory_space<semaphore_mem>>
    %630 = tpu.memref_squeeze %629 : memref<1x1x!tpu.dma_semaphore, #tpu.memory_space<semaphore_mem>> -> memref<!tpu.dma_semaphore, #tpu.memory_space<semaphore_mem>>
    tpu.wait_dma2 semaphore(%630 : memref<!tpu.dma_semaphore, #tpu.memory_space<semaphore_mem>>) src(%626 : memref<1x128xf32, #tpu.memory_space<any>>) dst(%628 : memref<1x128xf32, #tpu.memory_space<vmem>>)
    %c3_i32_625 = arith.constant 3 : i32
    %c3_i32_626 = arith.constant 3 : i32
    %c1_i32_627 = arith.constant 1 : i32
    %c0_i32_628 = arith.constant 0 : i32
    %631 = tpu.memref_slice %arg2[%102, %c0_i32_628] : memref<256x128xf32, #tpu.memory_space<any>> -> memref<1x128xf32, #tpu.memory_space<any>>
    %c1_i32_629 = arith.constant 1 : i32
    %c0_i32_630 = arith.constant 0 : i32
    %632 = tpu.memref_slice %arg4[%c3_i32_625, %c1_i32_629, %c0_i32_630] : memref<8x8x128xf32, #tpu.memory_space<vmem>> -> memref<1x1x128xf32, #tpu.memory_space<vmem>>
    %633 = tpu.memref_squeeze %632 : memref<1x1x128xf32, #tpu.memory_space<vmem>> -> memref<1x128xf32, #tpu.memory_space<vmem>>
    %634 = tpu.memref_slice %arg5[%c3_i32_626, %c1_i32_627] : memref<8x8x!tpu.dma_semaphore, #tpu.memory_space<semaphore_mem>> -> memref<1x1x!tpu.dma_semaphore, #tpu.memory_space<semaphore_mem>>
    %635 = tpu.memref_squeeze %634 : memref<1x1x!tpu.dma_semaphore, #tpu.memory_space<semaphore_mem>> -> memref<!tpu.dma_semaphore, #tpu.memory_space<semaphore_mem>>
    tpu.wait_dma2 semaphore(%635 : memref<!tpu.dma_semaphore, #tpu.memory_space<semaphore_mem>>) src(%631 : memref<1x128xf32, #tpu.memory_space<any>>) dst(%633 : memref<1x128xf32, #tpu.memory_space<vmem>>)
    %c4_i32_631 = arith.constant 4 : i32
    %c4_i32_632 = arith.constant 4 : i32
    %c1_i32_633 = arith.constant 1 : i32
    %c0_i32_634 = arith.constant 0 : i32
    %636 = tpu.memref_slice %arg2[%111, %c0_i32_634] : memref<256x128xf32, #tpu.memory_space<any>> -> memref<1x128xf32, #tpu.memory_space<any>>
    %c1_i32_635 = arith.constant 1 : i32
    %c0_i32_636 = arith.constant 0 : i32
    %637 = tpu.memref_slice %arg4[%c4_i32_631, %c1_i32_635, %c0_i32_636] : memref<8x8x128xf32, #tpu.memory_space<vmem>> -> memref<1x1x128xf32, #tpu.memory_space<vmem>>
    %638 = tpu.memref_squeeze %637 : memref<1x1x128xf32, #tpu.memory_space<vmem>> -> memref<1x128xf32, #tpu.memory_space<vmem>>
    %639 = tpu.memref_slice %arg5[%c4_i32_632, %c1_i32_633] : memref<8x8x!tpu.dma_semaphore, #tpu.memory_space<semaphore_mem>> -> memref<1x1x!tpu.dma_semaphore, #tpu.memory_space<semaphore_mem>>
    %640 = tpu.memref_squeeze %639 : memref<1x1x!tpu.dma_semaphore, #tpu.memory_space<semaphore_mem>> -> memref<!tpu.dma_semaphore, #tpu.memory_space<semaphore_mem>>
    tpu.wait_dma2 semaphore(%640 : memref<!tpu.dma_semaphore, #tpu.memory_space<semaphore_mem>>) src(%636 : memref<1x128xf32, #tpu.memory_space<any>>) dst(%638 : memref<1x128xf32, #tpu.memory_space<vmem>>)
    %c5_i32_637 = arith.constant 5 : i32
    %c5_i32_638 = arith.constant 5 : i32
    %c1_i32_639 = arith.constant 1 : i32
    %c0_i32_640 = arith.constant 0 : i32
    %641 = tpu.memref_slice %arg2[%120, %c0_i32_640] : memref<256x128xf32, #tpu.memory_space<any>> -> memref<1x128xf32, #tpu.memory_space<any>>
    %c1_i32_641 = arith.constant 1 : i32
    %c0_i32_642 = arith.constant 0 : i32
    %642 = tpu.memref_slice %arg4[%c5_i32_637, %c1_i32_641, %c0_i32_642] : memref<8x8x128xf32, #tpu.memory_space<vmem>> -> memref<1x1x128xf32, #tpu.memory_space<vmem>>
    %643 = tpu.memref_squeeze %642 : memref<1x1x128xf32, #tpu.memory_space<vmem>> -> memref<1x128xf32, #tpu.memory_space<vmem>>
    %644 = tpu.memref_slice %arg5[%c5_i32_638, %c1_i32_639] : memref<8x8x!tpu.dma_semaphore, #tpu.memory_space<semaphore_mem>> -> memref<1x1x!tpu.dma_semaphore, #tpu.memory_space<semaphore_mem>>
    %645 = tpu.memref_squeeze %644 : memref<1x1x!tpu.dma_semaphore, #tpu.memory_space<semaphore_mem>> -> memref<!tpu.dma_semaphore, #tpu.memory_space<semaphore_mem>>
    tpu.wait_dma2 semaphore(%645 : memref<!tpu.dma_semaphore, #tpu.memory_space<semaphore_mem>>) src(%641 : memref<1x128xf32, #tpu.memory_space<any>>) dst(%643 : memref<1x128xf32, #tpu.memory_space<vmem>>)
    %c6_i32_643 = arith.constant 6 : i32
    %c6_i32_644 = arith.constant 6 : i32
    %c1_i32_645 = arith.constant 1 : i32
    %c0_i32_646 = arith.constant 0 : i32
    %646 = tpu.memref_slice %arg2[%129, %c0_i32_646] : memref<256x128xf32, #tpu.memory_space<any>> -> memref<1x128xf32, #tpu.memory_space<any>>
    %c1_i32_647 = arith.constant 1 : i32
    %c0_i32_648 = arith.constant 0 : i32
    %647 = tpu.memref_slice %arg4[%c6_i32_643, %c1_i32_647, %c0_i32_648] : memref<8x8x128xf32, #tpu.memory_space<vmem>> -> memref<1x1x128xf32, #tpu.memory_space<vmem>>
    %648 = tpu.memref_squeeze %647 : memref<1x1x128xf32, #tpu.memory_space<vmem>> -> memref<1x128xf32, #tpu.memory_space<vmem>>
    %649 = tpu.memref_slice %arg5[%c6_i32_644, %c1_i32_645] : memref<8x8x!tpu.dma_semaphore, #tpu.memory_space<semaphore_mem>> -> memref<1x1x!tpu.dma_semaphore, #tpu.memory_space<semaphore_mem>>
    %650 = tpu.memref_squeeze %649 : memref<1x1x!tpu.dma_semaphore, #tpu.memory_space<semaphore_mem>> -> memref<!tpu.dma_semaphore, #tpu.memory_space<semaphore_mem>>
    tpu.wait_dma2 semaphore(%650 : memref<!tpu.dma_semaphore, #tpu.memory_space<semaphore_mem>>) src(%646 : memref<1x128xf32, #tpu.memory_space<any>>) dst(%648 : memref<1x128xf32, #tpu.memory_space<vmem>>)
    %c7_i32_649 = arith.constant 7 : i32
    %c7_i32_650 = arith.constant 7 : i32
    %c1_i32_651 = arith.constant 1 : i32
    %c0_i32_652 = arith.constant 0 : i32
    %651 = tpu.memref_slice %arg2[%138, %c0_i32_652] : memref<256x128xf32, #tpu.memory_space<any>> -> memref<1x128xf32, #tpu.memory_space<any>>
    %c1_i32_653 = arith.constant 1 : i32
    %c0_i32_654 = arith.constant 0 : i32
    %652 = tpu.memref_slice %arg4[%c7_i32_649, %c1_i32_653, %c0_i32_654] : memref<8x8x128xf32, #tpu.memory_space<vmem>> -> memref<1x1x128xf32, #tpu.memory_space<vmem>>
    %653 = tpu.memref_squeeze %652 : memref<1x1x128xf32, #tpu.memory_space<vmem>> -> memref<1x128xf32, #tpu.memory_space<vmem>>
    %654 = tpu.memref_slice %arg5[%c7_i32_650, %c1_i32_651] : memref<8x8x!tpu.dma_semaphore, #tpu.memory_space<semaphore_mem>> -> memref<1x1x!tpu.dma_semaphore, #tpu.memory_space<semaphore_mem>>
    %655 = tpu.memref_squeeze %654 : memref<1x1x!tpu.dma_semaphore, #tpu.memory_space<semaphore_mem>> -> memref<!tpu.dma_semaphore, #tpu.memory_space<semaphore_mem>>
    tpu.wait_dma2 semaphore(%655 : memref<!tpu.dma_semaphore, #tpu.memory_space<semaphore_mem>>) src(%651 : memref<1x128xf32, #tpu.memory_space<any>>) dst(%653 : memref<1x128xf32, #tpu.memory_space<vmem>>)
    %c0_i32_655 = arith.constant 0 : i32
    %c0_i32_656 = arith.constant 0 : i32
    %c2_i32_657 = arith.constant 2 : i32
    %c0_i32_658 = arith.constant 0 : i32
    %656 = tpu.memref_slice %arg2[%147, %c0_i32_658] : memref<256x128xf32, #tpu.memory_space<any>> -> memref<1x128xf32, #tpu.memory_space<any>>
    %c2_i32_659 = arith.constant 2 : i32
    %c0_i32_660 = arith.constant 0 : i32
    %657 = tpu.memref_slice %arg4[%c0_i32_655, %c2_i32_659, %c0_i32_660] : memref<8x8x128xf32, #tpu.memory_space<vmem>> -> memref<1x1x128xf32, #tpu.memory_space<vmem>>
    %658 = tpu.memref_squeeze %657 : memref<1x1x128xf32, #tpu.memory_space<vmem>> -> memref<1x128xf32, #tpu.memory_space<vmem>>
    %659 = tpu.memref_slice %arg5[%c0_i32_656, %c2_i32_657] : memref<8x8x!tpu.dma_semaphore, #tpu.memory_space<semaphore_mem>> -> memref<1x1x!tpu.dma_semaphore, #tpu.memory_space<semaphore_mem>>
    %660 = tpu.memref_squeeze %659 : memref<1x1x!tpu.dma_semaphore, #tpu.memory_space<semaphore_mem>> -> memref<!tpu.dma_semaphore, #tpu.memory_space<semaphore_mem>>
    tpu.wait_dma2 semaphore(%660 : memref<!tpu.dma_semaphore, #tpu.memory_space<semaphore_mem>>) src(%656 : memref<1x128xf32, #tpu.memory_space<any>>) dst(%658 : memref<1x128xf32, #tpu.memory_space<vmem>>)
    %c1_i32_661 = arith.constant 1 : i32
    %c1_i32_662 = arith.constant 1 : i32
    %c2_i32_663 = arith.constant 2 : i32
    %c0_i32_664 = arith.constant 0 : i32
    %661 = tpu.memref_slice %arg2[%156, %c0_i32_664] : memref<256x128xf32, #tpu.memory_space<any>> -> memref<1x128xf32, #tpu.memory_space<any>>
    %c2_i32_665 = arith.constant 2 : i32
    %c0_i32_666 = arith.constant 0 : i32
    %662 = tpu.memref_slice %arg4[%c1_i32_661, %c2_i32_665, %c0_i32_666] : memref<8x8x128xf32, #tpu.memory_space<vmem>> -> memref<1x1x128xf32, #tpu.memory_space<vmem>>
    %663 = tpu.memref_squeeze %662 : memref<1x1x128xf32, #tpu.memory_space<vmem>> -> memref<1x128xf32, #tpu.memory_space<vmem>>
    %664 = tpu.memref_slice %arg5[%c1_i32_662, %c2_i32_663] : memref<8x8x!tpu.dma_semaphore, #tpu.memory_space<semaphore_mem>> -> memref<1x1x!tpu.dma_semaphore, #tpu.memory_space<semaphore_mem>>
    %665 = tpu.memref_squeeze %664 : memref<1x1x!tpu.dma_semaphore, #tpu.memory_space<semaphore_mem>> -> memref<!tpu.dma_semaphore, #tpu.memory_space<semaphore_mem>>
    tpu.wait_dma2 semaphore(%665 : memref<!tpu.dma_semaphore, #tpu.memory_space<semaphore_mem>>) src(%661 : memref<1x128xf32, #tpu.memory_space<any>>) dst(%663 : memref<1x128xf32, #tpu.memory_space<vmem>>)
    %c2_i32_667 = arith.constant 2 : i32
    %c2_i32_668 = arith.constant 2 : i32
    %c2_i32_669 = arith.constant 2 : i32
    %c0_i32_670 = arith.constant 0 : i32
    %666 = tpu.memref_slice %arg2[%165, %c0_i32_670] : memref<256x128xf32, #tpu.memory_space<any>> -> memref<1x128xf32, #tpu.memory_space<any>>
    %c2_i32_671 = arith.constant 2 : i32
    %c0_i32_672 = arith.constant 0 : i32
    %667 = tpu.memref_slice %arg4[%c2_i32_667, %c2_i32_671, %c0_i32_672] : memref<8x8x128xf32, #tpu.memory_space<vmem>> -> memref<1x1x128xf32, #tpu.memory_space<vmem>>
    %668 = tpu.memref_squeeze %667 : memref<1x1x128xf32, #tpu.memory_space<vmem>> -> memref<1x128xf32, #tpu.memory_space<vmem>>
    %669 = tpu.memref_slice %arg5[%c2_i32_668, %c2_i32_669] : memref<8x8x!tpu.dma_semaphore, #tpu.memory_space<semaphore_mem>> -> memref<1x1x!tpu.dma_semaphore, #tpu.memory_space<semaphore_mem>>
    %670 = tpu.memref_squeeze %669 : memref<1x1x!tpu.dma_semaphore, #tpu.memory_space<semaphore_mem>> -> memref<!tpu.dma_semaphore, #tpu.memory_space<semaphore_mem>>
    tpu.wait_dma2 semaphore(%670 : memref<!tpu.dma_semaphore, #tpu.memory_space<semaphore_mem>>) src(%666 : memref<1x128xf32, #tpu.memory_space<any>>) dst(%668 : memref<1x128xf32, #tpu.memory_space<vmem>>)
    %c3_i32_673 = arith.constant 3 : i32
    %c3_i32_674 = arith.constant 3 : i32
    %c2_i32_675 = arith.constant 2 : i32
    %c0_i32_676 = arith.constant 0 : i32
    %671 = tpu.memref_slice %arg2[%174, %c0_i32_676] : memref<256x128xf32, #tpu.memory_space<any>> -> memref<1x128xf32, #tpu.memory_space<any>>
    %c2_i32_677 = arith.constant 2 : i32
    %c0_i32_678 = arith.constant 0 : i32
    %672 = tpu.memref_slice %arg4[%c3_i32_673, %c2_i32_677, %c0_i32_678] : memref<8x8x128xf32, #tpu.memory_space<vmem>> -> memref<1x1x128xf32, #tpu.memory_space<vmem>>
    %673 = tpu.memref_squeeze %672 : memref<1x1x128xf32, #tpu.memory_space<vmem>> -> memref<1x128xf32, #tpu.memory_space<vmem>>
    %674 = tpu.memref_slice %arg5[%c3_i32_674, %c2_i32_675] : memref<8x8x!tpu.dma_semaphore, #tpu.memory_space<semaphore_mem>> -> memref<1x1x!tpu.dma_semaphore, #tpu.memory_space<semaphore_mem>>
    %675 = tpu.memref_squeeze %674 : memref<1x1x!tpu.dma_semaphore, #tpu.memory_space<semaphore_mem>> -> memref<!tpu.dma_semaphore, #tpu.memory_space<semaphore_mem>>
    tpu.wait_dma2 semaphore(%675 : memref<!tpu.dma_semaphore, #tpu.memory_space<semaphore_mem>>) src(%671 : memref<1x128xf32, #tpu.memory_space<any>>) dst(%673 : memref<1x128xf32, #tpu.memory_space<vmem>>)
    %c4_i32_679 = arith.constant 4 : i32
    %c4_i32_680 = arith.constant 4 : i32
    %c2_i32_681 = arith.constant 2 : i32
    %c0_i32_682 = arith.constant 0 : i32
    %676 = tpu.memref_slice %arg2[%183, %c0_i32_682] : memref<256x128xf32, #tpu.memory_space<any>> -> memref<1x128xf32, #tpu.memory_space<any>>
    %c2_i32_683 = arith.constant 2 : i32
    %c0_i32_684 = arith.constant 0 : i32
    %677 = tpu.memref_slice %arg4[%c4_i32_679, %c2_i32_683, %c0_i32_684] : memref<8x8x128xf32, #tpu.memory_space<vmem>> -> memref<1x1x128xf32, #tpu.memory_space<vmem>>
    %678 = tpu.memref_squeeze %677 : memref<1x1x128xf32, #tpu.memory_space<vmem>> -> memref<1x128xf32, #tpu.memory_space<vmem>>
    %679 = tpu.memref_slice %arg5[%c4_i32_680, %c2_i32_681] : memref<8x8x!tpu.dma_semaphore, #tpu.memory_space<semaphore_mem>> -> memref<1x1x!tpu.dma_semaphore, #tpu.memory_space<semaphore_mem>>
    %680 = tpu.memref_squeeze %679 : memref<1x1x!tpu.dma_semaphore, #tpu.memory_space<semaphore_mem>> -> memref<!tpu.dma_semaphore, #tpu.memory_space<semaphore_mem>>
    tpu.wait_dma2 semaphore(%680 : memref<!tpu.dma_semaphore, #tpu.memory_space<semaphore_mem>>) src(%676 : memref<1x128xf32, #tpu.memory_space<any>>) dst(%678 : memref<1x128xf32, #tpu.memory_space<vmem>>)
    %c5_i32_685 = arith.constant 5 : i32
    %c5_i32_686 = arith.constant 5 : i32
    %c2_i32_687 = arith.constant 2 : i32
    %c0_i32_688 = arith.constant 0 : i32
    %681 = tpu.memref_slice %arg2[%192, %c0_i32_688] : memref<256x128xf32, #tpu.memory_space<any>> -> memref<1x128xf32, #tpu.memory_space<any>>
    %c2_i32_689 = arith.constant 2 : i32
    %c0_i32_690 = arith.constant 0 : i32
    %682 = tpu.memref_slice %arg4[%c5_i32_685, %c2_i32_689, %c0_i32_690] : memref<8x8x128xf32, #tpu.memory_space<vmem>> -> memref<1x1x128xf32, #tpu.memory_space<vmem>>
    %683 = tpu.memref_squeeze %682 : memref<1x1x128xf32, #tpu.memory_space<vmem>> -> memref<1x128xf32, #tpu.memory_space<vmem>>
    %684 = tpu.memref_slice %arg5[%c5_i32_686, %c2_i32_687] : memref<8x8x!tpu.dma_semaphore, #tpu.memory_space<semaphore_mem>> -> memref<1x1x!tpu.dma_semaphore, #tpu.memory_space<semaphore_mem>>
    %685 = tpu.memref_squeeze %684 : memref<1x1x!tpu.dma_semaphore, #tpu.memory_space<semaphore_mem>> -> memref<!tpu.dma_semaphore, #tpu.memory_space<semaphore_mem>>
    tpu.wait_dma2 semaphore(%685 : memref<!tpu.dma_semaphore, #tpu.memory_space<semaphore_mem>>) src(%681 : memref<1x128xf32, #tpu.memory_space<any>>) dst(%683 : memref<1x128xf32, #tpu.memory_space<vmem>>)
    %c6_i32_691 = arith.constant 6 : i32
    %c6_i32_692 = arith.constant 6 : i32
    %c2_i32_693 = arith.constant 2 : i32
    %c0_i32_694 = arith.constant 0 : i32
    %686 = tpu.memref_slice %arg2[%201, %c0_i32_694] : memref<256x128xf32, #tpu.memory_space<any>> -> memref<1x128xf32, #tpu.memory_space<any>>
    %c2_i32_695 = arith.constant 2 : i32
    %c0_i32_696 = arith.constant 0 : i32
    %687 = tpu.memref_slice %arg4[%c6_i32_691, %c2_i32_695, %c0_i32_696] : memref<8x8x128xf32, #tpu.memory_space<vmem>> -> memref<1x1x128xf32, #tpu.memory_space<vmem>>
    %688 = tpu.memref_squeeze %687 : memref<1x1x128xf32, #tpu.memory_space<vmem>> -> memref<1x128xf32, #tpu.memory_space<vmem>>
    %689 = tpu.memref_slice %arg5[%c6_i32_692, %c2_i32_693] : memref<8x8x!tpu.dma_semaphore, #tpu.memory_space<semaphore_mem>> -> memref<1x1x!tpu.dma_semaphore, #tpu.memory_space<semaphore_mem>>
    %690 = tpu.memref_squeeze %689 : memref<1x1x!tpu.dma_semaphore, #tpu.memory_space<semaphore_mem>> -> memref<!tpu.dma_semaphore, #tpu.memory_space<semaphore_mem>>
    tpu.wait_dma2 semaphore(%690 : memref<!tpu.dma_semaphore, #tpu.memory_space<semaphore_mem>>) src(%686 : memref<1x128xf32, #tpu.memory_space<any>>) dst(%688 : memref<1x128xf32, #tpu.memory_space<vmem>>)
    %c7_i32_697 = arith.constant 7 : i32
    %c7_i32_698 = arith.constant 7 : i32
    %c2_i32_699 = arith.constant 2 : i32
    %c0_i32_700 = arith.constant 0 : i32
    %691 = tpu.memref_slice %arg2[%210, %c0_i32_700] : memref<256x128xf32, #tpu.memory_space<any>> -> memref<1x128xf32, #tpu.memory_space<any>>
    %c2_i32_701 = arith.constant 2 : i32
    %c0_i32_702 = arith.constant 0 : i32
    %692 = tpu.memref_slice %arg4[%c7_i32_697, %c2_i32_701, %c0_i32_702] : memref<8x8x128xf32, #tpu.memory_space<vmem>> -> memref<1x1x128xf32, #tpu.memory_space<vmem>>
    %693 = tpu.memref_squeeze %692 : memref<1x1x128xf32, #tpu.memory_space<vmem>> -> memref<1x128xf32, #tpu.memory_space<vmem>>
    %694 = tpu.memref_slice %arg5[%c7_i32_698, %c2_i32_699] : memref<8x8x!tpu.dma_semaphore, #tpu.memory_space<semaphore_mem>> -> memref<1x1x!tpu.dma_semaphore, #tpu.memory_space<semaphore_mem>>
    %695 = tpu.memref_squeeze %694 : memref<1x1x!tpu.dma_semaphore, #tpu.memory_space<semaphore_mem>> -> memref<!tpu.dma_semaphore, #tpu.memory_space<semaphore_mem>>
    tpu.wait_dma2 semaphore(%695 : memref<!tpu.dma_semaphore, #tpu.memory_space<semaphore_mem>>) src(%691 : memref<1x128xf32, #tpu.memory_space<any>>) dst(%693 : memref<1x128xf32, #tpu.memory_space<vmem>>)
    %c0_i32_703 = arith.constant 0 : i32
    %c0_i32_704 = arith.constant 0 : i32
    %c3_i32_705 = arith.constant 3 : i32
    %c0_i32_706 = arith.constant 0 : i32
    %696 = tpu.memref_slice %arg2[%219, %c0_i32_706] : memref<256x128xf32, #tpu.memory_space<any>> -> memref<1x128xf32, #tpu.memory_space<any>>
    %c3_i32_707 = arith.constant 3 : i32
    %c0_i32_708 = arith.constant 0 : i32
    %697 = tpu.memref_slice %arg4[%c0_i32_703, %c3_i32_707, %c0_i32_708] : memref<8x8x128xf32, #tpu.memory_space<vmem>> -> memref<1x1x128xf32, #tpu.memory_space<vmem>>
    %698 = tpu.memref_squeeze %697 : memref<1x1x128xf32, #tpu.memory_space<vmem>> -> memref<1x128xf32, #tpu.memory_space<vmem>>
    %699 = tpu.memref_slice %arg5[%c0_i32_704, %c3_i32_705] : memref<8x8x!tpu.dma_semaphore, #tpu.memory_space<semaphore_mem>> -> memref<1x1x!tpu.dma_semaphore, #tpu.memory_space<semaphore_mem>>
    %700 = tpu.memref_squeeze %699 : memref<1x1x!tpu.dma_semaphore, #tpu.memory_space<semaphore_mem>> -> memref<!tpu.dma_semaphore, #tpu.memory_space<semaphore_mem>>
    tpu.wait_dma2 semaphore(%700 : memref<!tpu.dma_semaphore, #tpu.memory_space<semaphore_mem>>) src(%696 : memref<1x128xf32, #tpu.memory_space<any>>) dst(%698 : memref<1x128xf32, #tpu.memory_space<vmem>>)
    %c1_i32_709 = arith.constant 1 : i32
    %c1_i32_710 = arith.constant 1 : i32
    %c3_i32_711 = arith.constant 3 : i32
    %c0_i32_712 = arith.constant 0 : i32
    %701 = tpu.memref_slice %arg2[%228, %c0_i32_712] : memref<256x128xf32, #tpu.memory_space<any>> -> memref<1x128xf32, #tpu.memory_space<any>>
    %c3_i32_713 = arith.constant 3 : i32
    %c0_i32_714 = arith.constant 0 : i32
    %702 = tpu.memref_slice %arg4[%c1_i32_709, %c3_i32_713, %c0_i32_714] : memref<8x8x128xf32, #tpu.memory_space<vmem>> -> memref<1x1x128xf32, #tpu.memory_space<vmem>>
    %703 = tpu.memref_squeeze %702 : memref<1x1x128xf32, #tpu.memory_space<vmem>> -> memref<1x128xf32, #tpu.memory_space<vmem>>
    %704 = tpu.memref_slice %arg5[%c1_i32_710, %c3_i32_711] : memref<8x8x!tpu.dma_semaphore, #tpu.memory_space<semaphore_mem>> -> memref<1x1x!tpu.dma_semaphore, #tpu.memory_space<semaphore_mem>>
    %705 = tpu.memref_squeeze %704 : memref<1x1x!tpu.dma_semaphore, #tpu.memory_space<semaphore_mem>> -> memref<!tpu.dma_semaphore, #tpu.memory_space<semaphore_mem>>
    tpu.wait_dma2 semaphore(%705 : memref<!tpu.dma_semaphore, #tpu.memory_space<semaphore_mem>>) src(%701 : memref<1x128xf32, #tpu.memory_space<any>>) dst(%703 : memref<1x128xf32, #tpu.memory_space<vmem>>)
    %c2_i32_715 = arith.constant 2 : i32
    %c2_i32_716 = arith.constant 2 : i32
    %c3_i32_717 = arith.constant 3 : i32
    %c0_i32_718 = arith.constant 0 : i32
    %706 = tpu.memref_slice %arg2[%237, %c0_i32_718] : memref<256x128xf32, #tpu.memory_space<any>> -> memref<1x128xf32, #tpu.memory_space<any>>
    %c3_i32_719 = arith.constant 3 : i32
    %c0_i32_720 = arith.constant 0 : i32
    %707 = tpu.memref_slice %arg4[%c2_i32_715, %c3_i32_719, %c0_i32_720] : memref<8x8x128xf32, #tpu.memory_space<vmem>> -> memref<1x1x128xf32, #tpu.memory_space<vmem>>
    %708 = tpu.memref_squeeze %707 : memref<1x1x128xf32, #tpu.memory_space<vmem>> -> memref<1x128xf32, #tpu.memory_space<vmem>>
    %709 = tpu.memref_slice %arg5[%c2_i32_716, %c3_i32_717] : memref<8x8x!tpu.dma_semaphore, #tpu.memory_space<semaphore_mem>> -> memref<1x1x!tpu.dma_semaphore, #tpu.memory_space<semaphore_mem>>
    %710 = tpu.memref_squeeze %709 : memref<1x1x!tpu.dma_semaphore, #tpu.memory_space<semaphore_mem>> -> memref<!tpu.dma_semaphore, #tpu.memory_space<semaphore_mem>>
    tpu.wait_dma2 semaphore(%710 : memref<!tpu.dma_semaphore, #tpu.memory_space<semaphore_mem>>) src(%706 : memref<1x128xf32, #tpu.memory_space<any>>) dst(%708 : memref<1x128xf32, #tpu.memory_space<vmem>>)
    %c3_i32_721 = arith.constant 3 : i32
    %c3_i32_722 = arith.constant 3 : i32
    %c3_i32_723 = arith.constant 3 : i32
    %c0_i32_724 = arith.constant 0 : i32
    %711 = tpu.memref_slice %arg2[%246, %c0_i32_724] : memref<256x128xf32, #tpu.memory_space<any>> -> memref<1x128xf32, #tpu.memory_space<any>>
    %c3_i32_725 = arith.constant 3 : i32
    %c0_i32_726 = arith.constant 0 : i32
    %712 = tpu.memref_slice %arg4[%c3_i32_721, %c3_i32_725, %c0_i32_726] : memref<8x8x128xf32, #tpu.memory_space<vmem>> -> memref<1x1x128xf32, #tpu.memory_space<vmem>>
    %713 = tpu.memref_squeeze %712 : memref<1x1x128xf32, #tpu.memory_space<vmem>> -> memref<1x128xf32, #tpu.memory_space<vmem>>
    %714 = tpu.memref_slice %arg5[%c3_i32_722, %c3_i32_723] : memref<8x8x!tpu.dma_semaphore, #tpu.memory_space<semaphore_mem>> -> memref<1x1x!tpu.dma_semaphore, #tpu.memory_space<semaphore_mem>>
    %715 = tpu.memref_squeeze %714 : memref<1x1x!tpu.dma_semaphore, #tpu.memory_space<semaphore_mem>> -> memref<!tpu.dma_semaphore, #tpu.memory_space<semaphore_mem>>
    tpu.wait_dma2 semaphore(%715 : memref<!tpu.dma_semaphore, #tpu.memory_space<semaphore_mem>>) src(%711 : memref<1x128xf32, #tpu.memory_space<any>>) dst(%713 : memref<1x128xf32, #tpu.memory_space<vmem>>)
    %c4_i32_727 = arith.constant 4 : i32
    %c4_i32_728 = arith.constant 4 : i32
    %c3_i32_729 = arith.constant 3 : i32
    %c0_i32_730 = arith.constant 0 : i32
    %716 = tpu.memref_slice %arg2[%255, %c0_i32_730] : memref<256x128xf32, #tpu.memory_space<any>> -> memref<1x128xf32, #tpu.memory_space<any>>
    %c3_i32_731 = arith.constant 3 : i32
    %c0_i32_732 = arith.constant 0 : i32
    %717 = tpu.memref_slice %arg4[%c4_i32_727, %c3_i32_731, %c0_i32_732] : memref<8x8x128xf32, #tpu.memory_space<vmem>> -> memref<1x1x128xf32, #tpu.memory_space<vmem>>
    %718 = tpu.memref_squeeze %717 : memref<1x1x128xf32, #tpu.memory_space<vmem>> -> memref<1x128xf32, #tpu.memory_space<vmem>>
    %719 = tpu.memref_slice %arg5[%c4_i32_728, %c3_i32_729] : memref<8x8x!tpu.dma_semaphore, #tpu.memory_space<semaphore_mem>> -> memref<1x1x!tpu.dma_semaphore, #tpu.memory_space<semaphore_mem>>
    %720 = tpu.memref_squeeze %719 : memref<1x1x!tpu.dma_semaphore, #tpu.memory_space<semaphore_mem>> -> memref<!tpu.dma_semaphore, #tpu.memory_space<semaphore_mem>>
    tpu.wait_dma2 semaphore(%720 : memref<!tpu.dma_semaphore, #tpu.memory_space<semaphore_mem>>) src(%716 : memref<1x128xf32, #tpu.memory_space<any>>) dst(%718 : memref<1x128xf32, #tpu.memory_space<vmem>>)
    %c5_i32_733 = arith.constant 5 : i32
    %c5_i32_734 = arith.constant 5 : i32
    %c3_i32_735 = arith.constant 3 : i32
    %c0_i32_736 = arith.constant 0 : i32
    %721 = tpu.memref_slice %arg2[%264, %c0_i32_736] : memref<256x128xf32, #tpu.memory_space<any>> -> memref<1x128xf32, #tpu.memory_space<any>>
    %c3_i32_737 = arith.constant 3 : i32
    %c0_i32_738 = arith.constant 0 : i32
    %722 = tpu.memref_slice %arg4[%c5_i32_733, %c3_i32_737, %c0_i32_738] : memref<8x8x128xf32, #tpu.memory_space<vmem>> -> memref<1x1x128xf32, #tpu.memory_space<vmem>>
    %723 = tpu.memref_squeeze %722 : memref<1x1x128xf32, #tpu.memory_space<vmem>> -> memref<1x128xf32, #tpu.memory_space<vmem>>
    %724 = tpu.memref_slice %arg5[%c5_i32_734, %c3_i32_735] : memref<8x8x!tpu.dma_semaphore, #tpu.memory_space<semaphore_mem>> -> memref<1x1x!tpu.dma_semaphore, #tpu.memory_space<semaphore_mem>>
    %725 = tpu.memref_squeeze %724 : memref<1x1x!tpu.dma_semaphore, #tpu.memory_space<semaphore_mem>> -> memref<!tpu.dma_semaphore, #tpu.memory_space<semaphore_mem>>
    tpu.wait_dma2 semaphore(%725 : memref<!tpu.dma_semaphore, #tpu.memory_space<semaphore_mem>>) src(%721 : memref<1x128xf32, #tpu.memory_space<any>>) dst(%723 : memref<1x128xf32, #tpu.memory_space<vmem>>)
    %c6_i32_739 = arith.constant 6 : i32
    %c6_i32_740 = arith.constant 6 : i32
    %c3_i32_741 = arith.constant 3 : i32
    %c0_i32_742 = arith.constant 0 : i32
    %726 = tpu.memref_slice %arg2[%273, %c0_i32_742] : memref<256x128xf32, #tpu.memory_space<any>> -> memref<1x128xf32, #tpu.memory_space<any>>
    %c3_i32_743 = arith.constant 3 : i32
    %c0_i32_744 = arith.constant 0 : i32
    %727 = tpu.memref_slice %arg4[%c6_i32_739, %c3_i32_743, %c0_i32_744] : memref<8x8x128xf32, #tpu.memory_space<vmem>> -> memref<1x1x128xf32, #tpu.memory_space<vmem>>
    %728 = tpu.memref_squeeze %727 : memref<1x1x128xf32, #tpu.memory_space<vmem>> -> memref<1x128xf32, #tpu.memory_space<vmem>>
    %729 = tpu.memref_slice %arg5[%c6_i32_740, %c3_i32_741] : memref<8x8x!tpu.dma_semaphore, #tpu.memory_space<semaphore_mem>> -> memref<1x1x!tpu.dma_semaphore, #tpu.memory_space<semaphore_mem>>
    %730 = tpu.memref_squeeze %729 : memref<1x1x!tpu.dma_semaphore, #tpu.memory_space<semaphore_mem>> -> memref<!tpu.dma_semaphore, #tpu.memory_space<semaphore_mem>>
    tpu.wait_dma2 semaphore(%730 : memref<!tpu.dma_semaphore, #tpu.memory_space<semaphore_mem>>) src(%726 : memref<1x128xf32, #tpu.memory_space<any>>) dst(%728 : memref<1x128xf32, #tpu.memory_space<vmem>>)
    %c7_i32_745 = arith.constant 7 : i32
    %c7_i32_746 = arith.constant 7 : i32
    %c3_i32_747 = arith.constant 3 : i32
    %c0_i32_748 = arith.constant 0 : i32
    %731 = tpu.memref_slice %arg2[%282, %c0_i32_748] : memref<256x128xf32, #tpu.memory_space<any>> -> memref<1x128xf32, #tpu.memory_space<any>>
    %c3_i32_749 = arith.constant 3 : i32
    %c0_i32_750 = arith.constant 0 : i32
    %732 = tpu.memref_slice %arg4[%c7_i32_745, %c3_i32_749, %c0_i32_750] : memref<8x8x128xf32, #tpu.memory_space<vmem>> -> memref<1x1x128xf32, #tpu.memory_space<vmem>>
    %733 = tpu.memref_squeeze %732 : memref<1x1x128xf32, #tpu.memory_space<vmem>> -> memref<1x128xf32, #tpu.memory_space<vmem>>
    %734 = tpu.memref_slice %arg5[%c7_i32_746, %c3_i32_747] : memref<8x8x!tpu.dma_semaphore, #tpu.memory_space<semaphore_mem>> -> memref<1x1x!tpu.dma_semaphore, #tpu.memory_space<semaphore_mem>>
    %735 = tpu.memref_squeeze %734 : memref<1x1x!tpu.dma_semaphore, #tpu.memory_space<semaphore_mem>> -> memref<!tpu.dma_semaphore, #tpu.memory_space<semaphore_mem>>
    tpu.wait_dma2 semaphore(%735 : memref<!tpu.dma_semaphore, #tpu.memory_space<semaphore_mem>>) src(%731 : memref<1x128xf32, #tpu.memory_space<any>>) dst(%733 : memref<1x128xf32, #tpu.memory_space<vmem>>)
    %c0_i32_751 = arith.constant 0 : i32
    %c0_i32_752 = arith.constant 0 : i32
    %c4_i32_753 = arith.constant 4 : i32
    %c0_i32_754 = arith.constant 0 : i32
    %736 = tpu.memref_slice %arg2[%291, %c0_i32_754] : memref<256x128xf32, #tpu.memory_space<any>> -> memref<1x128xf32, #tpu.memory_space<any>>
    %c4_i32_755 = arith.constant 4 : i32
    %c0_i32_756 = arith.constant 0 : i32
    %737 = tpu.memref_slice %arg4[%c0_i32_751, %c4_i32_755, %c0_i32_756] : memref<8x8x128xf32, #tpu.memory_space<vmem>> -> memref<1x1x128xf32, #tpu.memory_space<vmem>>
    %738 = tpu.memref_squeeze %737 : memref<1x1x128xf32, #tpu.memory_space<vmem>> -> memref<1x128xf32, #tpu.memory_space<vmem>>
    %739 = tpu.memref_slice %arg5[%c0_i32_752, %c4_i32_753] : memref<8x8x!tpu.dma_semaphore, #tpu.memory_space<semaphore_mem>> -> memref<1x1x!tpu.dma_semaphore, #tpu.memory_space<semaphore_mem>>
    %740 = tpu.memref_squeeze %739 : memref<1x1x!tpu.dma_semaphore, #tpu.memory_space<semaphore_mem>> -> memref<!tpu.dma_semaphore, #tpu.memory_space<semaphore_mem>>
    tpu.wait_dma2 semaphore(%740 : memref<!tpu.dma_semaphore, #tpu.memory_space<semaphore_mem>>) src(%736 : memref<1x128xf32, #tpu.memory_space<any>>) dst(%738 : memref<1x128xf32, #tpu.memory_space<vmem>>)
    %c1_i32_757 = arith.constant 1 : i32
    %c1_i32_758 = arith.constant 1 : i32
    %c4_i32_759 = arith.constant 4 : i32
    %c0_i32_760 = arith.constant 0 : i32
    %741 = tpu.memref_slice %arg2[%300, %c0_i32_760] : memref<256x128xf32, #tpu.memory_space<any>> -> memref<1x128xf32, #tpu.memory_space<any>>
    %c4_i32_761 = arith.constant 4 : i32
    %c0_i32_762 = arith.constant 0 : i32
    %742 = tpu.memref_slice %arg4[%c1_i32_757, %c4_i32_761, %c0_i32_762] : memref<8x8x128xf32, #tpu.memory_space<vmem>> -> memref<1x1x128xf32, #tpu.memory_space<vmem>>
    %743 = tpu.memref_squeeze %742 : memref<1x1x128xf32, #tpu.memory_space<vmem>> -> memref<1x128xf32, #tpu.memory_space<vmem>>
    %744 = tpu.memref_slice %arg5[%c1_i32_758, %c4_i32_759] : memref<8x8x!tpu.dma_semaphore, #tpu.memory_space<semaphore_mem>> -> memref<1x1x!tpu.dma_semaphore, #tpu.memory_space<semaphore_mem>>
    %745 = tpu.memref_squeeze %744 : memref<1x1x!tpu.dma_semaphore, #tpu.memory_space<semaphore_mem>> -> memref<!tpu.dma_semaphore, #tpu.memory_space<semaphore_mem>>
    tpu.wait_dma2 semaphore(%745 : memref<!tpu.dma_semaphore, #tpu.memory_space<semaphore_mem>>) src(%741 : memref<1x128xf32, #tpu.memory_space<any>>) dst(%743 : memref<1x128xf32, #tpu.memory_space<vmem>>)
    %c2_i32_763 = arith.constant 2 : i32
    %c2_i32_764 = arith.constant 2 : i32
    %c4_i32_765 = arith.constant 4 : i32
    %c0_i32_766 = arith.constant 0 : i32
    %746 = tpu.memref_slice %arg2[%309, %c0_i32_766] : memref<256x128xf32, #tpu.memory_space<any>> -> memref<1x128xf32, #tpu.memory_space<any>>
    %c4_i32_767 = arith.constant 4 : i32
    %c0_i32_768 = arith.constant 0 : i32
    %747 = tpu.memref_slice %arg4[%c2_i32_763, %c4_i32_767, %c0_i32_768] : memref<8x8x128xf32, #tpu.memory_space<vmem>> -> memref<1x1x128xf32, #tpu.memory_space<vmem>>
    %748 = tpu.memref_squeeze %747 : memref<1x1x128xf32, #tpu.memory_space<vmem>> -> memref<1x128xf32, #tpu.memory_space<vmem>>
    %749 = tpu.memref_slice %arg5[%c2_i32_764, %c4_i32_765] : memref<8x8x!tpu.dma_semaphore, #tpu.memory_space<semaphore_mem>> -> memref<1x1x!tpu.dma_semaphore, #tpu.memory_space<semaphore_mem>>
    %750 = tpu.memref_squeeze %749 : memref<1x1x!tpu.dma_semaphore, #tpu.memory_space<semaphore_mem>> -> memref<!tpu.dma_semaphore, #tpu.memory_space<semaphore_mem>>
    tpu.wait_dma2 semaphore(%750 : memref<!tpu.dma_semaphore, #tpu.memory_space<semaphore_mem>>) src(%746 : memref<1x128xf32, #tpu.memory_space<any>>) dst(%748 : memref<1x128xf32, #tpu.memory_space<vmem>>)
    %c3_i32_769 = arith.constant 3 : i32
    %c3_i32_770 = arith.constant 3 : i32
    %c4_i32_771 = arith.constant 4 : i32
    %c0_i32_772 = arith.constant 0 : i32
    %751 = tpu.memref_slice %arg2[%318, %c0_i32_772] : memref<256x128xf32, #tpu.memory_space<any>> -> memref<1x128xf32, #tpu.memory_space<any>>
    %c4_i32_773 = arith.constant 4 : i32
    %c0_i32_774 = arith.constant 0 : i32
    %752 = tpu.memref_slice %arg4[%c3_i32_769, %c4_i32_773, %c0_i32_774] : memref<8x8x128xf32, #tpu.memory_space<vmem>> -> memref<1x1x128xf32, #tpu.memory_space<vmem>>
    %753 = tpu.memref_squeeze %752 : memref<1x1x128xf32, #tpu.memory_space<vmem>> -> memref<1x128xf32, #tpu.memory_space<vmem>>
    %754 = tpu.memref_slice %arg5[%c3_i32_770, %c4_i32_771] : memref<8x8x!tpu.dma_semaphore, #tpu.memory_space<semaphore_mem>> -> memref<1x1x!tpu.dma_semaphore, #tpu.memory_space<semaphore_mem>>
    %755 = tpu.memref_squeeze %754 : memref<1x1x!tpu.dma_semaphore, #tpu.memory_space<semaphore_mem>> -> memref<!tpu.dma_semaphore, #tpu.memory_space<semaphore_mem>>
    tpu.wait_dma2 semaphore(%755 : memref<!tpu.dma_semaphore, #tpu.memory_space<semaphore_mem>>) src(%751 : memref<1x128xf32, #tpu.memory_space<any>>) dst(%753 : memref<1x128xf32, #tpu.memory_space<vmem>>)
    %c4_i32_775 = arith.constant 4 : i32
    %c4_i32_776 = arith.constant 4 : i32
    %c4_i32_777 = arith.constant 4 : i32
    %c0_i32_778 = arith.constant 0 : i32
    %756 = tpu.memref_slice %arg2[%327, %c0_i32_778] : memref<256x128xf32, #tpu.memory_space<any>> -> memref<1x128xf32, #tpu.memory_space<any>>
    %c4_i32_779 = arith.constant 4 : i32
    %c0_i32_780 = arith.constant 0 : i32
    %757 = tpu.memref_slice %arg4[%c4_i32_775, %c4_i32_779, %c0_i32_780] : memref<8x8x128xf32, #tpu.memory_space<vmem>> -> memref<1x1x128xf32, #tpu.memory_space<vmem>>
    %758 = tpu.memref_squeeze %757 : memref<1x1x128xf32, #tpu.memory_space<vmem>> -> memref<1x128xf32, #tpu.memory_space<vmem>>
    %759 = tpu.memref_slice %arg5[%c4_i32_776, %c4_i32_777] : memref<8x8x!tpu.dma_semaphore, #tpu.memory_space<semaphore_mem>> -> memref<1x1x!tpu.dma_semaphore, #tpu.memory_space<semaphore_mem>>
    %760 = tpu.memref_squeeze %759 : memref<1x1x!tpu.dma_semaphore, #tpu.memory_space<semaphore_mem>> -> memref<!tpu.dma_semaphore, #tpu.memory_space<semaphore_mem>>
    tpu.wait_dma2 semaphore(%760 : memref<!tpu.dma_semaphore, #tpu.memory_space<semaphore_mem>>) src(%756 : memref<1x128xf32, #tpu.memory_space<any>>) dst(%758 : memref<1x128xf32, #tpu.memory_space<vmem>>)
    %c5_i32_781 = arith.constant 5 : i32
    %c5_i32_782 = arith.constant 5 : i32
    %c4_i32_783 = arith.constant 4 : i32
    %c0_i32_784 = arith.constant 0 : i32
    %761 = tpu.memref_slice %arg2[%336, %c0_i32_784] : memref<256x128xf32, #tpu.memory_space<any>> -> memref<1x128xf32, #tpu.memory_space<any>>
    %c4_i32_785 = arith.constant 4 : i32
    %c0_i32_786 = arith.constant 0 : i32
    %762 = tpu.memref_slice %arg4[%c5_i32_781, %c4_i32_785, %c0_i32_786] : memref<8x8x128xf32, #tpu.memory_space<vmem>> -> memref<1x1x128xf32, #tpu.memory_space<vmem>>
    %763 = tpu.memref_squeeze %762 : memref<1x1x128xf32, #tpu.memory_space<vmem>> -> memref<1x128xf32, #tpu.memory_space<vmem>>
    %764 = tpu.memref_slice %arg5[%c5_i32_782, %c4_i32_783] : memref<8x8x!tpu.dma_semaphore, #tpu.memory_space<semaphore_mem>> -> memref<1x1x!tpu.dma_semaphore, #tpu.memory_space<semaphore_mem>>
    %765 = tpu.memref_squeeze %764 : memref<1x1x!tpu.dma_semaphore, #tpu.memory_space<semaphore_mem>> -> memref<!tpu.dma_semaphore, #tpu.memory_space<semaphore_mem>>
    tpu.wait_dma2 semaphore(%765 : memref<!tpu.dma_semaphore, #tpu.memory_space<semaphore_mem>>) src(%761 : memref<1x128xf32, #tpu.memory_space<any>>) dst(%763 : memref<1x128xf32, #tpu.memory_space<vmem>>)
    %c6_i32_787 = arith.constant 6 : i32
    %c6_i32_788 = arith.constant 6 : i32
    %c4_i32_789 = arith.constant 4 : i32
    %c0_i32_790 = arith.constant 0 : i32
    %766 = tpu.memref_slice %arg2[%345, %c0_i32_790] : memref<256x128xf32, #tpu.memory_space<any>> -> memref<1x128xf32, #tpu.memory_space<any>>
    %c4_i32_791 = arith.constant 4 : i32
    %c0_i32_792 = arith.constant 0 : i32
    %767 = tpu.memref_slice %arg4[%c6_i32_787, %c4_i32_791, %c0_i32_792] : memref<8x8x128xf32, #tpu.memory_space<vmem>> -> memref<1x1x128xf32, #tpu.memory_space<vmem>>
    %768 = tpu.memref_squeeze %767 : memref<1x1x128xf32, #tpu.memory_space<vmem>> -> memref<1x128xf32, #tpu.memory_space<vmem>>
    %769 = tpu.memref_slice %arg5[%c6_i32_788, %c4_i32_789] : memref<8x8x!tpu.dma_semaphore, #tpu.memory_space<semaphore_mem>> -> memref<1x1x!tpu.dma_semaphore, #tpu.memory_space<semaphore_mem>>
    %770 = tpu.memref_squeeze %769 : memref<1x1x!tpu.dma_semaphore, #tpu.memory_space<semaphore_mem>> -> memref<!tpu.dma_semaphore, #tpu.memory_space<semaphore_mem>>
    tpu.wait_dma2 semaphore(%770 : memref<!tpu.dma_semaphore, #tpu.memory_space<semaphore_mem>>) src(%766 : memref<1x128xf32, #tpu.memory_space<any>>) dst(%768 : memref<1x128xf32, #tpu.memory_space<vmem>>)
    %c7_i32_793 = arith.constant 7 : i32
    %c7_i32_794 = arith.constant 7 : i32
    %c4_i32_795 = arith.constant 4 : i32
    %c0_i32_796 = arith.constant 0 : i32
    %771 = tpu.memref_slice %arg2[%354, %c0_i32_796] : memref<256x128xf32, #tpu.memory_space<any>> -> memref<1x128xf32, #tpu.memory_space<any>>
    %c4_i32_797 = arith.constant 4 : i32
    %c0_i32_798 = arith.constant 0 : i32
    %772 = tpu.memref_slice %arg4[%c7_i32_793, %c4_i32_797, %c0_i32_798] : memref<8x8x128xf32, #tpu.memory_space<vmem>> -> memref<1x1x128xf32, #tpu.memory_space<vmem>>
    %773 = tpu.memref_squeeze %772 : memref<1x1x128xf32, #tpu.memory_space<vmem>> -> memref<1x128xf32, #tpu.memory_space<vmem>>
    %774 = tpu.memref_slice %arg5[%c7_i32_794, %c4_i32_795] : memref<8x8x!tpu.dma_semaphore, #tpu.memory_space<semaphore_mem>> -> memref<1x1x!tpu.dma_semaphore, #tpu.memory_space<semaphore_mem>>
    %775 = tpu.memref_squeeze %774 : memref<1x1x!tpu.dma_semaphore, #tpu.memory_space<semaphore_mem>> -> memref<!tpu.dma_semaphore, #tpu.memory_space<semaphore_mem>>
    tpu.wait_dma2 semaphore(%775 : memref<!tpu.dma_semaphore, #tpu.memory_space<semaphore_mem>>) src(%771 : memref<1x128xf32, #tpu.memory_space<any>>) dst(%773 : memref<1x128xf32, #tpu.memory_space<vmem>>)
    %c0_i32_799 = arith.constant 0 : i32
    %c0_i32_800 = arith.constant 0 : i32
    %c5_i32_801 = arith.constant 5 : i32
    %c0_i32_802 = arith.constant 0 : i32
    %776 = tpu.memref_slice %arg2[%363, %c0_i32_802] : memref<256x128xf32, #tpu.memory_space<any>> -> memref<1x128xf32, #tpu.memory_space<any>>
    %c5_i32_803 = arith.constant 5 : i32
    %c0_i32_804 = arith.constant 0 : i32
    %777 = tpu.memref_slice %arg4[%c0_i32_799, %c5_i32_803, %c0_i32_804] : memref<8x8x128xf32, #tpu.memory_space<vmem>> -> memref<1x1x128xf32, #tpu.memory_space<vmem>>
    %778 = tpu.memref_squeeze %777 : memref<1x1x128xf32, #tpu.memory_space<vmem>> -> memref<1x128xf32, #tpu.memory_space<vmem>>
    %779 = tpu.memref_slice %arg5[%c0_i32_800, %c5_i32_801] : memref<8x8x!tpu.dma_semaphore, #tpu.memory_space<semaphore_mem>> -> memref<1x1x!tpu.dma_semaphore, #tpu.memory_space<semaphore_mem>>
    %780 = tpu.memref_squeeze %779 : memref<1x1x!tpu.dma_semaphore, #tpu.memory_space<semaphore_mem>> -> memref<!tpu.dma_semaphore, #tpu.memory_space<semaphore_mem>>
    tpu.wait_dma2 semaphore(%780 : memref<!tpu.dma_semaphore, #tpu.memory_space<semaphore_mem>>) src(%776 : memref<1x128xf32, #tpu.memory_space<any>>) dst(%778 : memref<1x128xf32, #tpu.memory_space<vmem>>)
    %c1_i32_805 = arith.constant 1 : i32
    %c1_i32_806 = arith.constant 1 : i32
    %c5_i32_807 = arith.constant 5 : i32
    %c0_i32_808 = arith.constant 0 : i32
    %781 = tpu.memref_slice %arg2[%372, %c0_i32_808] : memref<256x128xf32, #tpu.memory_space<any>> -> memref<1x128xf32, #tpu.memory_space<any>>
    %c5_i32_809 = arith.constant 5 : i32
    %c0_i32_810 = arith.constant 0 : i32
    %782 = tpu.memref_slice %arg4[%c1_i32_805, %c5_i32_809, %c0_i32_810] : memref<8x8x128xf32, #tpu.memory_space<vmem>> -> memref<1x1x128xf32, #tpu.memory_space<vmem>>
    %783 = tpu.memref_squeeze %782 : memref<1x1x128xf32, #tpu.memory_space<vmem>> -> memref<1x128xf32, #tpu.memory_space<vmem>>
    %784 = tpu.memref_slice %arg5[%c1_i32_806, %c5_i32_807] : memref<8x8x!tpu.dma_semaphore, #tpu.memory_space<semaphore_mem>> -> memref<1x1x!tpu.dma_semaphore, #tpu.memory_space<semaphore_mem>>
    %785 = tpu.memref_squeeze %784 : memref<1x1x!tpu.dma_semaphore, #tpu.memory_space<semaphore_mem>> -> memref<!tpu.dma_semaphore, #tpu.memory_space<semaphore_mem>>
    tpu.wait_dma2 semaphore(%785 : memref<!tpu.dma_semaphore, #tpu.memory_space<semaphore_mem>>) src(%781 : memref<1x128xf32, #tpu.memory_space<any>>) dst(%783 : memref<1x128xf32, #tpu.memory_space<vmem>>)
    %c2_i32_811 = arith.constant 2 : i32
    %c2_i32_812 = arith.constant 2 : i32
    %c5_i32_813 = arith.constant 5 : i32
    %c0_i32_814 = arith.constant 0 : i32
    %786 = tpu.memref_slice %arg2[%381, %c0_i32_814] : memref<256x128xf32, #tpu.memory_space<any>> -> memref<1x128xf32, #tpu.memory_space<any>>
    %c5_i32_815 = arith.constant 5 : i32
    %c0_i32_816 = arith.constant 0 : i32
    %787 = tpu.memref_slice %arg4[%c2_i32_811, %c5_i32_815, %c0_i32_816] : memref<8x8x128xf32, #tpu.memory_space<vmem>> -> memref<1x1x128xf32, #tpu.memory_space<vmem>>
    %788 = tpu.memref_squeeze %787 : memref<1x1x128xf32, #tpu.memory_space<vmem>> -> memref<1x128xf32, #tpu.memory_space<vmem>>
    %789 = tpu.memref_slice %arg5[%c2_i32_812, %c5_i32_813] : memref<8x8x!tpu.dma_semaphore, #tpu.memory_space<semaphore_mem>> -> memref<1x1x!tpu.dma_semaphore, #tpu.memory_space<semaphore_mem>>
    %790 = tpu.memref_squeeze %789 : memref<1x1x!tpu.dma_semaphore, #tpu.memory_space<semaphore_mem>> -> memref<!tpu.dma_semaphore, #tpu.memory_space<semaphore_mem>>
    tpu.wait_dma2 semaphore(%790 : memref<!tpu.dma_semaphore, #tpu.memory_space<semaphore_mem>>) src(%786 : memref<1x128xf32, #tpu.memory_space<any>>) dst(%788 : memref<1x128xf32, #tpu.memory_space<vmem>>)
    %c3_i32_817 = arith.constant 3 : i32
    %c3_i32_818 = arith.constant 3 : i32
    %c5_i32_819 = arith.constant 5 : i32
    %c0_i32_820 = arith.constant 0 : i32
    %791 = tpu.memref_slice %arg2[%390, %c0_i32_820] : memref<256x128xf32, #tpu.memory_space<any>> -> memref<1x128xf32, #tpu.memory_space<any>>
    %c5_i32_821 = arith.constant 5 : i32
    %c0_i32_822 = arith.constant 0 : i32
    %792 = tpu.memref_slice %arg4[%c3_i32_817, %c5_i32_821, %c0_i32_822] : memref<8x8x128xf32, #tpu.memory_space<vmem>> -> memref<1x1x128xf32, #tpu.memory_space<vmem>>
    %793 = tpu.memref_squeeze %792 : memref<1x1x128xf32, #tpu.memory_space<vmem>> -> memref<1x128xf32, #tpu.memory_space<vmem>>
    %794 = tpu.memref_slice %arg5[%c3_i32_818, %c5_i32_819] : memref<8x8x!tpu.dma_semaphore, #tpu.memory_space<semaphore_mem>> -> memref<1x1x!tpu.dma_semaphore, #tpu.memory_space<semaphore_mem>>
    %795 = tpu.memref_squeeze %794 : memref<1x1x!tpu.dma_semaphore, #tpu.memory_space<semaphore_mem>> -> memref<!tpu.dma_semaphore, #tpu.memory_space<semaphore_mem>>
    tpu.wait_dma2 semaphore(%795 : memref<!tpu.dma_semaphore, #tpu.memory_space<semaphore_mem>>) src(%791 : memref<1x128xf32, #tpu.memory_space<any>>) dst(%793 : memref<1x128xf32, #tpu.memory_space<vmem>>)
    %c4_i32_823 = arith.constant 4 : i32
    %c4_i32_824 = arith.constant 4 : i32
    %c5_i32_825 = arith.constant 5 : i32
    %c0_i32_826 = arith.constant 0 : i32
    %796 = tpu.memref_slice %arg2[%399, %c0_i32_826] : memref<256x128xf32, #tpu.memory_space<any>> -> memref<1x128xf32, #tpu.memory_space<any>>
    %c5_i32_827 = arith.constant 5 : i32
    %c0_i32_828 = arith.constant 0 : i32
    %797 = tpu.memref_slice %arg4[%c4_i32_823, %c5_i32_827, %c0_i32_828] : memref<8x8x128xf32, #tpu.memory_space<vmem>> -> memref<1x1x128xf32, #tpu.memory_space<vmem>>
    %798 = tpu.memref_squeeze %797 : memref<1x1x128xf32, #tpu.memory_space<vmem>> -> memref<1x128xf32, #tpu.memory_space<vmem>>
    %799 = tpu.memref_slice %arg5[%c4_i32_824, %c5_i32_825] : memref<8x8x!tpu.dma_semaphore, #tpu.memory_space<semaphore_mem>> -> memref<1x1x!tpu.dma_semaphore, #tpu.memory_space<semaphore_mem>>
    %800 = tpu.memref_squeeze %799 : memref<1x1x!tpu.dma_semaphore, #tpu.memory_space<semaphore_mem>> -> memref<!tpu.dma_semaphore, #tpu.memory_space<semaphore_mem>>
    tpu.wait_dma2 semaphore(%800 : memref<!tpu.dma_semaphore, #tpu.memory_space<semaphore_mem>>) src(%796 : memref<1x128xf32, #tpu.memory_space<any>>) dst(%798 : memref<1x128xf32, #tpu.memory_space<vmem>>)
    %c5_i32_829 = arith.constant 5 : i32
    %c5_i32_830 = arith.constant 5 : i32
    %c5_i32_831 = arith.constant 5 : i32
    %c0_i32_832 = arith.constant 0 : i32
    %801 = tpu.memref_slice %arg2[%408, %c0_i32_832] : memref<256x128xf32, #tpu.memory_space<any>> -> memref<1x128xf32, #tpu.memory_space<any>>
    %c5_i32_833 = arith.constant 5 : i32
    %c0_i32_834 = arith.constant 0 : i32
    %802 = tpu.memref_slice %arg4[%c5_i32_829, %c5_i32_833, %c0_i32_834] : memref<8x8x128xf32, #tpu.memory_space<vmem>> -> memref<1x1x128xf32, #tpu.memory_space<vmem>>
    %803 = tpu.memref_squeeze %802 : memref<1x1x128xf32, #tpu.memory_space<vmem>> -> memref<1x128xf32, #tpu.memory_space<vmem>>
    %804 = tpu.memref_slice %arg5[%c5_i32_830, %c5_i32_831] : memref<8x8x!tpu.dma_semaphore, #tpu.memory_space<semaphore_mem>> -> memref<1x1x!tpu.dma_semaphore, #tpu.memory_space<semaphore_mem>>
    %805 = tpu.memref_squeeze %804 : memref<1x1x!tpu.dma_semaphore, #tpu.memory_space<semaphore_mem>> -> memref<!tpu.dma_semaphore, #tpu.memory_space<semaphore_mem>>
    tpu.wait_dma2 semaphore(%805 : memref<!tpu.dma_semaphore, #tpu.memory_space<semaphore_mem>>) src(%801 : memref<1x128xf32, #tpu.memory_space<any>>) dst(%803 : memref<1x128xf32, #tpu.memory_space<vmem>>)
    %c6_i32_835 = arith.constant 6 : i32
    %c6_i32_836 = arith.constant 6 : i32
    %c5_i32_837 = arith.constant 5 : i32
    %c0_i32_838 = arith.constant 0 : i32
    %806 = tpu.memref_slice %arg2[%417, %c0_i32_838] : memref<256x128xf32, #tpu.memory_space<any>> -> memref<1x128xf32, #tpu.memory_space<any>>
    %c5_i32_839 = arith.constant 5 : i32
    %c0_i32_840 = arith.constant 0 : i32
    %807 = tpu.memref_slice %arg4[%c6_i32_835, %c5_i32_839, %c0_i32_840] : memref<8x8x128xf32, #tpu.memory_space<vmem>> -> memref<1x1x128xf32, #tpu.memory_space<vmem>>
    %808 = tpu.memref_squeeze %807 : memref<1x1x128xf32, #tpu.memory_space<vmem>> -> memref<1x128xf32, #tpu.memory_space<vmem>>
    %809 = tpu.memref_slice %arg5[%c6_i32_836, %c5_i32_837] : memref<8x8x!tpu.dma_semaphore, #tpu.memory_space<semaphore_mem>> -> memref<1x1x!tpu.dma_semaphore, #tpu.memory_space<semaphore_mem>>
    %810 = tpu.memref_squeeze %809 : memref<1x1x!tpu.dma_semaphore, #tpu.memory_space<semaphore_mem>> -> memref<!tpu.dma_semaphore, #tpu.memory_space<semaphore_mem>>
    tpu.wait_dma2 semaphore(%810 : memref<!tpu.dma_semaphore, #tpu.memory_space<semaphore_mem>>) src(%806 : memref<1x128xf32, #tpu.memory_space<any>>) dst(%808 : memref<1x128xf32, #tpu.memory_space<vmem>>)
    %c7_i32_841 = arith.constant 7 : i32
    %c7_i32_842 = arith.constant 7 : i32
    %c5_i32_843 = arith.constant 5 : i32
    %c0_i32_844 = arith.constant 0 : i32
    %811 = tpu.memref_slice %arg2[%426, %c0_i32_844] : memref<256x128xf32, #tpu.memory_space<any>> -> memref<1x128xf32, #tpu.memory_space<any>>
    %c5_i32_845 = arith.constant 5 : i32
    %c0_i32_846 = arith.constant 0 : i32
    %812 = tpu.memref_slice %arg4[%c7_i32_841, %c5_i32_845, %c0_i32_846] : memref<8x8x128xf32, #tpu.memory_space<vmem>> -> memref<1x1x128xf32, #tpu.memory_space<vmem>>
    %813 = tpu.memref_squeeze %812 : memref<1x1x128xf32, #tpu.memory_space<vmem>> -> memref<1x128xf32, #tpu.memory_space<vmem>>
    %814 = tpu.memref_slice %arg5[%c7_i32_842, %c5_i32_843] : memref<8x8x!tpu.dma_semaphore, #tpu.memory_space<semaphore_mem>> -> memref<1x1x!tpu.dma_semaphore, #tpu.memory_space<semaphore_mem>>
    %815 = tpu.memref_squeeze %814 : memref<1x1x!tpu.dma_semaphore, #tpu.memory_space<semaphore_mem>> -> memref<!tpu.dma_semaphore, #tpu.memory_space<semaphore_mem>>
    tpu.wait_dma2 semaphore(%815 : memref<!tpu.dma_semaphore, #tpu.memory_space<semaphore_mem>>) src(%811 : memref<1x128xf32, #tpu.memory_space<any>>) dst(%813 : memref<1x128xf32, #tpu.memory_space<vmem>>)
    %c0_i32_847 = arith.constant 0 : i32
    %c0_i32_848 = arith.constant 0 : i32
    %c6_i32_849 = arith.constant 6 : i32
    %c0_i32_850 = arith.constant 0 : i32
    %816 = tpu.memref_slice %arg2[%435, %c0_i32_850] : memref<256x128xf32, #tpu.memory_space<any>> -> memref<1x128xf32, #tpu.memory_space<any>>
    %c6_i32_851 = arith.constant 6 : i32
    %c0_i32_852 = arith.constant 0 : i32
    %817 = tpu.memref_slice %arg4[%c0_i32_847, %c6_i32_851, %c0_i32_852] : memref<8x8x128xf32, #tpu.memory_space<vmem>> -> memref<1x1x128xf32, #tpu.memory_space<vmem>>
    %818 = tpu.memref_squeeze %817 : memref<1x1x128xf32, #tpu.memory_space<vmem>> -> memref<1x128xf32, #tpu.memory_space<vmem>>
    %819 = tpu.memref_slice %arg5[%c0_i32_848, %c6_i32_849] : memref<8x8x!tpu.dma_semaphore, #tpu.memory_space<semaphore_mem>> -> memref<1x1x!tpu.dma_semaphore, #tpu.memory_space<semaphore_mem>>
    %820 = tpu.memref_squeeze %819 : memref<1x1x!tpu.dma_semaphore, #tpu.memory_space<semaphore_mem>> -> memref<!tpu.dma_semaphore, #tpu.memory_space<semaphore_mem>>
    tpu.wait_dma2 semaphore(%820 : memref<!tpu.dma_semaphore, #tpu.memory_space<semaphore_mem>>) src(%816 : memref<1x128xf32, #tpu.memory_space<any>>) dst(%818 : memref<1x128xf32, #tpu.memory_space<vmem>>)
    %c1_i32_853 = arith.constant 1 : i32
    %c1_i32_854 = arith.constant 1 : i32
    %c6_i32_855 = arith.constant 6 : i32
    %c0_i32_856 = arith.constant 0 : i32
    %821 = tpu.memref_slice %arg2[%444, %c0_i32_856] : memref<256x128xf32, #tpu.memory_space<any>> -> memref<1x128xf32, #tpu.memory_space<any>>
    %c6_i32_857 = arith.constant 6 : i32
    %c0_i32_858 = arith.constant 0 : i32
    %822 = tpu.memref_slice %arg4[%c1_i32_853, %c6_i32_857, %c0_i32_858] : memref<8x8x128xf32, #tpu.memory_space<vmem>> -> memref<1x1x128xf32, #tpu.memory_space<vmem>>
    %823 = tpu.memref_squeeze %822 : memref<1x1x128xf32, #tpu.memory_space<vmem>> -> memref<1x128xf32, #tpu.memory_space<vmem>>
    %824 = tpu.memref_slice %arg5[%c1_i32_854, %c6_i32_855] : memref<8x8x!tpu.dma_semaphore, #tpu.memory_space<semaphore_mem>> -> memref<1x1x!tpu.dma_semaphore, #tpu.memory_space<semaphore_mem>>
    %825 = tpu.memref_squeeze %824 : memref<1x1x!tpu.dma_semaphore, #tpu.memory_space<semaphore_mem>> -> memref<!tpu.dma_semaphore, #tpu.memory_space<semaphore_mem>>
    tpu.wait_dma2 semaphore(%825 : memref<!tpu.dma_semaphore, #tpu.memory_space<semaphore_mem>>) src(%821 : memref<1x128xf32, #tpu.memory_space<any>>) dst(%823 : memref<1x128xf32, #tpu.memory_space<vmem>>)
    %c2_i32_859 = arith.constant 2 : i32
    %c2_i32_860 = arith.constant 2 : i32
    %c6_i32_861 = arith.constant 6 : i32
    %c0_i32_862 = arith.constant 0 : i32
    %826 = tpu.memref_slice %arg2[%453, %c0_i32_862] : memref<256x128xf32, #tpu.memory_space<any>> -> memref<1x128xf32, #tpu.memory_space<any>>
    %c6_i32_863 = arith.constant 6 : i32
    %c0_i32_864 = arith.constant 0 : i32
    %827 = tpu.memref_slice %arg4[%c2_i32_859, %c6_i32_863, %c0_i32_864] : memref<8x8x128xf32, #tpu.memory_space<vmem>> -> memref<1x1x128xf32, #tpu.memory_space<vmem>>
    %828 = tpu.memref_squeeze %827 : memref<1x1x128xf32, #tpu.memory_space<vmem>> -> memref<1x128xf32, #tpu.memory_space<vmem>>
    %829 = tpu.memref_slice %arg5[%c2_i32_860, %c6_i32_861] : memref<8x8x!tpu.dma_semaphore, #tpu.memory_space<semaphore_mem>> -> memref<1x1x!tpu.dma_semaphore, #tpu.memory_space<semaphore_mem>>
    %830 = tpu.memref_squeeze %829 : memref<1x1x!tpu.dma_semaphore, #tpu.memory_space<semaphore_mem>> -> memref<!tpu.dma_semaphore, #tpu.memory_space<semaphore_mem>>
    tpu.wait_dma2 semaphore(%830 : memref<!tpu.dma_semaphore, #tpu.memory_space<semaphore_mem>>) src(%826 : memref<1x128xf32, #tpu.memory_space<any>>) dst(%828 : memref<1x128xf32, #tpu.memory_space<vmem>>)
    %c3_i32_865 = arith.constant 3 : i32
    %c3_i32_866 = arith.constant 3 : i32
    %c6_i32_867 = arith.constant 6 : i32
    %c0_i32_868 = arith.constant 0 : i32
    %831 = tpu.memref_slice %arg2[%462, %c0_i32_868] : memref<256x128xf32, #tpu.memory_space<any>> -> memref<1x128xf32, #tpu.memory_space<any>>
    %c6_i32_869 = arith.constant 6 : i32
    %c0_i32_870 = arith.constant 0 : i32
    %832 = tpu.memref_slice %arg4[%c3_i32_865, %c6_i32_869, %c0_i32_870] : memref<8x8x128xf32, #tpu.memory_space<vmem>> -> memref<1x1x128xf32, #tpu.memory_space<vmem>>
    %833 = tpu.memref_squeeze %832 : memref<1x1x128xf32, #tpu.memory_space<vmem>> -> memref<1x128xf32, #tpu.memory_space<vmem>>
    %834 = tpu.memref_slice %arg5[%c3_i32_866, %c6_i32_867] : memref<8x8x!tpu.dma_semaphore, #tpu.memory_space<semaphore_mem>> -> memref<1x1x!tpu.dma_semaphore, #tpu.memory_space<semaphore_mem>>
    %835 = tpu.memref_squeeze %834 : memref<1x1x!tpu.dma_semaphore, #tpu.memory_space<semaphore_mem>> -> memref<!tpu.dma_semaphore, #tpu.memory_space<semaphore_mem>>
    tpu.wait_dma2 semaphore(%835 : memref<!tpu.dma_semaphore, #tpu.memory_space<semaphore_mem>>) src(%831 : memref<1x128xf32, #tpu.memory_space<any>>) dst(%833 : memref<1x128xf32, #tpu.memory_space<vmem>>)
    %c4_i32_871 = arith.constant 4 : i32
    %c4_i32_872 = arith.constant 4 : i32
    %c6_i32_873 = arith.constant 6 : i32
    %c0_i32_874 = arith.constant 0 : i32
    %836 = tpu.memref_slice %arg2[%471, %c0_i32_874] : memref<256x128xf32, #tpu.memory_space<any>> -> memref<1x128xf32, #tpu.memory_space<any>>
    %c6_i32_875 = arith.constant 6 : i32
    %c0_i32_876 = arith.constant 0 : i32
    %837 = tpu.memref_slice %arg4[%c4_i32_871, %c6_i32_875, %c0_i32_876] : memref<8x8x128xf32, #tpu.memory_space<vmem>> -> memref<1x1x128xf32, #tpu.memory_space<vmem>>
    %838 = tpu.memref_squeeze %837 : memref<1x1x128xf32, #tpu.memory_space<vmem>> -> memref<1x128xf32, #tpu.memory_space<vmem>>
    %839 = tpu.memref_slice %arg5[%c4_i32_872, %c6_i32_873] : memref<8x8x!tpu.dma_semaphore, #tpu.memory_space<semaphore_mem>> -> memref<1x1x!tpu.dma_semaphore, #tpu.memory_space<semaphore_mem>>
    %840 = tpu.memref_squeeze %839 : memref<1x1x!tpu.dma_semaphore, #tpu.memory_space<semaphore_mem>> -> memref<!tpu.dma_semaphore, #tpu.memory_space<semaphore_mem>>
    tpu.wait_dma2 semaphore(%840 : memref<!tpu.dma_semaphore, #tpu.memory_space<semaphore_mem>>) src(%836 : memref<1x128xf32, #tpu.memory_space<any>>) dst(%838 : memref<1x128xf32, #tpu.memory_space<vmem>>)
    %c5_i32_877 = arith.constant 5 : i32
    %c5_i32_878 = arith.constant 5 : i32
    %c6_i32_879 = arith.constant 6 : i32
    %c0_i32_880 = arith.constant 0 : i32
    %841 = tpu.memref_slice %arg2[%480, %c0_i32_880] : memref<256x128xf32, #tpu.memory_space<any>> -> memref<1x128xf32, #tpu.memory_space<any>>
    %c6_i32_881 = arith.constant 6 : i32
    %c0_i32_882 = arith.constant 0 : i32
    %842 = tpu.memref_slice %arg4[%c5_i32_877, %c6_i32_881, %c0_i32_882] : memref<8x8x128xf32, #tpu.memory_space<vmem>> -> memref<1x1x128xf32, #tpu.memory_space<vmem>>
    %843 = tpu.memref_squeeze %842 : memref<1x1x128xf32, #tpu.memory_space<vmem>> -> memref<1x128xf32, #tpu.memory_space<vmem>>
    %844 = tpu.memref_slice %arg5[%c5_i32_878, %c6_i32_879] : memref<8x8x!tpu.dma_semaphore, #tpu.memory_space<semaphore_mem>> -> memref<1x1x!tpu.dma_semaphore, #tpu.memory_space<semaphore_mem>>
    %845 = tpu.memref_squeeze %844 : memref<1x1x!tpu.dma_semaphore, #tpu.memory_space<semaphore_mem>> -> memref<!tpu.dma_semaphore, #tpu.memory_space<semaphore_mem>>
    tpu.wait_dma2 semaphore(%845 : memref<!tpu.dma_semaphore, #tpu.memory_space<semaphore_mem>>) src(%841 : memref<1x128xf32, #tpu.memory_space<any>>) dst(%843 : memref<1x128xf32, #tpu.memory_space<vmem>>)
    %c6_i32_883 = arith.constant 6 : i32
    %c6_i32_884 = arith.constant 6 : i32
    %c6_i32_885 = arith.constant 6 : i32
    %c0_i32_886 = arith.constant 0 : i32
    %846 = tpu.memref_slice %arg2[%489, %c0_i32_886] : memref<256x128xf32, #tpu.memory_space<any>> -> memref<1x128xf32, #tpu.memory_space<any>>
    %c6_i32_887 = arith.constant 6 : i32
    %c0_i32_888 = arith.constant 0 : i32
    %847 = tpu.memref_slice %arg4[%c6_i32_883, %c6_i32_887, %c0_i32_888] : memref<8x8x128xf32, #tpu.memory_space<vmem>> -> memref<1x1x128xf32, #tpu.memory_space<vmem>>
    %848 = tpu.memref_squeeze %847 : memref<1x1x128xf32, #tpu.memory_space<vmem>> -> memref<1x128xf32, #tpu.memory_space<vmem>>
    %849 = tpu.memref_slice %arg5[%c6_i32_884, %c6_i32_885] : memref<8x8x!tpu.dma_semaphore, #tpu.memory_space<semaphore_mem>> -> memref<1x1x!tpu.dma_semaphore, #tpu.memory_space<semaphore_mem>>
    %850 = tpu.memref_squeeze %849 : memref<1x1x!tpu.dma_semaphore, #tpu.memory_space<semaphore_mem>> -> memref<!tpu.dma_semaphore, #tpu.memory_space<semaphore_mem>>
    tpu.wait_dma2 semaphore(%850 : memref<!tpu.dma_semaphore, #tpu.memory_space<semaphore_mem>>) src(%846 : memref<1x128xf32, #tpu.memory_space<any>>) dst(%848 : memref<1x128xf32, #tpu.memory_space<vmem>>)
    %c7_i32_889 = arith.constant 7 : i32
    %c7_i32_890 = arith.constant 7 : i32
    %c6_i32_891 = arith.constant 6 : i32
    %c0_i32_892 = arith.constant 0 : i32
    %851 = tpu.memref_slice %arg2[%498, %c0_i32_892] : memref<256x128xf32, #tpu.memory_space<any>> -> memref<1x128xf32, #tpu.memory_space<any>>
    %c6_i32_893 = arith.constant 6 : i32
    %c0_i32_894 = arith.constant 0 : i32
    %852 = tpu.memref_slice %arg4[%c7_i32_889, %c6_i32_893, %c0_i32_894] : memref<8x8x128xf32, #tpu.memory_space<vmem>> -> memref<1x1x128xf32, #tpu.memory_space<vmem>>
    %853 = tpu.memref_squeeze %852 : memref<1x1x128xf32, #tpu.memory_space<vmem>> -> memref<1x128xf32, #tpu.memory_space<vmem>>
    %854 = tpu.memref_slice %arg5[%c7_i32_890, %c6_i32_891] : memref<8x8x!tpu.dma_semaphore, #tpu.memory_space<semaphore_mem>> -> memref<1x1x!tpu.dma_semaphore, #tpu.memory_space<semaphore_mem>>
    %855 = tpu.memref_squeeze %854 : memref<1x1x!tpu.dma_semaphore, #tpu.memory_space<semaphore_mem>> -> memref<!tpu.dma_semaphore, #tpu.memory_space<semaphore_mem>>
    tpu.wait_dma2 semaphore(%855 : memref<!tpu.dma_semaphore, #tpu.memory_space<semaphore_mem>>) src(%851 : memref<1x128xf32, #tpu.memory_space<any>>) dst(%853 : memref<1x128xf32, #tpu.memory_space<vmem>>)
    %c0_i32_895 = arith.constant 0 : i32
    %c0_i32_896 = arith.constant 0 : i32
    %c7_i32_897 = arith.constant 7 : i32
    %c0_i32_898 = arith.constant 0 : i32
    %856 = tpu.memref_slice %arg2[%507, %c0_i32_898] : memref<256x128xf32, #tpu.memory_space<any>> -> memref<1x128xf32, #tpu.memory_space<any>>
    %c7_i32_899 = arith.constant 7 : i32
    %c0_i32_900 = arith.constant 0 : i32
    %857 = tpu.memref_slice %arg4[%c0_i32_895, %c7_i32_899, %c0_i32_900] : memref<8x8x128xf32, #tpu.memory_space<vmem>> -> memref<1x1x128xf32, #tpu.memory_space<vmem>>
    %858 = tpu.memref_squeeze %857 : memref<1x1x128xf32, #tpu.memory_space<vmem>> -> memref<1x128xf32, #tpu.memory_space<vmem>>
    %859 = tpu.memref_slice %arg5[%c0_i32_896, %c7_i32_897] : memref<8x8x!tpu.dma_semaphore, #tpu.memory_space<semaphore_mem>> -> memref<1x1x!tpu.dma_semaphore, #tpu.memory_space<semaphore_mem>>
    %860 = tpu.memref_squeeze %859 : memref<1x1x!tpu.dma_semaphore, #tpu.memory_space<semaphore_mem>> -> memref<!tpu.dma_semaphore, #tpu.memory_space<semaphore_mem>>
    tpu.wait_dma2 semaphore(%860 : memref<!tpu.dma_semaphore, #tpu.memory_space<semaphore_mem>>) src(%856 : memref<1x128xf32, #tpu.memory_space<any>>) dst(%858 : memref<1x128xf32, #tpu.memory_space<vmem>>)
    %c1_i32_901 = arith.constant 1 : i32
    %c1_i32_902 = arith.constant 1 : i32
    %c7_i32_903 = arith.constant 7 : i32
    %c0_i32_904 = arith.constant 0 : i32
    %861 = tpu.memref_slice %arg2[%516, %c0_i32_904] : memref<256x128xf32, #tpu.memory_space<any>> -> memref<1x128xf32, #tpu.memory_space<any>>
    %c7_i32_905 = arith.constant 7 : i32
    %c0_i32_906 = arith.constant 0 : i32
    %862 = tpu.memref_slice %arg4[%c1_i32_901, %c7_i32_905, %c0_i32_906] : memref<8x8x128xf32, #tpu.memory_space<vmem>> -> memref<1x1x128xf32, #tpu.memory_space<vmem>>
    %863 = tpu.memref_squeeze %862 : memref<1x1x128xf32, #tpu.memory_space<vmem>> -> memref<1x128xf32, #tpu.memory_space<vmem>>
    %864 = tpu.memref_slice %arg5[%c1_i32_902, %c7_i32_903] : memref<8x8x!tpu.dma_semaphore, #tpu.memory_space<semaphore_mem>> -> memref<1x1x!tpu.dma_semaphore, #tpu.memory_space<semaphore_mem>>
    %865 = tpu.memref_squeeze %864 : memref<1x1x!tpu.dma_semaphore, #tpu.memory_space<semaphore_mem>> -> memref<!tpu.dma_semaphore, #tpu.memory_space<semaphore_mem>>
    tpu.wait_dma2 semaphore(%865 : memref<!tpu.dma_semaphore, #tpu.memory_space<semaphore_mem>>) src(%861 : memref<1x128xf32, #tpu.memory_space<any>>) dst(%863 : memref<1x128xf32, #tpu.memory_space<vmem>>)
    %c2_i32_907 = arith.constant 2 : i32
    %c2_i32_908 = arith.constant 2 : i32
    %c7_i32_909 = arith.constant 7 : i32
    %c0_i32_910 = arith.constant 0 : i32
    %866 = tpu.memref_slice %arg2[%525, %c0_i32_910] : memref<256x128xf32, #tpu.memory_space<any>> -> memref<1x128xf32, #tpu.memory_space<any>>
    %c7_i32_911 = arith.constant 7 : i32
    %c0_i32_912 = arith.constant 0 : i32
    %867 = tpu.memref_slice %arg4[%c2_i32_907, %c7_i32_911, %c0_i32_912] : memref<8x8x128xf32, #tpu.memory_space<vmem>> -> memref<1x1x128xf32, #tpu.memory_space<vmem>>
    %868 = tpu.memref_squeeze %867 : memref<1x1x128xf32, #tpu.memory_space<vmem>> -> memref<1x128xf32, #tpu.memory_space<vmem>>
    %869 = tpu.memref_slice %arg5[%c2_i32_908, %c7_i32_909] : memref<8x8x!tpu.dma_semaphore, #tpu.memory_space<semaphore_mem>> -> memref<1x1x!tpu.dma_semaphore, #tpu.memory_space<semaphore_mem>>
    %870 = tpu.memref_squeeze %869 : memref<1x1x!tpu.dma_semaphore, #tpu.memory_space<semaphore_mem>> -> memref<!tpu.dma_semaphore, #tpu.memory_space<semaphore_mem>>
    tpu.wait_dma2 semaphore(%870 : memref<!tpu.dma_semaphore, #tpu.memory_space<semaphore_mem>>) src(%866 : memref<1x128xf32, #tpu.memory_space<any>>) dst(%868 : memref<1x128xf32, #tpu.memory_space<vmem>>)
    %c3_i32_913 = arith.constant 3 : i32
    %c3_i32_914 = arith.constant 3 : i32
    %c7_i32_915 = arith.constant 7 : i32
    %c0_i32_916 = arith.constant 0 : i32
    %871 = tpu.memref_slice %arg2[%534, %c0_i32_916] : memref<256x128xf32, #tpu.memory_space<any>> -> memref<1x128xf32, #tpu.memory_space<any>>
    %c7_i32_917 = arith.constant 7 : i32
    %c0_i32_918 = arith.constant 0 : i32
    %872 = tpu.memref_slice %arg4[%c3_i32_913, %c7_i32_917, %c0_i32_918] : memref<8x8x128xf32, #tpu.memory_space<vmem>> -> memref<1x1x128xf32, #tpu.memory_space<vmem>>
    %873 = tpu.memref_squeeze %872 : memref<1x1x128xf32, #tpu.memory_space<vmem>> -> memref<1x128xf32, #tpu.memory_space<vmem>>
    %874 = tpu.memref_slice %arg5[%c3_i32_914, %c7_i32_915] : memref<8x8x!tpu.dma_semaphore, #tpu.memory_space<semaphore_mem>> -> memref<1x1x!tpu.dma_semaphore, #tpu.memory_space<semaphore_mem>>
    %875 = tpu.memref_squeeze %874 : memref<1x1x!tpu.dma_semaphore, #tpu.memory_space<semaphore_mem>> -> memref<!tpu.dma_semaphore, #tpu.memory_space<semaphore_mem>>
    tpu.wait_dma2 semaphore(%875 : memref<!tpu.dma_semaphore, #tpu.memory_space<semaphore_mem>>) src(%871 : memref<1x128xf32, #tpu.memory_space<any>>) dst(%873 : memref<1x128xf32, #tpu.memory_space<vmem>>)
    %c4_i32_919 = arith.constant 4 : i32
    %c4_i32_920 = arith.constant 4 : i32
    %c7_i32_921 = arith.constant 7 : i32
    %c0_i32_922 = arith.constant 0 : i32
    %876 = tpu.memref_slice %arg2[%543, %c0_i32_922] : memref<256x128xf32, #tpu.memory_space<any>> -> memref<1x128xf32, #tpu.memory_space<any>>
    %c7_i32_923 = arith.constant 7 : i32
    %c0_i32_924 = arith.constant 0 : i32
    %877 = tpu.memref_slice %arg4[%c4_i32_919, %c7_i32_923, %c0_i32_924] : memref<8x8x128xf32, #tpu.memory_space<vmem>> -> memref<1x1x128xf32, #tpu.memory_space<vmem>>
    %878 = tpu.memref_squeeze %877 : memref<1x1x128xf32, #tpu.memory_space<vmem>> -> memref<1x128xf32, #tpu.memory_space<vmem>>
    %879 = tpu.memref_slice %arg5[%c4_i32_920, %c7_i32_921] : memref<8x8x!tpu.dma_semaphore, #tpu.memory_space<semaphore_mem>> -> memref<1x1x!tpu.dma_semaphore, #tpu.memory_space<semaphore_mem>>
    %880 = tpu.memref_squeeze %879 : memref<1x1x!tpu.dma_semaphore, #tpu.memory_space<semaphore_mem>> -> memref<!tpu.dma_semaphore, #tpu.memory_space<semaphore_mem>>
    tpu.wait_dma2 semaphore(%880 : memref<!tpu.dma_semaphore, #tpu.memory_space<semaphore_mem>>) src(%876 : memref<1x128xf32, #tpu.memory_space<any>>) dst(%878 : memref<1x128xf32, #tpu.memory_space<vmem>>)
    %c5_i32_925 = arith.constant 5 : i32
    %c5_i32_926 = arith.constant 5 : i32
    %c7_i32_927 = arith.constant 7 : i32
    %c0_i32_928 = arith.constant 0 : i32
    %881 = tpu.memref_slice %arg2[%552, %c0_i32_928] : memref<256x128xf32, #tpu.memory_space<any>> -> memref<1x128xf32, #tpu.memory_space<any>>
    %c7_i32_929 = arith.constant 7 : i32
    %c0_i32_930 = arith.constant 0 : i32
    %882 = tpu.memref_slice %arg4[%c5_i32_925, %c7_i32_929, %c0_i32_930] : memref<8x8x128xf32, #tpu.memory_space<vmem>> -> memref<1x1x128xf32, #tpu.memory_space<vmem>>
    %883 = tpu.memref_squeeze %882 : memref<1x1x128xf32, #tpu.memory_space<vmem>> -> memref<1x128xf32, #tpu.memory_space<vmem>>
    %884 = tpu.memref_slice %arg5[%c5_i32_926, %c7_i32_927] : memref<8x8x!tpu.dma_semaphore, #tpu.memory_space<semaphore_mem>> -> memref<1x1x!tpu.dma_semaphore, #tpu.memory_space<semaphore_mem>>
    %885 = tpu.memref_squeeze %884 : memref<1x1x!tpu.dma_semaphore, #tpu.memory_space<semaphore_mem>> -> memref<!tpu.dma_semaphore, #tpu.memory_space<semaphore_mem>>
    tpu.wait_dma2 semaphore(%885 : memref<!tpu.dma_semaphore, #tpu.memory_space<semaphore_mem>>) src(%881 : memref<1x128xf32, #tpu.memory_space<any>>) dst(%883 : memref<1x128xf32, #tpu.memory_space<vmem>>)
    %c6_i32_931 = arith.constant 6 : i32
    %c6_i32_932 = arith.constant 6 : i32
    %c7_i32_933 = arith.constant 7 : i32
    %c0_i32_934 = arith.constant 0 : i32
    %886 = tpu.memref_slice %arg2[%561, %c0_i32_934] : memref<256x128xf32, #tpu.memory_space<any>> -> memref<1x128xf32, #tpu.memory_space<any>>
    %c7_i32_935 = arith.constant 7 : i32
    %c0_i32_936 = arith.constant 0 : i32
    %887 = tpu.memref_slice %arg4[%c6_i32_931, %c7_i32_935, %c0_i32_936] : memref<8x8x128xf32, #tpu.memory_space<vmem>> -> memref<1x1x128xf32, #tpu.memory_space<vmem>>
    %888 = tpu.memref_squeeze %887 : memref<1x1x128xf32, #tpu.memory_space<vmem>> -> memref<1x128xf32, #tpu.memory_space<vmem>>
    %889 = tpu.memref_slice %arg5[%c6_i32_932, %c7_i32_933] : memref<8x8x!tpu.dma_semaphore, #tpu.memory_space<semaphore_mem>> -> memref<1x1x!tpu.dma_semaphore, #tpu.memory_space<semaphore_mem>>
    %890 = tpu.memref_squeeze %889 : memref<1x1x!tpu.dma_semaphore, #tpu.memory_space<semaphore_mem>> -> memref<!tpu.dma_semaphore, #tpu.memory_space<semaphore_mem>>
    tpu.wait_dma2 semaphore(%890 : memref<!tpu.dma_semaphore, #tpu.memory_space<semaphore_mem>>) src(%886 : memref<1x128xf32, #tpu.memory_space<any>>) dst(%888 : memref<1x128xf32, #tpu.memory_space<vmem>>)
    %c7_i32_937 = arith.constant 7 : i32
    %c7_i32_938 = arith.constant 7 : i32
    %c7_i32_939 = arith.constant 7 : i32
    %c0_i32_940 = arith.constant 0 : i32
    %891 = tpu.memref_slice %arg2[%570, %c0_i32_940] : memref<256x128xf32, #tpu.memory_space<any>> -> memref<1x128xf32, #tpu.memory_space<any>>
    %c7_i32_941 = arith.constant 7 : i32
    %c0_i32_942 = arith.constant 0 : i32
    %892 = tpu.memref_slice %arg4[%c7_i32_937, %c7_i32_941, %c0_i32_942] : memref<8x8x128xf32, #tpu.memory_space<vmem>> -> memref<1x1x128xf32, #tpu.memory_space<vmem>>
    %893 = tpu.memref_squeeze %892 : memref<1x1x128xf32, #tpu.memory_space<vmem>> -> memref<1x128xf32, #tpu.memory_space<vmem>>
    %894 = tpu.memref_slice %arg5[%c7_i32_938, %c7_i32_939] : memref<8x8x!tpu.dma_semaphore, #tpu.memory_space<semaphore_mem>> -> memref<1x1x!tpu.dma_semaphore, #tpu.memory_space<semaphore_mem>>
    %895 = tpu.memref_squeeze %894 : memref<1x1x!tpu.dma_semaphore, #tpu.memory_space<semaphore_mem>> -> memref<!tpu.dma_semaphore, #tpu.memory_space<semaphore_mem>>
    tpu.wait_dma2 semaphore(%895 : memref<!tpu.dma_semaphore, #tpu.memory_space<semaphore_mem>>) src(%891 : memref<1x128xf32, #tpu.memory_space<any>>) dst(%893 : memref<1x128xf32, #tpu.memory_space<vmem>>)
    %c0_943 = arith.constant 0 : index
    %c0_944 = arith.constant 0 : index
    %c0_945 = arith.constant 0 : index
    %896 = vector.load %arg4[%c0_943, %c0_944, %c0_945] : memref<8x8x128xf32, #tpu.memory_space<vmem>>, vector<8x8x128xf32>
    %897 = arith.mulf %896, %896 : vector<8x8x128xf32>
    %cst = arith.constant dense<0.000000e+00> : vector<8x8xf32>
    %898 = vector.multi_reduction <add>, %897, %cst [2] : vector<8x8x128xf32> to vector<8x8xf32>
    %899 = vector.shape_cast %898 : vector<8x8xf32> to vector<8x8x1xf32>
    %900 = math.sqrt %899 : vector<8x8x1xf32>
    %cst_946 = arith.constant 1.000000e+00 : f32
    %901 = vector.broadcast %cst_946 : f32 to vector<8x8x1xf32>
    %902 = arith.cmpf ogt, %900, %901 : vector<8x8x1xf32>
    %cst_947 = arith.constant 1.000000e-07 : f32
    %903 = vector.broadcast %cst_947 : f32 to vector<8x8x1xf32>
    %904 = arith.addf %900, %903 : vector<8x8x1xf32>
    %cst_948 = arith.constant 1.000000e+00 : f32
    %905 = vector.broadcast %cst_948 : f32 to vector<8x8x1xf32>
    %906 = arith.divf %905, %904 : vector<8x8x1xf32>
    %cst_949 = arith.constant 1.000000e+00 : f32
    %907 = vector.broadcast %cst_949 : f32 to vector<8x8x1xf32>
    %908 = arith.select %902, %906, %907 : vector<8x8x1xi1>, vector<8x8x1xf32>
    %909 = vector.broadcast %908 : vector<8x8x1xf32> to vector<8x8x128xf32>
    %910 = arith.mulf %896, %909 : vector<8x8x128xf32>
    %cst_950 = arith.constant dense<0.000000e+00> : vector<8x128xf32>
    %911 = vector.multi_reduction <add>, %910, %cst_950 [0] : vector<8x8x128xf32> to vector<8x128xf32>
    %cst_951 = arith.constant 8.000000e+00 : f32
    %912 = vector.broadcast %cst_951 : f32 to vector<8x128xf32>
    %913 = arith.divf %911, %912 : vector<8x128xf32>
    %c0_952 = arith.constant 0 : index
    %c0_953 = arith.constant 0 : index
    %914 = vector.load %arg3[%c0_952, %c0_953] : memref<8x128xf32, #tpu.memory_space<vmem>>, vector<8x128xf32>
    tpu.vector_store %arg3[%c0_952, %c0_953], %913 {strides = array<i32>} : memref<8x128xf32, #tpu.memory_space<vmem>>, vector<8x128xf32>,
    return
  }
  func.func @transform_1(%arg0: i32, %arg1: memref<16x8xi32, #tpu.memory_space<smem>>) -> (i32, i32) {
    %c0_i32 = arith.constant 0 : i32
    %c0_i32_0 = arith.constant 0 : i32
    return %arg0, %c0_i32 : i32, i32
  }
}

</mosaic_0001>

<llo_original>
// kernel: tpu_custom_call.1
$region0: #{tpu_custom_call.1}
  #allocation0 [shape = 'u32[]', space=smem, size = 0x4, offset = 0x4, fixed_abs, tag = 'smem constant byte address 0x4 - core index']
  #allocation1 [shape = 'u32[144,128]{1,0:T(1,128)}', space=vmem, size = 0x12000, scoped, tag = 'internal scratch']
  #allocation2 [shape = 'f32[8,8,128]{2,1,0:T(8,128)}', space=vmem, size = 0x8000, scoped, tag = 'scratch operand']
  #allocation3 [shape = 's32[64]{0}', space=sflag, size = 0x100, scoped, tag = 'scratch operand']
  #allocation4 [shape = 's32[1]{0}', space=sflag, size = 0x4, scoped, tag = 'scoped memory for tpu_custom_call.1']
  #allocation5 [shape = 'u8[8192]{0}', space=smem, size = 0x2000, scoped, tag = 'prefetched SMEM operand 0']
  #allocation8 [shape = 's32[]', space=sflag, size = 0x4, offset = 0, fixed_abs, tag = 'sflag constant byte address 0x0 - dummy sync flag']
  #allocation9 [shape = 's32[]', space=sflag, size = 0x4, offset = 0, fixed_abs, tag = 'sflag constant byte address 0x0 - dummy sync flag']
  #allocation10 [shape = 'u32[]', space=smem, size = 0x4, offset = 0x44, fixed_abs, tag = 'smem constant byte address 0x44 - assertion arg 0']
  #allocation11 [shape = 'u32[]', space=smem, size = 0x4, offset = 0x48, fixed_abs, tag = 'smem constant byte address 0x48 - assertion arg 1']
  #allocation12 [shape = 's32[]', space=sflag, size = 0x4, offset = 0, fixed_abs, tag = 'sflag constant byte address 0x0 - dummy sync flag']
  #allocation13 [shape = 's32[]', space=sflag, size = 0x4, offset = 0, fixed_abs, tag = 'sflag constant byte address 0x0 - dummy sync flag']
  #allocation14 [shape = 's32[]', space=sflag, size = 0x4, offset = 0, fixed_abs, tag = 'sflag constant byte address 0x0 - dummy sync flag']
  #allocation15 [shape = 's32[]', space=sflag, size = 0x4, offset = 0, fixed_abs, tag = 'sflag constant byte address 0x0 - dummy sync flag']
  #allocation16 [shape = 's32[]', space=sflag, size = 0x4, offset = 0, fixed_abs, tag = 'sflag constant byte address 0x0 - dummy sync flag']
  #allocation17 [shape = 's32[]', space=sflag, size = 0x4, offset = 0, fixed_abs, tag = 'sflag constant byte address 0x0 - dummy sync flag']
  #allocation18 [shape = 's32[]', space=sflag, size = 0x4, offset = 0, fixed_abs, tag = 'sflag constant byte address 0x0 - dummy sync flag']
  #allocation19 [shape = 's32[]', space=sflag, size = 0x4, offset = 0, fixed_abs, tag = 'sflag constant byte address 0x0 - dummy sync flag']
  #allocation20 [shape = 's32[]', space=sflag, size = 0x4, offset = 0, fixed_abs, tag = 'sflag constant byte address 0x0 - dummy sync flag']
  #allocation21 [shape = 's32[]', space=sflag, size = 0x4, offset = 0, fixed_abs, tag = 'sflag constant byte address 0x0 - dummy sync flag']
  #allocation22 [shape = 's32[]', space=sflag, size = 0x4, offset = 0, fixed_abs, tag = 'sflag constant byte address 0x0 - dummy sync flag']
  #allocation23 [shape = 's32[]', space=sflag, size = 0x4, offset = 0, fixed_abs, tag = 'sflag constant byte address 0x0 - dummy sync flag']
  #allocation24 [shape = 's32[]', space=sflag, size = 0x4, offset = 0, fixed_abs, tag = 'sflag constant byte address 0x0 - dummy sync flag']
  #allocation25 [shape = 's32[]', space=sflag, size = 0x4, offset = 0, fixed_abs, tag = 'sflag constant byte address 0x0 - dummy sync flag']
  #allocation26 [shape = 's32[]', space=sflag, size = 0x4, offset = 0, fixed_abs, tag = 'sflag constant byte address 0x0 - dummy sync flag']
  #allocation27 [shape = 's32[]', space=sflag, size = 0x4, offset = 0, fixed_abs, tag = 'sflag constant byte address 0x0 - dummy sync flag']
  #allocation28 [shape = 's32[]', space=sflag, size = 0x4, offset = 0, fixed_abs, tag = 'sflag constant byte address 0x0 - dummy sync flag']
  #allocation29 [shape = 's32[]', space=sflag, size = 0x4, offset = 0, fixed_abs, tag = 'sflag constant byte address 0x0 - dummy sync flag']
  #allocation30 [shape = 's32[]', space=sflag, size = 0x4, offset = 0, fixed_abs, tag = 'sflag constant byte address 0x0 - dummy sync flag']
  #allocation31 [shape = 's32[]', space=sflag, size = 0x4, offset = 0, fixed_abs, tag = 'sflag constant byte address 0x0 - dummy sync flag']
  #allocation32 [shape = 's32[]', space=sflag, size = 0x4, offset = 0, fixed_abs, tag = 'sflag constant byte address 0x0 - dummy sync flag']
  #allocation33 [shape = 's32[]', space=sflag, size = 0x4, offset = 0, fixed_abs, tag = 'sflag constant byte address 0x0 - dummy sync flag']
  #allocation34 [shape = 's32[]', space=sflag, size = 0x4, offset = 0, fixed_abs, tag = 'sflag constant byte address 0x0 - dummy sync flag']
  #allocation35 [shape = 's32[]', space=sflag, size = 0x4, offset = 0, fixed_abs, tag = 'sflag constant byte address 0x0 - dummy sync flag']
  #allocation36 [shape = 's32[]', space=sflag, size = 0x4, offset = 0, fixed_abs, tag = 'sflag constant byte address 0x0 - dummy sync flag']
  #allocation37 [shape = 's32[]', space=sflag, size = 0x4, offset = 0, fixed_abs, tag = 'sflag constant byte address 0x0 - dummy sync flag']
  #allocation38 [shape = 's32[]', space=sflag, size = 0x4, offset = 0, fixed_abs, tag = 'sflag constant byte address 0x0 - dummy sync flag']
  #allocation39 [shape = 's32[]', space=sflag, size = 0x4, offset = 0, fixed_abs, tag = 'sflag constant byte address 0x0 - dummy sync flag']
  #allocation40 [shape = 's32[]', space=sflag, size = 0x4, offset = 0, fixed_abs, tag = 'sflag constant byte address 0x0 - dummy sync flag']
  #allocation41 [shape = 's32[]', space=sflag, size = 0x4, offset = 0, fixed_abs, tag = 'sflag constant byte address 0x0 - dummy sync flag']
  #allocation42 [shape = 's32[]', space=sflag, size = 0x4, offset = 0, fixed_abs, tag = 'sflag constant byte address 0x0 - dummy sync flag']
  #allocation43 [shape = 's32[]', space=sflag, size = 0x4, offset = 0, fixed_abs, tag = 'sflag constant byte address 0x0 - dummy sync flag']
  #allocation44 [shape = 's32[]', space=sflag, size = 0x4, offset = 0, fixed_abs, tag = 'sflag constant byte address 0x0 - dummy sync flag']
  #allocation45 [shape = 's32[]', space=sflag, size = 0x4, offset = 0, fixed_abs, tag = 'sflag constant byte address 0x0 - dummy sync flag']
  #allocation46 [shape = 's32[]', space=sflag, size = 0x4, offset = 0, fixed_abs, tag = 'sflag constant byte address 0x0 - dummy sync flag']
  #allocation47 [shape = 's32[]', space=sflag, size = 0x4, offset = 0, fixed_abs, tag = 'sflag constant byte address 0x0 - dummy sync flag']
  #allocation48 [shape = 's32[]', space=sflag, size = 0x4, offset = 0, fixed_abs, tag = 'sflag constant byte address 0x0 - dummy sync flag']
  #allocation49 [shape = 's32[]', space=sflag, size = 0x4, offset = 0, fixed_abs, tag = 'sflag constant byte address 0x0 - dummy sync flag']
  #allocation50 [shape = 's32[]', space=sflag, size = 0x4, offset = 0, fixed_abs, tag = 'sflag constant byte address 0x0 - dummy sync flag']
  #allocation51 [shape = 's32[]', space=sflag, size = 0x4, offset = 0, fixed_abs, tag = 'sflag constant byte address 0x0 - dummy sync flag']
  #allocation52 [shape = 's32[]', space=sflag, size = 0x4, offset = 0, fixed_abs, tag = 'sflag constant byte address 0x0 - dummy sync flag']
  #allocation53 [shape = 's32[]', space=sflag, size = 0x4, offset = 0, fixed_abs, tag = 'sflag constant byte address 0x0 - dummy sync flag']
  #allocation54 [shape = 's32[]', space=sflag, size = 0x4, offset = 0, fixed_abs, tag = 'sflag constant byte address 0x0 - dummy sync flag']
  #allocation55 [shape = 's32[]', space=sflag, size = 0x4, offset = 0, fixed_abs, tag = 'sflag constant byte address 0x0 - dummy sync flag']
  #allocation56 [shape = 's32[]', space=sflag, size = 0x4, offset = 0, fixed_abs, tag = 'sflag constant byte address 0x0 - dummy sync flag']
  #allocation57 [shape = 's32[]', space=sflag, size = 0x4, offset = 0, fixed_abs, tag = 'sflag constant byte address 0x0 - dummy sync flag']
  #allocation58 [shape = 's32[]', space=sflag, size = 0x4, offset = 0, fixed_abs, tag = 'sflag constant byte address 0x0 - dummy sync flag']
  #allocation59 [shape = 's32[]', space=sflag, size = 0x4, offset = 0, fixed_abs, tag = 'sflag constant byte address 0x0 - dummy sync flag']
  #allocation60 [shape = 's32[]', space=sflag, size = 0x4, offset = 0, fixed_abs, tag = 'sflag constant byte address 0x0 - dummy sync flag']
  #allocation61 [shape = 's32[]', space=sflag, size = 0x4, offset = 0, fixed_abs, tag = 'sflag constant byte address 0x0 - dummy sync flag']
  #allocation62 [shape = 's32[]', space=sflag, size = 0x4, offset = 0, fixed_abs, tag = 'sflag constant byte address 0x0 - dummy sync flag']
  #allocation63 [shape = 's32[]', space=sflag, size = 0x4, offset = 0, fixed_abs, tag = 'sflag constant byte address 0x0 - dummy sync flag']
  #allocation64 [shape = 's32[]', space=sflag, size = 0x4, offset = 0, fixed_abs, tag = 'sflag constant byte address 0x0 - dummy sync flag']
  #allocation65 [shape = 's32[]', space=sflag, size = 0x4, offset = 0, fixed_abs, tag = 'sflag constant byte address 0x0 - dummy sync flag']
  #allocation66 [shape = 's32[]', space=sflag, size = 0x4, offset = 0, fixed_abs, tag = 'sflag constant byte address 0x0 - dummy sync flag']
  #allocation67 [shape = 's32[]', space=sflag, size = 0x4, offset = 0, fixed_abs, tag = 'sflag constant byte address 0x0 - dummy sync flag']
  #allocation68 [shape = 's32[]', space=sflag, size = 0x4, offset = 0, fixed_abs, tag = 'sflag constant byte address 0x0 - dummy sync flag']
  #allocation69 [shape = 's32[]', space=sflag, size = 0x4, offset = 0, fixed_abs, tag = 'sflag constant byte address 0x0 - dummy sync flag']
  #allocation70 [shape = 's32[]', space=sflag, size = 0x4, offset = 0, fixed_abs, tag = 'sflag constant byte address 0x0 - dummy sync flag']
  #allocation71 [shape = 's32[]', space=sflag, size = 0x4, offset = 0, fixed_abs, tag = 'sflag constant byte address 0x0 - dummy sync flag']
  #allocation72 [shape = 's32[]', space=sflag, size = 0x4, offset = 0, fixed_abs, tag = 'sflag constant byte address 0x0 - dummy sync flag']
  #allocation73 [shape = 's32[]', space=sflag, size = 0x4, offset = 0, fixed_abs, tag = 'sflag constant byte address 0x0 - dummy sync flag']
  #allocation74 [shape = 's32[]', space=sflag, size = 0x4, offset = 0, fixed_abs, tag = 'sflag constant byte address 0x0 - dummy sync flag']
  #allocation75 [shape = 's32[]', space=sflag, size = 0x4, offset = 0, fixed_abs, tag = 'sflag constant byte address 0x0 - dummy sync flag']
  #allocation76 [shape = 's32[]', space=sflag, size = 0x4, offset = 0, fixed_abs, tag = 'sflag constant byte address 0x0 - dummy sync flag']
  #allocation77 [shape = 's32[]', space=sflag, size = 0x4, offset = 0, fixed_abs, tag = 'sflag constant byte address 0x0 - dummy sync flag']
  #allocation78 [shape = 's32[]', space=sflag, size = 0x4, offset = 0, fixed_abs, tag = 'sflag constant byte address 0x0 - dummy sync flag']
  #allocation79 [shape = 's32[]', space=sflag, size = 0x4, offset = 0, fixed_abs, tag = 'sflag constant byte address 0x0 - dummy sync flag']
  #allocation80 [shape = 's32[]', space=sflag, size = 0x4, offset = 0, fixed_abs, tag = 'sflag constant byte address 0x0 - dummy sync flag']
  #allocation81 [shape = 's32[]', space=sflag, size = 0x4, offset = 0, fixed_abs, tag = 'sflag constant byte address 0x0 - dummy sync flag']
  #allocation82 [shape = 's32[]', space=sflag, size = 0x4, offset = 0, fixed_abs, tag = 'sflag constant byte address 0x0 - dummy sync flag']
  #allocation83 [shape = 's32[]', space=sflag, size = 0x4, offset = 0, fixed_abs, tag = 'sflag constant byte address 0x0 - dummy sync flag']
  #allocation84 [shape = 's32[]', space=sflag, size = 0x4, offset = 0, fixed_abs, tag = 'sflag constant byte address 0x0 - dummy sync flag']
  #allocation85 [shape = 's32[]', space=sflag, size = 0x4, offset = 0, fixed_abs, tag = 'sflag constant byte address 0x0 - dummy sync flag']
  #allocation86 [shape = 's32[]', space=sflag, size = 0x4, offset = 0, fixed_abs, tag = 'sflag constant byte address 0x0 - dummy sync flag']
  #allocation87 [shape = 's32[]', space=sflag, size = 0x4, offset = 0, fixed_abs, tag = 'sflag constant byte address 0x0 - dummy sync flag']
  #allocation88 [shape = 's32[]', space=sflag, size = 0x4, offset = 0, fixed_abs, tag = 'sflag constant byte address 0x0 - dummy sync flag']
  #allocation89 [shape = 's32[]', space=sflag, size = 0x4, offset = 0, fixed_abs, tag = 'sflag constant byte address 0x0 - dummy sync flag']
  #allocation90 [shape = 's32[]', space=sflag, size = 0x4, offset = 0, fixed_abs, tag = 'sflag constant byte address 0x0 - dummy sync flag']
  #allocation91 [shape = 's32[]', space=sflag, size = 0x4, offset = 0, fixed_abs, tag = 'sflag constant byte address 0x0 - dummy sync flag']
  #allocation92 [shape = 's32[]', space=sflag, size = 0x4, offset = 0, fixed_abs, tag = 'sflag constant byte address 0x0 - dummy sync flag']
  #allocation93 [shape = 's32[]', space=sflag, size = 0x4, offset = 0, fixed_abs, tag = 'sflag constant byte address 0x0 - dummy sync flag']
  #allocation94 [shape = 's32[]', space=sflag, size = 0x4, offset = 0, fixed_abs, tag = 'sflag constant byte address 0x0 - dummy sync flag']
  #allocation95 [shape = 's32[]', space=sflag, size = 0x4, offset = 0, fixed_abs, tag = 'sflag constant byte address 0x0 - dummy sync flag']
  #allocation96 [shape = 's32[]', space=sflag, size = 0x4, offset = 0, fixed_abs, tag = 'sflag constant byte address 0x0 - dummy sync flag']
  #allocation97 [shape = 's32[]', space=sflag, size = 0x4, offset = 0, fixed_abs, tag = 'sflag constant byte address 0x0 - dummy sync flag']
  #allocation98 [shape = 's32[]', space=sflag, size = 0x4, offset = 0, fixed_abs, tag = 'sflag constant byte address 0x0 - dummy sync flag']
  #allocation99 [shape = 's32[]', space=sflag, size = 0x4, offset = 0, fixed_abs, tag = 'sflag constant byte address 0x0 - dummy sync flag']
  #allocation100 [shape = 's32[]', space=sflag, size = 0x4, offset = 0, fixed_abs, tag = 'sflag constant byte address 0x0 - dummy sync flag']
  #allocation101 [shape = 's32[]', space=sflag, size = 0x4, offset = 0, fixed_abs, tag = 'sflag constant byte address 0x0 - dummy sync flag']
  #allocation102 [shape = 's32[]', space=sflag, size = 0x4, offset = 0, fixed_abs, tag = 'sflag constant byte address 0x0 - dummy sync flag']
  #allocation103 [shape = 's32[]', space=sflag, size = 0x4, offset = 0, fixed_abs, tag = 'sflag constant byte address 0x0 - dummy sync flag']
  #allocation104 [shape = 's32[]', space=sflag, size = 0x4, offset = 0, fixed_abs, tag = 'sflag constant byte address 0x0 - dummy sync flag']
  #allocation105 [shape = 's32[]', space=sflag, size = 0x4, offset = 0, fixed_abs, tag = 'sflag constant byte address 0x0 - dummy sync flag']
  #allocation106 [shape = 's32[]', space=sflag, size = 0x4, offset = 0, fixed_abs, tag = 'sflag constant byte address 0x0 - dummy sync flag']
  #allocation107 [shape = 's32[]', space=sflag, size = 0x4, offset = 0, fixed_abs, tag = 'sflag constant byte address 0x0 - dummy sync flag']
  #allocation108 [shape = 's32[]', space=sflag, size = 0x4, offset = 0, fixed_abs, tag = 'sflag constant byte address 0x0 - dummy sync flag']
  #allocation109 [shape = 's32[]', space=sflag, size = 0x4, offset = 0, fixed_abs, tag = 'sflag constant byte address 0x0 - dummy sync flag']
  #allocation110 [shape = 's32[]', space=sflag, size = 0x4, offset = 0, fixed_abs, tag = 'sflag constant byte address 0x0 - dummy sync flag']
  #allocation111 [shape = 's32[]', space=sflag, size = 0x4, offset = 0, fixed_abs, tag = 'sflag constant byte address 0x0 - dummy sync flag']
  #allocation112 [shape = 's32[]', space=sflag, size = 0x4, offset = 0, fixed_abs, tag = 'sflag constant byte address 0x0 - dummy sync flag']
  #allocation113 [shape = 's32[]', space=sflag, size = 0x4, offset = 0, fixed_abs, tag = 'sflag constant byte address 0x0 - dummy sync flag']
  #allocation114 [shape = 's32[]', space=sflag, size = 0x4, offset = 0, fixed_abs, tag = 'sflag constant byte address 0x0 - dummy sync flag']
  #allocation115 [shape = 's32[]', space=sflag, size = 0x4, offset = 0, fixed_abs, tag = 'sflag constant byte address 0x0 - dummy sync flag']
  #allocation116 [shape = 's32[]', space=sflag, size = 0x4, offset = 0, fixed_abs, tag = 'sflag constant byte address 0x0 - dummy sync flag']
  #allocation117 [shape = 's32[]', space=sflag, size = 0x4, offset = 0, fixed_abs, tag = 'sflag constant byte address 0x0 - dummy sync flag']
  #allocation118 [shape = 's32[]', space=sflag, size = 0x4, offset = 0, fixed_abs, tag = 'sflag constant byte address 0x0 - dummy sync flag']
  #allocation119 [shape = 's32[]', space=sflag, size = 0x4, offset = 0, fixed_abs, tag = 'sflag constant byte address 0x0 - dummy sync flag']
  #allocation120 [shape = 's32[]', space=sflag, size = 0x4, offset = 0, fixed_abs, tag = 'sflag constant byte address 0x0 - dummy sync flag']
  #allocation121 [shape = 's32[]', space=sflag, size = 0x4, offset = 0, fixed_abs, tag = 'sflag constant byte address 0x0 - dummy sync flag']
  #allocation122 [shape = 's32[]', space=sflag, size = 0x4, offset = 0, fixed_abs, tag = 'sflag constant byte address 0x0 - dummy sync flag']
  #allocation123 [shape = 's32[]', space=sflag, size = 0x4, offset = 0, fixed_abs, tag = 'sflag constant byte address 0x0 - dummy sync flag']
  #allocation124 [shape = 's32[]', space=sflag, size = 0x4, offset = 0, fixed_abs, tag = 'sflag constant byte address 0x0 - dummy sync flag']
  #allocation125 [shape = 's32[]', space=sflag, size = 0x4, offset = 0, fixed_abs, tag = 'sflag constant byte address 0x0 - dummy sync flag']
  #allocation126 [shape = 's32[]', space=sflag, size = 0x4, offset = 0, fixed_abs, tag = 'sflag constant byte address 0x0 - dummy sync flag']
  #allocation127 [shape = 's32[]', space=sflag, size = 0x4, offset = 0, fixed_abs, tag = 'sflag constant byte address 0x0 - dummy sync flag']
  #allocation128 [shape = 's32[]', space=sflag, size = 0x4, offset = 0, fixed_abs, tag = 'sflag constant byte address 0x0 - dummy sync flag']
  #allocation129 [shape = 's32[]', space=sflag, size = 0x4, offset = 0, fixed_abs, tag = 'sflag constant byte address 0x0 - dummy sync flag']
  #allocation130 [shape = 's32[]', space=sflag, size = 0x4, offset = 0, fixed_abs, tag = 'sflag constant byte address 0x0 - dummy sync flag']
  #allocation131 [shape = 's32[]', space=sflag, size = 0x4, offset = 0, fixed_abs, tag = 'sflag constant byte address 0x0 - dummy sync flag']
  #allocation132 [shape = 's32[]', space=sflag, size = 0x4, offset = 0, fixed_abs, tag = 'sflag constant byte address 0x0 - dummy sync flag']
  #allocation133 [shape = 's32[]', space=sflag, size = 0x4, offset = 0, fixed_abs, tag = 'sflag constant byte address 0x0 - dummy sync flag']
  #allocation134 [shape = 's32[]', space=sflag, size = 0x4, offset = 0, fixed_abs, tag = 'sflag constant byte address 0x0 - dummy sync flag']
  #allocation135 [shape = 's32[]', space=sflag, size = 0x4, offset = 0, fixed_abs, tag = 'sflag constant byte address 0x0 - dummy sync flag']
  #allocation136 [shape = 's32[]', space=sflag, size = 0x4, offset = 0, fixed_abs, tag = 'sflag constant byte address 0x0 - dummy sync flag']
  #allocation137 [shape = 's32[]', space=sflag, size = 0x4, offset = 0, fixed_abs, tag = 'sflag constant byte address 0x0 - dummy sync flag']
  %s0 = inlined_call_operand.vmem [shape: s32[16,8], index: 0, kind: input, shape index: {}]
  %s1 = inlined_call_operand.hbm [shape: f32[256,128], index: 1, kind: input, shape index: {}]
  %s2 = inlined_call_operand.hbm [shape: f32[16,128], index: 2, kind: output, shape index: {}]
  %s3 = sld [smem:[#allocation0]]
  $region281: #{tpu_custom_call.1} parent=0
    _
  %s5 = ssub.s32 1, %s3
  %s6 = scalar_select 0, %s5, %s3
  %s7 = sshll.u32 %s0, 4
  %s8 = int_to_ptr.vmem [resolvable:$true] %s7
  %10 = dma.vmem_to_smem %s8, 256, [#allocation5], [#allocation4]
  %11 = dma.done [#allocation4], 256
  %12 = sfence
  $region1: #{tpu_custom_call.1} parent=0
    #allocation6 [shape = 'u8[8192]{0}', space=vmem, size = 0x2000, scoped, tag = 'output window, operand 0']
    #allocation7 [shape = 's32[2]{0}', space=sflag, size = 0x8, scoped, tag = 'scoped memory for tpu_custom_call.1']
    %13 = vsyncpa [#allocation7], 0
    %s14 = scalar_lea.sflag [#allocation7], 1
    %15 = vsyncpa %s14, 0
    loop: start=0, step=1, limit=3
    $region2: #{tpu_custom_call.1} parent=1 // loop_pre_header
      _
    $region3: #{tpu_custom_call.1} parent=1 // loop_header
      %s17 = sphi 0, %s21
      %p18 = scmp.ge.s32.totalorder %s17, 3
      %s26 = sphi 0, %s28
      %s29 = sphi 0, %s26
      %s39 = sphi 0, %s29
    $region4: #{tpu_custom_call.1} parent=1 // loop_header_branch
      %20 = sbr.rel (%p18) target = $region8
    $region5: #{tpu_custom_call.1} parent=1 // loop_body
      %s22 = ssub.s32 %s17, 1
      %s23 = sadd.s32 %s17, 1
      %s24 = ssub.s32 %s17, %s23
      %p25 = scmp.eq.s32.totalorder %s24, 0
      %s27 = sadd.s32 %s26, 1
      %s28 = scalar_select %p25, %s26, %s27
      %p30 = pneg %p25
      %p31 = scmp.eq.s32.totalorder %s17, 1
      %p32 = por %p30, %p31
      %p33 = scmp.ne.s32.totalorder %s26, %s29
      %p34 = scmp.eq.s32.totalorder %s17, 0
      %p35 = por %p33, %p34
      %p36 = scmp.ne.s32.totalorder %s26, %s29
      %p37 = scmp.eq.s32.totalorder %s22, 1
      %p38 = por %p36, %p37
      %p40 = scmp.ne.s32.totalorder %s29, %s39
      %p41 = scmp.eq.s32.totalorder %s22, 0
      %p42 = por %p40, %p41
      %p43 = scmp.lt.s32.totalorder %s17, 2
      // Predicated region
      $region9: #{tpu_custom_call.1} parent=5 // pred_check
        %p44 = pneg %p43
      $region10: #{tpu_custom_call.1} parent=5 // pred_check_branch
        %46 = sbr.rel (%p44) target = $region12
      $region11: #{tpu_custom_call.1} parent=5 // pred_region
        %p47 = pneg %p35
        %p48 = pneg %p32
        %s49 = sand.u32 %s26, 1
        %s50 = scalar_lea.sflag [#allocation7], %s49
        %s51 = sand.u32 %s26, 1
        %s52 = smul.addr %s51, 8
        %s53 = scalar_lea.vmem [#allocation6], %s52
        %s54 = smul.u32 %s17, 8
        %s55 = smul.u32 %s54, 128
        %s56 = sld [smem:[#allocation5 + %s55]]
        %s57 = smul.addr %s56, 16
        %s58 = scalar_lea.hbm %s1, %s57
        // Predicated region
        $region13: #{tpu_custom_call.1} parent=11 // pred_check
          _
        $region14: #{tpu_custom_call.1} parent=11 // pred_check_branch
          %60 = sbr.rel target = $region16
        $region15: #{tpu_custom_call.1} parent=11 // pred_region
          %61 = sst [smem:[#allocation10]] [#allocation9]
          %62 = sst [smem:[#allocation11]] [#allocation8]
        $region16: #{tpu_custom_call.1} parent=11 // pred_fallthru
          _
        %64 = shalt.err (0)
        %s66 = sshll.u32 [#allocation2], 4
        %s67 = int_to_ptr.vmem [resolvable:$true] %s66
        %69 = dma.hbm_to_vmem [thread:$0]  %s58, 16, %s67, [#allocation3]
        %s70 = sadd.s32 %s55, 1
        %s71 = sld [smem:[#allocation5 + %s70]]
        %s72 = smul.addr %s71, 16
        %s73 = scalar_lea.hbm %s1, %s72
        %s74 = scalar_lea.vmem [#allocation2], 8
        %s75 = scalar_lea.sflag [#allocation3], 8
        // Predicated region
        $region17: #{tpu_custom_call.1} parent=11 // pred_check
          _
        $region18: #{tpu_custom_call.1} parent=11 // pred_check_branch
          %77 = sbr.rel target = $region20
        $region19: #{tpu_custom_call.1} parent=11 // pred_region
          %78 = sst [smem:[#allocation10]] [#allocation13]
          %79 = sst [smem:[#allocation11]] [#allocation12]
        $region20: #{tpu_custom_call.1} parent=11 // pred_fallthru
          _
        %81 = shalt.err (0)
        %s83 = sshll.u32 %s74, 4
        %s84 = int_to_ptr.vmem [resolvable:$true] %s83
        %86 = dma.hbm_to_vmem [thread:$0]  %s73, 16, %s84, %s75
        %s87 = sadd.s32 %s55, 2
        %s88 = sld [smem:[#allocation5 + %s87]]
        %s89 = smul.addr %s88, 16
        %s90 = scalar_lea.hbm %s1, %s89
        %s91 = scalar_lea.vmem [#allocation2], 16
        %s92 = scalar_lea.sflag [#allocation3], 16
        // Predicated region
        $region21: #{tpu_custom_call.1} parent=11 // pred_check
          _
        $region22: #{tpu_custom_call.1} parent=11 // pred_check_branch
          %94 = sbr.rel target = $region24
        $region23: #{tpu_custom_call.1} parent=11 // pred_region
          %95 = sst [smem:[#allocation10]] [#allocation15]
          %96 = sst [smem:[#allocation11]] [#allocation14]
        $region24: #{tpu_custom_call.1} parent=11 // pred_fallthru
          _
        %98 = shalt.err (0)
        %s100 = sshll.u32 %s91, 4
        %s101 = int_to_ptr.vmem [resolvable:$true] %s100
        %103 = dma.hbm_to_vmem [thread:$0]  %s90, 16, %s101, %s92
        %s104 = sadd.s32 %s55, 3
        %s105 = sld [smem:[#allocation5 + %s104]]
        %s106 = smul.addr %s105, 16
        %s107 = scalar_lea.hbm %s1, %s106
        %s108 = scalar_lea.vmem [#allocation2], 24
        %s109 = scalar_lea.sflag [#allocation3], 24
        // Predicated region
        $region25: #{tpu_custom_call.1} parent=11 // pred_check
          _
        $region26: #{tpu_custom_call.1} parent=11 // pred_check_branch
          %111 = sbr.rel target = $region28
        $region27: #{tpu_custom_call.1} parent=11 // pred_region
          %112 = sst [smem:[#allocation10]] [#allocation17]
          %113 = sst [smem:[#allocation11]] [#allocation16]
        $region28: #{tpu_custom_call.1} parent=11 // pred_fallthru
          _
        %115 = shalt.err (0)
        %s117 = sshll.u32 %s108, 4
        %s118 = int_to_ptr.vmem [resolvable:$true] %s117
        %120 = dma.hbm_to_vmem [thread:$0]  %s107, 16, %s118, %s109
        %s121 = sadd.s32 %s55, 4
        %s122 = sld [smem:[#allocation5 + %s121]]
        %s123 = smul.addr %s122, 16
        %s124 = scalar_lea.hbm %s1, %s123
        %s125 = scalar_lea.vmem [#allocation2], 32
        %s126 = scalar_lea.sflag [#allocation3], 32
        // Predicated region
        $region29: #{tpu_custom_call.1} parent=11 // pred_check
          _
        $region30: #{tpu_custom_call.1} parent=11 // pred_check_branch
          %128 = sbr.rel target = $region32
        $region31: #{tpu_custom_call.1} parent=11 // pred_region
          %129 = sst [smem:[#allocation10]] [#allocation19]
          %130 = sst [smem:[#allocation11]] [#allocation18]
        $region32: #{tpu_custom_call.1} parent=11 // pred_fallthru
          _
        %132 = shalt.err (0)
        %s134 = sshll.u32 %s125, 4
        %s135 = int_to_ptr.vmem [resolvable:$true] %s134
        %137 = dma.hbm_to_vmem [thread:$0]  %s124, 16, %s135, %s126
        %s138 = sadd.s32 %s55, 5
        %s139 = sld [smem:[#allocation5 + %s138]]
        %s140 = smul.addr %s139, 16
        %s141 = scalar_lea.hbm %s1, %s140
        %s142 = scalar_lea.vmem [#allocation2], 40
        %s143 = scalar_lea.sflag [#allocation3], 40
        // Predicated region
        $region33: #{tpu_custom_call.1} parent=11 // pred_check
          _
        $region34: #{tpu_custom_call.1} parent=11 // pred_check_branch
          %145 = sbr.rel target = $region36
        $region35: #{tpu_custom_call.1} parent=11 // pred_region
          %146 = sst [smem:[#allocation10]] [#allocation21]
          %147 = sst [smem:[#allocation11]] [#allocation20]
        $region36: #{tpu_custom_call.1} parent=11 // pred_fallthru
          _
        %149 = shalt.err (0)
        %s151 = sshll.u32 %s142, 4
        %s152 = int_to_ptr.vmem [resolvable:$true] %s151
        %154 = dma.hbm_to_vmem [thread:$0]  %s141, 16, %s152, %s143
        %s155 = sadd.s32 %s55, 6
        %s156 = sld [smem:[#allocation5 + %s155]]
        %s157 = smul.addr %s156, 16
        %s158 = scalar_lea.hbm %s1, %s157
        %s159 = scalar_lea.vmem [#allocation2], 48
        %s160 = scalar_lea.sflag [#allocation3], 48
        // Predicated region
        $region37: #{tpu_custom_call.1} parent=11 // pred_check
          _
        $region38: #{tpu_custom_call.1} parent=11 // pred_check_branch
          %162 = sbr.rel target = $region40
        $region39: #{tpu_custom_call.1} parent=11 // pred_region
          %163 = sst [smem:[#allocation10]] [#allocation23]
          %164 = sst [smem:[#allocation11]] [#allocation22]
        $region40: #{tpu_custom_call.1} parent=11 // pred_fallthru
          _
        %166 = shalt.err (0)
        %s168 = sshll.u32 %s159, 4
        %s169 = int_to_ptr.vmem [resolvable:$true] %s168
        %171 = dma.hbm_to_vmem [thread:$0]  %s158, 16, %s169, %s160
        %s172 = sadd.s32 %s55, 7
        %s173 = sld [smem:[#allocation5 + %s172]]
        %s174 = smul.addr %s173, 16
        %s175 = scalar_lea.hbm %s1, %s174
        %s176 = scalar_lea.vmem [#allocation2], 56
        %s177 = scalar_lea.sflag [#allocation3], 56
        // Predicated region
        $region41: #{tpu_custom_call.1} parent=11 // pred_check
          _
        $region42: #{tpu_custom_call.1} parent=11 // pred_check_branch
          %179 = sbr.rel target = $region44
        $region43: #{tpu_custom_call.1} parent=11 // pred_region
          %180 = sst [smem:[#allocation10]] [#allocation25]
          %181 = sst [smem:[#allocation11]] [#allocation24]
        $region44: #{tpu_custom_call.1} parent=11 // pred_fallthru
          _
        %183 = shalt.err (0)
        %s185 = sshll.u32 %s176, 4
        %s186 = int_to_ptr.vmem [resolvable:$true] %s185
        %188 = dma.hbm_to_vmem [thread:$0]  %s175, 16, %s186, %s177
        %s189 = sadd.s32 %s54, 1
        %s190 = smul.u32 %s189, 128
        %s191 = sld [smem:[#allocation5 + %s190]]
        %s192 = smul.addr %s191, 16
        %s193 = scalar_lea.hbm %s1, %s192
        %s194 = scalar_lea.vmem [#allocation2], 1
        %s195 = scalar_lea.sflag [#allocation3], 1
        // Predicated region
        $region45: #{tpu_custom_call.1} parent=11 // pred_check
          _
        $region46: #{tpu_custom_call.1} parent=11 // pred_check_branch
          %197 = sbr.rel target = $region48
        $region47: #{tpu_custom_call.1} parent=11 // pred_region
          %198 = sst [smem:[#allocation10]] [#allocation27]
          %199 = sst [smem:[#allocation11]] [#allocation26]
        $region48: #{tpu_custom_call.1} parent=11 // pred_fallthru
          _
        %201 = shalt.err (0)
        %s203 = sshll.u32 %s194, 4
        %s204 = int_to_ptr.vmem [resolvable:$true] %s203
        %206 = dma.hbm_to_vmem [thread:$0]  %s193, 16, %s204, %s195
        %s207 = sadd.s32 %s190, 1
        %s208 = sld [smem:[#allocation5 + %s207]]
        %s209 = smul.addr %s208, 16
        %s210 = scalar_lea.hbm %s1, %s209
        %s211 = scalar_lea.vmem [#allocation2], 9
        %s212 = scalar_lea.sflag [#allocation3], 9
        // Predicated region
        $region49: #{tpu_custom_call.1} parent=11 // pred_check
          _
        $region50: #{tpu_custom_call.1} parent=11 // pred_check_branch
          %214 = sbr.rel target = $region52
        $region51: #{tpu_custom_call.1} parent=11 // pred_region
          %215 = sst [smem:[#allocation10]] [#allocation29]
          %216 = sst [smem:[#allocation11]] [#allocation28]
        $region52: #{tpu_custom_call.1} parent=11 // pred_fallthru
          _
        %218 = shalt.err (0)
        %s220 = sshll.u32 %s211, 4
        %s221 = int_to_ptr.vmem [resolvable:$true] %s220
        %223 = dma.hbm_to_vmem [thread:$0]  %s210, 16, %s221, %s212
        %s224 = sadd.s32 %s190, 2
        %s225 = sld [smem:[#allocation5 + %s224]]
        %s226 = smul.addr %s225, 16
        %s227 = scalar_lea.hbm %s1, %s226
        %s228 = scalar_lea.vmem [#allocation2], 17
        %s229 = scalar_lea.sflag [#allocation3], 17
        // Predicated region
        $region53: #{tpu_custom_call.1} parent=11 // pred_check
          _
        $region54: #{tpu_custom_call.1} parent=11 // pred_check_branch
          %231 = sbr.rel target = $region56
        $region55: #{tpu_custom_call.1} parent=11 // pred_region
          %232 = sst [smem:[#allocation10]] [#allocation31]
          %233 = sst [smem:[#allocation11]] [#allocation30]
        $region56: #{tpu_custom_call.1} parent=11 // pred_fallthru
          _
        %235 = shalt.err (0)
        %s237 = sshll.u32 %s228, 4
        %s238 = int_to_ptr.vmem [resolvable:$true] %s237
        %240 = dma.hbm_to_vmem [thread:$0]  %s227, 16, %s238, %s229
        %s241 = sadd.s32 %s190, 3
        %s242 = sld [smem:[#allocation5 + %s241]]
        %s243 = smul.addr %s242, 16
        %s244 = scalar_lea.hbm %s1, %s243
        %s245 = scalar_lea.vmem [#allocation2], 25
        %s246 = scalar_lea.sflag [#allocation3], 25
        // Predicated region
        $region57: #{tpu_custom_call.1} parent=11 // pred_check
          _
        $region58: #{tpu_custom_call.1} parent=11 // pred_check_branch
          %248 = sbr.rel target = $region60
        $region59: #{tpu_custom_call.1} parent=11 // pred_region
          %249 = sst [smem:[#allocation10]] [#allocation33]
          %250 = sst [smem:[#allocation11]] [#allocation32]
        $region60: #{tpu_custom_call.1} parent=11 // pred_fallthru
          _
        %252 = shalt.err (0)
        %s254 = sshll.u32 %s245, 4
        %s255 = int_to_ptr.vmem [resolvable:$true] %s254
        %257 = dma.hbm_to_vmem [thread:$0]  %s244, 16, %s255, %s246
        %s258 = sadd.s32 %s190, 4
        %s259 = sld [smem:[#allocation5 + %s258]]
        %s260 = smul.addr %s259, 16
        %s261 = scalar_lea.hbm %s1, %s260
        %s262 = scalar_lea.vmem [#allocation2], 33
        %s263 = scalar_lea.sflag [#allocation3], 33
        // Predicated region
        $region61: #{tpu_custom_call.1} parent=11 // pred_check
          _
        $region62: #{tpu_custom_call.1} parent=11 // pred_check_branch
          %265 = sbr.rel target = $region64
        $region63: #{tpu_custom_call.1} parent=11 // pred_region
          %266 = sst [smem:[#allocation10]] [#allocation35]
          %267 = sst [smem:[#allocation11]] [#allocation34]
        $region64: #{tpu_custom_call.1} parent=11 // pred_fallthru
          _
        %269 = shalt.err (0)
        %s271 = sshll.u32 %s262, 4
        %s272 = int_to_ptr.vmem [resolvable:$true] %s271
        %274 = dma.hbm_to_vmem [thread:$0]  %s261, 16, %s272, %s263
        %s275 = sadd.s32 %s190, 5
        %s276 = sld [smem:[#allocation5 + %s275]]
        %s277 = smul.addr %s276, 16
        %s278 = scalar_lea.hbm %s1, %s277
        %s279 = scalar_lea.vmem [#allocation2], 41
        %s280 = scalar_lea.sflag [#allocation3], 41
        // Predicated region
        $region65: #{tpu_custom_call.1} parent=11 // pred_check
          _
        $region66: #{tpu_custom_call.1} parent=11 // pred_check_branch
          %282 = sbr.rel target = $region68
        $region67: #{tpu_custom_call.1} parent=11 // pred_region
          %283 = sst [smem:[#allocation10]] [#allocation37]
          %284 = sst [smem:[#allocation11]] [#allocation36]
        $region68: #{tpu_custom_call.1} parent=11 // pred_fallthru
          _
        %286 = shalt.err (0)
        %s288 = sshll.u32 %s279, 4
        %s289 = int_to_ptr.vmem [resolvable:$true] %s288
        %291 = dma.hbm_to_vmem [thread:$0]  %s278, 16, %s289, %s280
        %s292 = sadd.s32 %s190, 6
        %s293 = sld [smem:[#allocation5 + %s292]]
        %s294 = smul.addr %s293, 16
        %s295 = scalar_lea.hbm %s1, %s294
        %s296 = scalar_lea.vmem [#allocation2], 49
        %s297 = scalar_lea.sflag [#allocation3], 49
        // Predicated region
        $region69: #{tpu_custom_call.1} parent=11 // pred_check
          _
        $region70: #{tpu_custom_call.1} parent=11 // pred_check_branch
          %299 = sbr.rel target = $region72
        $region71: #{tpu_custom_call.1} parent=11 // pred_region
          %300 = sst [smem:[#allocation10]] [#allocation39]
          %301 = sst [smem:[#allocation11]] [#allocation38]
        $region72: #{tpu_custom_call.1} parent=11 // pred_fallthru
          _
        %303 = shalt.err (0)
        %s305 = sshll.u32 %s296, 4
        %s306 = int_to_ptr.vmem [resolvable:$true] %s305
        %308 = dma.hbm_to_vmem [thread:$0]  %s295, 16, %s306, %s297
        %s309 = sadd.s32 %s190, 7
        %s310 = sld [smem:[#allocation5 + %s309]]
        %s311 = smul.addr %s310, 16
        %s312 = scalar_lea.hbm %s1, %s311
        %s313 = scalar_lea.vmem [#allocation2], 57
        %s314 = scalar_lea.sflag [#allocation3], 57
        // Predicated region
        $region73: #{tpu_custom_call.1} parent=11 // pred_check
          _
        $region74: #{tpu_custom_call.1} parent=11 // pred_check_branch
          %316 = sbr.rel target = $region76
        $region75: #{tpu_custom_call.1} parent=11 // pred_region
          %317 = sst [smem:[#allocation10]] [#allocation41]
          %318 = sst [smem:[#allocation11]] [#allocation40]
        $region76: #{tpu_custom_call.1} parent=11 // pred_fallthru
          _
        %320 = shalt.err (0)
        %s322 = sshll.u32 %s313, 4
        %s323 = int_to_ptr.vmem [resolvable:$true] %s322
        %325 = dma.hbm_to_vmem [thread:$0]  %s312, 16, %s323, %s314
        %s326 = sadd.s32 %s54, 2
        %s327 = smul.u32 %s326, 128
        %s328 = sld [smem:[#allocation5 + %s327]]
        %s329 = smul.addr %s328, 16
        %s330 = scalar_lea.hbm %s1, %s329
        %s331 = scalar_lea.vmem [#allocation2], 2
        %s332 = scalar_lea.sflag [#allocation3], 2
        // Predicated region
        $region77: #{tpu_custom_call.1} parent=11 // pred_check
          _
        $region78: #{tpu_custom_call.1} parent=11 // pred_check_branch
          %334 = sbr.rel target = $region80
        $region79: #{tpu_custom_call.1} parent=11 // pred_region
          %335 = sst [smem:[#allocation10]] [#allocation43]
          %336 = sst [smem:[#allocation11]] [#allocation42]
        $region80: #{tpu_custom_call.1} parent=11 // pred_fallthru
          _
        %338 = shalt.err (0)
        %s340 = sshll.u32 %s331, 4
        %s341 = int_to_ptr.vmem [resolvable:$true] %s340
        %343 = dma.hbm_to_vmem [thread:$0]  %s330, 16, %s341, %s332
        %s344 = sadd.s32 %s327, 1
        %s345 = sld [smem:[#allocation5 + %s344]]
        %s346 = smul.addr %s345, 16
        %s347 = scalar_lea.hbm %s1, %s346
        %s348 = scalar_lea.vmem [#allocation2], 10
        %s349 = scalar_lea.sflag [#allocation3], 10
        // Predicated region
        $region81: #{tpu_custom_call.1} parent=11 // pred_check
          _
        $region82: #{tpu_custom_call.1} parent=11 // pred_check_branch
          %351 = sbr.rel target = $region84
        $region83: #{tpu_custom_call.1} parent=11 // pred_region
          %352 = sst [smem:[#allocation10]] [#allocation45]
          %353 = sst [smem:[#allocation11]] [#allocation44]
        $region84: #{tpu_custom_call.1} parent=11 // pred_fallthru
          _
        %355 = shalt.err (0)
        %s357 = sshll.u32 %s348, 4
        %s358 = int_to_ptr.vmem [resolvable:$true] %s357
        %360 = dma.hbm_to_vmem [thread:$0]  %s347, 16, %s358, %s349
        %s361 = sadd.s32 %s327, 2
        %s362 = sld [smem:[#allocation5 + %s361]]
        %s363 = smul.addr %s362, 16
        %s364 = scalar_lea.hbm %s1, %s363
        %s365 = scalar_lea.vmem [#allocation2], 18
        %s366 = scalar_lea.sflag [#allocation3], 18
        // Predicated region
        $region85: #{tpu_custom_call.1} parent=11 // pred_check
          _
        $region86: #{tpu_custom_call.1} parent=11 // pred_check_branch
          %368 = sbr.rel target = $region88
        $region87: #{tpu_custom_call.1} parent=11 // pred_region
          %369 = sst [smem:[#allocation10]] [#allocation47]
          %370 = sst [smem:[#allocation11]] [#allocation46]
        $region88: #{tpu_custom_call.1} parent=11 // pred_fallthru
          _
        %372 = shalt.err (0)
        %s374 = sshll.u32 %s365, 4
        %s375 = int_to_ptr.vmem [resolvable:$true] %s374
        %377 = dma.hbm_to_vmem [thread:$0]  %s364, 16, %s375, %s366
        %s378 = sadd.s32 %s327, 3
        %s379 = sld [smem:[#allocation5 + %s378]]
        %s380 = smul.addr %s379, 16
        %s381 = scalar_lea.hbm %s1, %s380
        %s382 = scalar_lea.vmem [#allocation2], 26
        %s383 = scalar_lea.sflag [#allocation3], 26
        // Predicated region
        $region89: #{tpu_custom_call.1} parent=11 // pred_check
          _
        $region90: #{tpu_custom_call.1} parent=11 // pred_check_branch
          %385 = sbr.rel target = $region92
        $region91: #{tpu_custom_call.1} parent=11 // pred_region
          %386 = sst [smem:[#allocation10]] [#allocation49]
          %387 = sst [smem:[#allocation11]] [#allocation48]
        $region92: #{tpu_custom_call.1} parent=11 // pred_fallthru
          _
        %389 = shalt.err (0)
        %s391 = sshll.u32 %s382, 4
        %s392 = int_to_ptr.vmem [resolvable:$true] %s391
        %394 = dma.hbm_to_vmem [thread:$0]  %s381, 16, %s392, %s383
        %s395 = sadd.s32 %s327, 4
        %s396 = sld [smem:[#allocation5 + %s395]]
        %s397 = smul.addr %s396, 16
        %s398 = scalar_lea.hbm %s1, %s397
        %s399 = scalar_lea.vmem [#allocation2], 34
        %s400 = scalar_lea.sflag [#allocation3], 34
        // Predicated region
        $region93: #{tpu_custom_call.1} parent=11 // pred_check
          _
        $region94: #{tpu_custom_call.1} parent=11 // pred_check_branch
          %402 = sbr.rel target = $region96
        $region95: #{tpu_custom_call.1} parent=11 // pred_region
          %403 = sst [smem:[#allocation10]] [#allocation51]
          %404 = sst [smem:[#allocation11]] [#allocation50]
        $region96: #{tpu_custom_call.1} parent=11 // pred_fallthru
          _
        %406 = shalt.err (0)
        %s408 = sshll.u32 %s399, 4
        %s409 = int_to_ptr.vmem [resolvable:$true] %s408
        %411 = dma.hbm_to_vmem [thread:$0]  %s398, 16, %s409, %s400
        %s412 = sadd.s32 %s327, 5
        %s413 = sld [smem:[#allocation5 + %s412]]
        %s414 = smul.addr %s413, 16
        %s415 = scalar_lea.hbm %s1, %s414
        %s416 = scalar_lea.vmem [#allocation2], 42
        %s417 = scalar_lea.sflag [#allocation3], 42
        // Predicated region
        $region97: #{tpu_custom_call.1} parent=11 // pred_check
          _
        $region98: #{tpu_custom_call.1} parent=11 // pred_check_branch
          %419 = sbr.rel target = $region100
        $region99: #{tpu_custom_call.1} parent=11 // pred_region
          %420 = sst [smem:[#allocation10]] [#allocation53]
          %421 = sst [smem:[#allocation11]] [#allocation52]
        $region100: #{tpu_custom_call.1} parent=11 // pred_fallthru
          _
        %423 = shalt.err (0)
        %s425 = sshll.u32 %s416, 4
        %s426 = int_to_ptr.vmem [resolvable:$true] %s425
        %428 = dma.hbm_to_vmem [thread:$0]  %s415, 16, %s426, %s417
        %s429 = sadd.s32 %s327, 6
        %s430 = sld [smem:[#allocation5 + %s429]]
        %s431 = smul.addr %s430, 16
        %s432 = scalar_lea.hbm %s1, %s431
        %s433 = scalar_lea.vmem [#allocation2], 50
        %s434 = scalar_lea.sflag [#allocation3], 50
        // Predicated region
        $region101: #{tpu_custom_call.1} parent=11 // pred_check
          _
        $region102: #{tpu_custom_call.1} parent=11 // pred_check_branch
          %436 = sbr.rel target = $region104
        $region103: #{tpu_custom_call.1} parent=11 // pred_region
          %437 = sst [smem:[#allocation10]] [#allocation55]
          %438 = sst [smem:[#allocation11]] [#allocation54]
        $region104: #{tpu_custom_call.1} parent=11 // pred_fallthru
          _
        %440 = shalt.err (0)
        %s442 = sshll.u32 %s433, 4
        %s443 = int_to_ptr.vmem [resolvable:$true] %s442
        %445 = dma.hbm_to_vmem [thread:$0]  %s432, 16, %s443, %s434
        %s446 = sadd.s32 %s327, 7
        %s447 = sld [smem:[#allocation5 + %s446]]
        %s448 = smul.addr %s447, 16
        %s449 = scalar_lea.hbm %s1, %s448
        %s450 = scalar_lea.vmem [#allocation2], 58
        %s451 = scalar_lea.sflag [#allocation3], 58
        // Predicated region
        $region105: #{tpu_custom_call.1} parent=11 // pred_check
          _
        $region106: #{tpu_custom_call.1} parent=11 // pred_check_branch
          %453 = sbr.rel target = $region108
        $region107: #{tpu_custom_call.1} parent=11 // pred_region
          %454 = sst [smem:[#allocation10]] [#allocation57]
          %455 = sst [smem:[#allocation11]] [#allocation56]
        $region108: #{tpu_custom_call.1} parent=11 // pred_fallthru
          _
        %457 = shalt.err (0)
        %s459 = sshll.u32 %s450, 4
        %s460 = int_to_ptr.vmem [resolvable:$true] %s459
        %462 = dma.hbm_to_vmem [thread:$0]  %s449, 16, %s460, %s451
        %s463 = sadd.s32 %s54, 3
        %s464 = smul.u32 %s463, 128
        %s465 = sld [smem:[#allocation5 + %s464]]
        %s466 = smul.addr %s465, 16
        %s467 = scalar_lea.hbm %s1, %s466
        %s468 = scalar_lea.vmem [#allocation2], 3
        %s469 = scalar_lea.sflag [#allocation3], 3
        // Predicated region
        $region109: #{tpu_custom_call.1} parent=11 // pred_check
          _
        $region110: #{tpu_custom_call.1} parent=11 // pred_check_branch
          %471 = sbr.rel target = $region112
        $region111: #{tpu_custom_call.1} parent=11 // pred_region
          %472 = sst [smem:[#allocation10]] [#allocation59]
          %473 = sst [smem:[#allocation11]] [#allocation58]
        $region112: #{tpu_custom_call.1} parent=11 // pred_fallthru
          _
        %475 = shalt.err (0)
        %s477 = sshll.u32 %s468, 4
        %s478 = int_to_ptr.vmem [resolvable:$true] %s477
        %480 = dma.hbm_to_vmem [thread:$0]  %s467, 16, %s478, %s469
        %s481 = sadd.s32 %s464, 1
        %s482 = sld [smem:[#allocation5 + %s481]]
        %s483 = smul.addr %s482, 16
        %s484 = scalar_lea.hbm %s1, %s483
        %s485 = scalar_lea.vmem [#allocation2], 11
        %s486 = scalar_lea.sflag [#allocation3], 11
        // Predicated region
        $region113: #{tpu_custom_call.1} parent=11 // pred_check
          _
        $region114: #{tpu_custom_call.1} parent=11 // pred_check_branch
          %488 = sbr.rel target = $region116
        $region115: #{tpu_custom_call.1} parent=11 // pred_region
          %489 = sst [smem:[#allocation10]] [#allocation61]
          %490 = sst [smem:[#allocation11]] [#allocation60]
        $region116: #{tpu_custom_call.1} parent=11 // pred_fallthru
          _
        %492 = shalt.err (0)
        %s494 = sshll.u32 %s485, 4
        %s495 = int_to_ptr.vmem [resolvable:$true] %s494
        %497 = dma.hbm_to_vmem [thread:$0]  %s484, 16, %s495, %s486
        %s498 = sadd.s32 %s464, 2
        %s499 = sld [smem:[#allocation5 + %s498]]
        %s500 = smul.addr %s499, 16
        %s501 = scalar_lea.hbm %s1, %s500
        %s502 = scalar_lea.vmem [#allocation2], 19
        %s503 = scalar_lea.sflag [#allocation3], 19
        // Predicated region
        $region117: #{tpu_custom_call.1} parent=11 // pred_check
          _
        $region118: #{tpu_custom_call.1} parent=11 // pred_check_branch
          %505 = sbr.rel target = $region120
        $region119: #{tpu_custom_call.1} parent=11 // pred_region
          %506 = sst [smem:[#allocation10]] [#allocation63]
          %507 = sst [smem:[#allocation11]] [#allocation62]
        $region120: #{tpu_custom_call.1} parent=11 // pred_fallthru
          _
        %509 = shalt.err (0)
        %s511 = sshll.u32 %s502, 4
        %s512 = int_to_ptr.vmem [resolvable:$true] %s511
        %514 = dma.hbm_to_vmem [thread:$0]  %s501, 16, %s512, %s503
        %s515 = sadd.s32 %s464, 3
        %s516 = sld [smem:[#allocation5 + %s515]]
        %s517 = smul.addr %s516, 16
        %s518 = scalar_lea.hbm %s1, %s517
        %s519 = scalar_lea.vmem [#allocation2], 27
        %s520 = scalar_lea.sflag [#allocation3], 27
        // Predicated region
        $region121: #{tpu_custom_call.1} parent=11 // pred_check
          _
        $region122: #{tpu_custom_call.1} parent=11 // pred_check_branch
          %522 = sbr.rel target = $region124
        $region123: #{tpu_custom_call.1} parent=11 // pred_region
          %523 = sst [smem:[#allocation10]] [#allocation65]
          %524 = sst [smem:[#allocation11]] [#allocation64]
        $region124: #{tpu_custom_call.1} parent=11 // pred_fallthru
          _
        %526 = shalt.err (0)
        %s528 = sshll.u32 %s519, 4
        %s529 = int_to_ptr.vmem [resolvable:$true] %s528
        %531 = dma.hbm_to_vmem [thread:$0]  %s518, 16, %s529, %s520
        %s532 = sadd.s32 %s464, 4
        %s533 = sld [smem:[#allocation5 + %s532]]
        %s534 = smul.addr %s533, 16
        %s535 = scalar_lea.hbm %s1, %s534
        %s536 = scalar_lea.vmem [#allocation2], 35
        %s537 = scalar_lea.sflag [#allocation3], 35
        // Predicated region
        $region125: #{tpu_custom_call.1} parent=11 // pred_check
          _
        $region126: #{tpu_custom_call.1} parent=11 // pred_check_branch
          %539 = sbr.rel target = $region128
        $region127: #{tpu_custom_call.1} parent=11 // pred_region
          %540 = sst [smem:[#allocation10]] [#allocation67]
          %541 = sst [smem:[#allocation11]] [#allocation66]
        $region128: #{tpu_custom_call.1} parent=11 // pred_fallthru
          _
        %543 = shalt.err (0)
        %s545 = sshll.u32 %s536, 4
        %s546 = int_to_ptr.vmem [resolvable:$true] %s545
        %548 = dma.hbm_to_vmem [thread:$0]  %s535, 16, %s546, %s537
        %s549 = sadd.s32 %s464, 5
        %s550 = sld [smem:[#allocation5 + %s549]]
        %s551 = smul.addr %s550, 16
        %s552 = scalar_lea.hbm %s1, %s551
        %s553 = scalar_lea.vmem [#allocation2], 43
        %s554 = scalar_lea.sflag [#allocation3], 43
        // Predicated region
        $region129: #{tpu_custom_call.1} parent=11 // pred_check
          _
        $region130: #{tpu_custom_call.1} parent=11 // pred_check_branch
          %556 = sbr.rel target = $region132
        $region131: #{tpu_custom_call.1} parent=11 // pred_region
          %557 = sst [smem:[#allocation10]] [#allocation69]
          %558 = sst [smem:[#allocation11]] [#allocation68]
        $region132: #{tpu_custom_call.1} parent=11 // pred_fallthru
          _
        %560 = shalt.err (0)
        %s562 = sshll.u32 %s553, 4
        %s563 = int_to_ptr.vmem [resolvable:$true] %s562
        %565 = dma.hbm_to_vmem [thread:$0]  %s552, 16, %s563, %s554
        %s566 = sadd.s32 %s464, 6
        %s567 = sld [smem:[#allocation5 + %s566]]
        %s568 = smul.addr %s567, 16
        %s569 = scalar_lea.hbm %s1, %s568
        %s570 = scalar_lea.vmem [#allocation2], 51
        %s571 = scalar_lea.sflag [#allocation3], 51
        // Predicated region
        $region133: #{tpu_custom_call.1} parent=11 // pred_check
          _
        $region134: #{tpu_custom_call.1} parent=11 // pred_check_branch
          %573 = sbr.rel target = $region136
        $region135: #{tpu_custom_call.1} parent=11 // pred_region
          %574 = sst [smem:[#allocation10]] [#allocation71]
          %575 = sst [smem:[#allocation11]] [#allocation70]
        $region136: #{tpu_custom_call.1} parent=11 // pred_fallthru
          _
        %577 = shalt.err (0)
        %s579 = sshll.u32 %s570, 4
        %s580 = int_to_ptr.vmem [resolvable:$true] %s579
        %582 = dma.hbm_to_vmem [thread:$0]  %s569, 16, %s580, %s571
        %s583 = sadd.s32 %s464, 7
        %s584 = sld [smem:[#allocation5 + %s583]]
        %s585 = smul.addr %s584, 16
        %s586 = scalar_lea.hbm %s1, %s585
        %s587 = scalar_lea.vmem [#allocation2], 59
        %s588 = scalar_lea.sflag [#allocation3], 59
        // Predicated region
        $region137: #{tpu_custom_call.1} parent=11 // pred_check
          _
        $region138: #{tpu_custom_call.1} parent=11 // pred_check_branch
          %590 = sbr.rel target = $region140
        $region139: #{tpu_custom_call.1} parent=11 // pred_region
          %591 = sst [smem:[#allocation10]] [#allocation73]
          %592 = sst [smem:[#allocation11]] [#allocation72]
        $region140: #{tpu_custom_call.1} parent=11 // pred_fallthru
          _
        %594 = shalt.err (0)
        %s596 = sshll.u32 %s587, 4
        %s597 = int_to_ptr.vmem [resolvable:$true] %s596
        %599 = dma.hbm_to_vmem [thread:$0]  %s586, 16, %s597, %s588
        %s600 = sadd.s32 %s54, 4
        %s601 = smul.u32 %s600, 128
        %s602 = sld [smem:[#allocation5 + %s601]]
        %s603 = smul.addr %s602, 16
        %s604 = scalar_lea.hbm %s1, %s603
        %s605 = scalar_lea.vmem [#allocation2], 4
        %s606 = scalar_lea.sflag [#allocation3], 4
        // Predicated region
        $region141: #{tpu_custom_call.1} parent=11 // pred_check
          _
        $region142: #{tpu_custom_call.1} parent=11 // pred_check_branch
          %608 = sbr.rel target = $region144
        $region143: #{tpu_custom_call.1} parent=11 // pred_region
          %609 = sst [smem:[#allocation10]] [#allocation75]
          %610 = sst [smem:[#allocation11]] [#allocation74]
        $region144: #{tpu_custom_call.1} parent=11 // pred_fallthru
          _
        %612 = shalt.err (0)
        %s614 = sshll.u32 %s605, 4
        %s615 = int_to_ptr.vmem [resolvable:$true] %s614
        %617 = dma.hbm_to_vmem [thread:$0]  %s604, 16, %s615, %s606
        %s618 = sadd.s32 %s601, 1
        %s619 = sld [smem:[#allocation5 + %s618]]
        %s620 = smul.addr %s619, 16
        %s621 = scalar_lea.hbm %s1, %s620
        %s622 = scalar_lea.vmem [#allocation2], 12
        %s623 = scalar_lea.sflag [#allocation3], 12
        // Predicated region
        $region145: #{tpu_custom_call.1} parent=11 // pred_check
          _
        $region146: #{tpu_custom_call.1} parent=11 // pred_check_branch
          %625 = sbr.rel target = $region148
        $region147: #{tpu_custom_call.1} parent=11 // pred_region
          %626 = sst [smem:[#allocation10]] [#allocation77]
          %627 = sst [smem:[#allocation11]] [#allocation76]
        $region148: #{tpu_custom_call.1} parent=11 // pred_fallthru
          _
        %629 = shalt.err (0)
        %s631 = sshll.u32 %s622, 4
        %s632 = int_to_ptr.vmem [resolvable:$true] %s631
        %634 = dma.hbm_to_vmem [thread:$0]  %s621, 16, %s632, %s623
        %s635 = sadd.s32 %s601, 2
        %s636 = sld [smem:[#allocation5 + %s635]]
        %s637 = smul.addr %s636, 16
        %s638 = scalar_lea.hbm %s1, %s637
        %s639 = scalar_lea.vmem [#allocation2], 20
        %s640 = scalar_lea.sflag [#allocation3], 20
        // Predicated region
        $region149: #{tpu_custom_call.1} parent=11 // pred_check
          _
        $region150: #{tpu_custom_call.1} parent=11 // pred_check_branch
          %642 = sbr.rel target = $region152
        $region151: #{tpu_custom_call.1} parent=11 // pred_region
          %643 = sst [smem:[#allocation10]] [#allocation79]
          %644 = sst [smem:[#allocation11]] [#allocation78]
        $region152: #{tpu_custom_call.1} parent=11 // pred_fallthru
          _
        %646 = shalt.err (0)
        %s648 = sshll.u32 %s639, 4
        %s649 = int_to_ptr.vmem [resolvable:$true] %s648
        %651 = dma.hbm_to_vmem [thread:$0]  %s638, 16, %s649, %s640
        %s652 = sadd.s32 %s601, 3
        %s653 = sld [smem:[#allocation5 + %s652]]
        %s654 = smul.addr %s653, 16
        %s655 = scalar_lea.hbm %s1, %s654
        %s656 = scalar_lea.vmem [#allocation2], 28
        %s657 = scalar_lea.sflag [#allocation3], 28
        // Predicated region
        $region153: #{tpu_custom_call.1} parent=11 // pred_check
          _
        $region154: #{tpu_custom_call.1} parent=11 // pred_check_branch
          %659 = sbr.rel target = $region156
        $region155: #{tpu_custom_call.1} parent=11 // pred_region
          %660 = sst [smem:[#allocation10]] [#allocation81]
          %661 = sst [smem:[#allocation11]] [#allocation80]
        $region156: #{tpu_custom_call.1} parent=11 // pred_fallthru
          _
        %663 = shalt.err (0)
        %s665 = sshll.u32 %s656, 4
        %s666 = int_to_ptr.vmem [resolvable:$true] %s665
        %668 = dma.hbm_to_vmem [thread:$0]  %s655, 16, %s666, %s657
        %s669 = sadd.s32 %s601, 4
        %s670 = sld [smem:[#allocation5 + %s669]]
        %s671 = smul.addr %s670, 16
        %s672 = scalar_lea.hbm %s1, %s671
        %s673 = scalar_lea.vmem [#allocation2], 36
        %s674 = scalar_lea.sflag [#allocation3], 36
        // Predicated region
        $region157: #{tpu_custom_call.1} parent=11 // pred_check
          _
        $region158: #{tpu_custom_call.1} parent=11 // pred_check_branch
          %676 = sbr.rel target = $region160
        $region159: #{tpu_custom_call.1} parent=11 // pred_region
          %677 = sst [smem:[#allocation10]] [#allocation83]
          %678 = sst [smem:[#allocation11]] [#allocation82]
        $region160: #{tpu_custom_call.1} parent=11 // pred_fallthru
          _
        %680 = shalt.err (0)
        %s682 = sshll.u32 %s673, 4
        %s683 = int_to_ptr.vmem [resolvable:$true] %s682
        %685 = dma.hbm_to_vmem [thread:$0]  %s672, 16, %s683, %s674
        %s686 = sadd.s32 %s601, 5
        %s687 = sld [smem:[#allocation5 + %s686]]
        %s688 = smul.addr %s687, 16
        %s689 = scalar_lea.hbm %s1, %s688
        %s690 = scalar_lea.vmem [#allocation2], 44
        %s691 = scalar_lea.sflag [#allocation3], 44
        // Predicated region
        $region161: #{tpu_custom_call.1} parent=11 // pred_check
          _
        $region162: #{tpu_custom_call.1} parent=11 // pred_check_branch
          %693 = sbr.rel target = $region164
        $region163: #{tpu_custom_call.1} parent=11 // pred_region
          %694 = sst [smem:[#allocation10]] [#allocation85]
          %695 = sst [smem:[#allocation11]] [#allocation84]
        $region164: #{tpu_custom_call.1} parent=11 // pred_fallthru
          _
        %697 = shalt.err (0)
        %s699 = sshll.u32 %s690, 4
        %s700 = int_to_ptr.vmem [resolvable:$true] %s699
        %702 = dma.hbm_to_vmem [thread:$0]  %s689, 16, %s700, %s691
        %s703 = sadd.s32 %s601, 6
        %s704 = sld [smem:[#allocation5 + %s703]]
        %s705 = smul.addr %s704, 16
        %s706 = scalar_lea.hbm %s1, %s705
        %s707 = scalar_lea.vmem [#allocation2], 52
        %s708 = scalar_lea.sflag [#allocation3], 52
        // Predicated region
        $region165: #{tpu_custom_call.1} parent=11 // pred_check
          _
        $region166: #{tpu_custom_call.1} parent=11 // pred_check_branch
          %710 = sbr.rel target = $region168
        $region167: #{tpu_custom_call.1} parent=11 // pred_region
          %711 = sst [smem:[#allocation10]] [#allocation87]
          %712 = sst [smem:[#allocation11]] [#allocation86]
        $region168: #{tpu_custom_call.1} parent=11 // pred_fallthru
          _
        %714 = shalt.err (0)
        %s716 = sshll.u32 %s707, 4
        %s717 = int_to_ptr.vmem [resolvable:$true] %s716
        %719 = dma.hbm_to_vmem [thread:$0]  %s706, 16, %s717, %s708
        %s720 = sadd.s32 %s601, 7
        %s721 = sld [smem:[#allocation5 + %s720]]
        %s722 = smul.addr %s721, 16
        %s723 = scalar_lea.hbm %s1, %s722
        %s724 = scalar_lea.vmem [#allocation2], 60
        %s725 = scalar_lea.sflag [#allocation3], 60
        // Predicated region
        $region169: #{tpu_custom_call.1} parent=11 // pred_check
          _
        $region170: #{tpu_custom_call.1} parent=11 // pred_check_branch
          %727 = sbr.rel target = $region172
        $region171: #{tpu_custom_call.1} parent=11 // pred_region
          %728 = sst [smem:[#allocation10]] [#allocation89]
          %729 = sst [smem:[#allocation11]] [#allocation88]
        $region172: #{tpu_custom_call.1} parent=11 // pred_fallthru
          _
        %731 = shalt.err (0)
        %s733 = sshll.u32 %s724, 4
        %s734 = int_to_ptr.vmem [resolvable:$true] %s733
        %736 = dma.hbm_to_vmem [thread:$0]  %s723, 16, %s734, %s725
        %s737 = sadd.s32 %s54, 5
        %s738 = smul.u32 %s737, 128
        %s739 = sld [smem:[#allocation5 + %s738]]
        %s740 = smul.addr %s739, 16
        %s741 = scalar_lea.hbm %s1, %s740
        %s742 = scalar_lea.vmem [#allocation2], 5
        %s743 = scalar_lea.sflag [#allocation3], 5
        // Predicated region
        $region173: #{tpu_custom_call.1} parent=11 // pred_check
          _
        $region174: #{tpu_custom_call.1} parent=11 // pred_check_branch
          %745 = sbr.rel target = $region176
        $region175: #{tpu_custom_call.1} parent=11 // pred_region
          %746 = sst [smem:[#allocation10]] [#allocation91]
          %747 = sst [smem:[#allocation11]] [#allocation90]
        $region176: #{tpu_custom_call.1} parent=11 // pred_fallthru
          _
        %749 = shalt.err (0)
        %s751 = sshll.u32 %s742, 4
        %s752 = int_to_ptr.vmem [resolvable:$true] %s751
        %754 = dma.hbm_to_vmem [thread:$0]  %s741, 16, %s752, %s743
        %s755 = sadd.s32 %s738, 1
        %s756 = sld [smem:[#allocation5 + %s755]]
        %s757 = smul.addr %s756, 16
        %s758 = scalar_lea.hbm %s1, %s757
        %s759 = scalar_lea.vmem [#allocation2], 13
        %s760 = scalar_lea.sflag [#allocation3], 13
        // Predicated region
        $region177: #{tpu_custom_call.1} parent=11 // pred_check
          _
        $region178: #{tpu_custom_call.1} parent=11 // pred_check_branch
          %762 = sbr.rel target = $region180
        $region179: #{tpu_custom_call.1} parent=11 // pred_region
          %763 = sst [smem:[#allocation10]] [#allocation93]
          %764 = sst [smem:[#allocation11]] [#allocation92]
        $region180: #{tpu_custom_call.1} parent=11 // pred_fallthru
          _
        %766 = shalt.err (0)
        %s768 = sshll.u32 %s759, 4
        %s769 = int_to_ptr.vmem [resolvable:$true] %s768
        %771 = dma.hbm_to_vmem [thread:$0]  %s758, 16, %s769, %s760
        %s772 = sadd.s32 %s738, 2
        %s773 = sld [smem:[#allocation5 + %s772]]
        %s774 = smul.addr %s773, 16
        %s775 = scalar_lea.hbm %s1, %s774
        %s776 = scalar_lea.vmem [#allocation2], 21
        %s777 = scalar_lea.sflag [#allocation3], 21
        // Predicated region
        $region181: #{tpu_custom_call.1} parent=11 // pred_check
          _
        $region182: #{tpu_custom_call.1} parent=11 // pred_check_branch
          %779 = sbr.rel target = $region184
        $region183: #{tpu_custom_call.1} parent=11 // pred_region
          %780 = sst [smem:[#allocation10]] [#allocation95]
          %781 = sst [smem:[#allocation11]] [#allocation94]
        $region184: #{tpu_custom_call.1} parent=11 // pred_fallthru
          _
        %783 = shalt.err (0)
        %s785 = sshll.u32 %s776, 4
        %s786 = int_to_ptr.vmem [resolvable:$true] %s785
        %788 = dma.hbm_to_vmem [thread:$0]  %s775, 16, %s786, %s777
        %s789 = sadd.s32 %s738, 3
        %s790 = sld [smem:[#allocation5 + %s789]]
        %s791 = smul.addr %s790, 16
        %s792 = scalar_lea.hbm %s1, %s791
        %s793 = scalar_lea.vmem [#allocation2], 29
        %s794 = scalar_lea.sflag [#allocation3], 29
        // Predicated region
        $region185: #{tpu_custom_call.1} parent=11 // pred_check
          _
        $region186: #{tpu_custom_call.1} parent=11 // pred_check_branch
          %796 = sbr.rel target = $region188
        $region187: #{tpu_custom_call.1} parent=11 // pred_region
          %797 = sst [smem:[#allocation10]] [#allocation97]
          %798 = sst [smem:[#allocation11]] [#allocation96]
        $region188: #{tpu_custom_call.1} parent=11 // pred_fallthru
          _
        %800 = shalt.err (0)
        %s802 = sshll.u32 %s793, 4
        %s803 = int_to_ptr.vmem [resolvable:$true] %s802
        %805 = dma.hbm_to_vmem [thread:$0]  %s792, 16, %s803, %s794
        %s806 = sadd.s32 %s738, 4
        %s807 = sld [smem:[#allocation5 + %s806]]
        %s808 = smul.addr %s807, 16
        %s809 = scalar_lea.hbm %s1, %s808
        %s810 = scalar_lea.vmem [#allocation2], 37
        %s811 = scalar_lea.sflag [#allocation3], 37
        // Predicated region
        $region189: #{tpu_custom_call.1} parent=11 // pred_check
          _
        $region190: #{tpu_custom_call.1} parent=11 // pred_check_branch
          %813 = sbr.rel target = $region192
        $region191: #{tpu_custom_call.1} parent=11 // pred_region
          %814 = sst [smem:[#allocation10]] [#allocation99]
          %815 = sst [smem:[#allocation11]] [#allocation98]
        $region192: #{tpu_custom_call.1} parent=11 // pred_fallthru
          _
        %817 = shalt.err (0)
        %s819 = sshll.u32 %s810, 4
        %s820 = int_to_ptr.vmem [resolvable:$true] %s819
        %822 = dma.hbm_to_vmem [thread:$0]  %s809, 16, %s820, %s811
        %s823 = sadd.s32 %s738, 5
        %s824 = sld [smem:[#allocation5 + %s823]]
        %s825 = smul.addr %s824, 16
        %s826 = scalar_lea.hbm %s1, %s825
        %s827 = scalar_lea.vmem [#allocation2], 45
        %s828 = scalar_lea.sflag [#allocation3], 45
        // Predicated region
        $region193: #{tpu_custom_call.1} parent=11 // pred_check
          _
        $region194: #{tpu_custom_call.1} parent=11 // pred_check_branch
          %830 = sbr.rel target = $region196
        $region195: #{tpu_custom_call.1} parent=11 // pred_region
          %831 = sst [smem:[#allocation10]] [#allocation101]
          %832 = sst [smem:[#allocation11]] [#allocation100]
        $region196: #{tpu_custom_call.1} parent=11 // pred_fallthru
          _
        %834 = shalt.err (0)
        %s836 = sshll.u32 %s827, 4
        %s837 = int_to_ptr.vmem [resolvable:$true] %s836
        %839 = dma.hbm_to_vmem [thread:$0]  %s826, 16, %s837, %s828
        %s840 = sadd.s32 %s738, 6
        %s841 = sld [smem:[#allocation5 + %s840]]
        %s842 = smul.addr %s841, 16
        %s843 = scalar_lea.hbm %s1, %s842
        %s844 = scalar_lea.vmem [#allocation2], 53
        %s845 = scalar_lea.sflag [#allocation3], 53
        // Predicated region
        $region197: #{tpu_custom_call.1} parent=11 // pred_check
          _
        $region198: #{tpu_custom_call.1} parent=11 // pred_check_branch
          %847 = sbr.rel target = $region200
        $region199: #{tpu_custom_call.1} parent=11 // pred_region
          %848 = sst [smem:[#allocation10]] [#allocation103]
          %849 = sst [smem:[#allocation11]] [#allocation102]
        $region200: #{tpu_custom_call.1} parent=11 // pred_fallthru
          _
        %851 = shalt.err (0)
        %s853 = sshll.u32 %s844, 4
        %s854 = int_to_ptr.vmem [resolvable:$true] %s853
        %856 = dma.hbm_to_vmem [thread:$0]  %s843, 16, %s854, %s845
        %s857 = sadd.s32 %s738, 7
        %s858 = sld [smem:[#allocation5 + %s857]]
        %s859 = smul.addr %s858, 16
        %s860 = scalar_lea.hbm %s1, %s859
        %s861 = scalar_lea.vmem [#allocation2], 61
        %s862 = scalar_lea.sflag [#allocation3], 61
        // Predicated region
        $region201: #{tpu_custom_call.1} parent=11 // pred_check
          _
        $region202: #{tpu_custom_call.1} parent=11 // pred_check_branch
          %864 = sbr.rel target = $region204
        $region203: #{tpu_custom_call.1} parent=11 // pred_region
          %865 = sst [smem:[#allocation10]] [#allocation105]
          %866 = sst [smem:[#allocation11]] [#allocation104]
        $region204: #{tpu_custom_call.1} parent=11 // pred_fallthru
          _
        %868 = shalt.err (0)
        %s870 = sshll.u32 %s861, 4
        %s871 = int_to_ptr.vmem [resolvable:$true] %s870
        %873 = dma.hbm_to_vmem [thread:$0]  %s860, 16, %s871, %s862
        %s874 = sadd.s32 %s54, 6
        %s875 = smul.u32 %s874, 128
        %s876 = sld [smem:[#allocation5 + %s875]]
        %s877 = smul.addr %s876, 16
        %s878 = scalar_lea.hbm %s1, %s877
        %s879 = scalar_lea.vmem [#allocation2], 6
        %s880 = scalar_lea.sflag [#allocation3], 6
        // Predicated region
        $region205: #{tpu_custom_call.1} parent=11 // pred_check
          _
        $region206: #{tpu_custom_call.1} parent=11 // pred_check_branch
          %882 = sbr.rel target = $region208
        $region207: #{tpu_custom_call.1} parent=11 // pred_region
          %883 = sst [smem:[#allocation10]] [#allocation107]
          %884 = sst [smem:[#allocation11]] [#allocation106]
        $region208: #{tpu_custom_call.1} parent=11 // pred_fallthru
          _
        %886 = shalt.err (0)
        %s888 = sshll.u32 %s879, 4
        %s889 = int_to_ptr.vmem [resolvable:$true] %s888
        %891 = dma.hbm_to_vmem [thread:$0]  %s878, 16, %s889, %s880
        %s892 = sadd.s32 %s875, 1
        %s893 = sld [smem:[#allocation5 + %s892]]
        %s894 = smul.addr %s893, 16
        %s895 = scalar_lea.hbm %s1, %s894
        %s896 = scalar_lea.vmem [#allocation2], 14
        %s897 = scalar_lea.sflag [#allocation3], 14
        // Predicated region
        $region209: #{tpu_custom_call.1} parent=11 // pred_check
          _
        $region210: #{tpu_custom_call.1} parent=11 // pred_check_branch
          %899 = sbr.rel target = $region212
        $region211: #{tpu_custom_call.1} parent=11 // pred_region
          %900 = sst [smem:[#allocation10]] [#allocation109]
          %901 = sst [smem:[#allocation11]] [#allocation108]
        $region212: #{tpu_custom_call.1} parent=11 // pred_fallthru
          _
        %903 = shalt.err (0)
        %s905 = sshll.u32 %s896, 4
        %s906 = int_to_ptr.vmem [resolvable:$true] %s905
        %908 = dma.hbm_to_vmem [thread:$0]  %s895, 16, %s906, %s897
        %s909 = sadd.s32 %s875, 2
        %s910 = sld [smem:[#allocation5 + %s909]]
        %s911 = smul.addr %s910, 16
        %s912 = scalar_lea.hbm %s1, %s911
        %s913 = scalar_lea.vmem [#allocation2], 22
        %s914 = scalar_lea.sflag [#allocation3], 22
        // Predicated region
        $region213: #{tpu_custom_call.1} parent=11 // pred_check
          _
        $region214: #{tpu_custom_call.1} parent=11 // pred_check_branch
          %916 = sbr.rel target = $region216
        $region215: #{tpu_custom_call.1} parent=11 // pred_region
          %917 = sst [smem:[#allocation10]] [#allocation111]
          %918 = sst [smem:[#allocation11]] [#allocation110]
        $region216: #{tpu_custom_call.1} parent=11 // pred_fallthru
          _
        %920 = shalt.err (0)
        %s922 = sshll.u32 %s913, 4
        %s923 = int_to_ptr.vmem [resolvable:$true] %s922
        %925 = dma.hbm_to_vmem [thread:$0]  %s912, 16, %s923, %s914
        %s926 = sadd.s32 %s875, 3
        %s927 = sld [smem:[#allocation5 + %s926]]
        %s928 = smul.addr %s927, 16
        %s929 = scalar_lea.hbm %s1, %s928
        %s930 = scalar_lea.vmem [#allocation2], 30
        %s931 = scalar_lea.sflag [#allocation3], 30
        // Predicated region
        $region217: #{tpu_custom_call.1} parent=11 // pred_check
          _
        $region218: #{tpu_custom_call.1} parent=11 // pred_check_branch
          %933 = sbr.rel target = $region220
        $region219: #{tpu_custom_call.1} parent=11 // pred_region
          %934 = sst [smem:[#allocation10]] [#allocation113]
          %935 = sst [smem:[#allocation11]] [#allocation112]
        $region220: #{tpu_custom_call.1} parent=11 // pred_fallthru
          _
        %937 = shalt.err (0)
        %s939 = sshll.u32 %s930, 4
        %s940 = int_to_ptr.vmem [resolvable:$true] %s939
        %942 = dma.hbm_to_vmem [thread:$0]  %s929, 16, %s940, %s931
        %s943 = sadd.s32 %s875, 4
        %s944 = sld [smem:[#allocation5 + %s943]]
        %s945 = smul.addr %s944, 16
        %s946 = scalar_lea.hbm %s1, %s945
        %s947 = scalar_lea.vmem [#allocation2], 38
        %s948 = scalar_lea.sflag [#allocation3], 38
        // Predicated region
        $region221: #{tpu_custom_call.1} parent=11 // pred_check
          _
        $region222: #{tpu_custom_call.1} parent=11 // pred_check_branch
          %950 = sbr.rel target = $region224
        $region223: #{tpu_custom_call.1} parent=11 // pred_region
          %951 = sst [smem:[#allocation10]] [#allocation115]
          %952 = sst [smem:[#allocation11]] [#allocation114]
        $region224: #{tpu_custom_call.1} parent=11 // pred_fallthru
          _
        %954 = shalt.err (0)
        %s956 = sshll.u32 %s947, 4
        %s957 = int_to_ptr.vmem [resolvable:$true] %s956
        %959 = dma.hbm_to_vmem [thread:$0]  %s946, 16, %s957, %s948
        %s960 = sadd.s32 %s875, 5
        %s961 = sld [smem:[#allocation5 + %s960]]
        %s962 = smul.addr %s961, 16
        %s963 = scalar_lea.hbm %s1, %s962
        %s964 = scalar_lea.vmem [#allocation2], 46
        %s965 = scalar_lea.sflag [#allocation3], 46
        // Predicated region
        $region225: #{tpu_custom_call.1} parent=11 // pred_check
          _
        $region226: #{tpu_custom_call.1} parent=11 // pred_check_branch
          %967 = sbr.rel target = $region228
        $region227: #{tpu_custom_call.1} parent=11 // pred_region
          %968 = sst [smem:[#allocation10]] [#allocation117]
          %969 = sst [smem:[#allocation11]] [#allocation116]
        $region228: #{tpu_custom_call.1} parent=11 // pred_fallthru
          _
        %971 = shalt.err (0)
        %s973 = sshll.u32 %s964, 4
        %s974 = int_to_ptr.vmem [resolvable:$true] %s973
        %976 = dma.hbm_to_vmem [thread:$0]  %s963, 16, %s974, %s965
        %s977 = sadd.s32 %s875, 6
        %s978 = sld [smem:[#allocation5 + %s977]]
        %s979 = smul.addr %s978, 16
        %s980 = scalar_lea.hbm %s1, %s979
        %s981 = scalar_lea.vmem [#allocation2], 54
        %s982 = scalar_lea.sflag [#allocation3], 54
        // Predicated region
        $region229: #{tpu_custom_call.1} parent=11 // pred_check
          _
        $region230: #{tpu_custom_call.1} parent=11 // pred_check_branch
          %984 = sbr.rel target = $region232
        $region231: #{tpu_custom_call.1} parent=11 // pred_region
          %985 = sst [smem:[#allocation10]] [#allocation119]
          %986 = sst [smem:[#allocation11]] [#allocation118]
        $region232: #{tpu_custom_call.1} parent=11 // pred_fallthru
          _
        %988 = shalt.err (0)
        %s990 = sshll.u32 %s981, 4
        %s991 = int_to_ptr.vmem [resolvable:$true] %s990
        %993 = dma.hbm_to_vmem [thread:$0]  %s980, 16, %s991, %s982
        %s994 = sadd.s32 %s875, 7
        %s995 = sld [smem:[#allocation5 + %s994]]
        %s996 = smul.addr %s995, 16
        %s997 = scalar_lea.hbm %s1, %s996
        %s998 = scalar_lea.vmem [#allocation2], 62
        %s999 = scalar_lea.sflag [#allocation3], 62
        // Predicated region
        $region233: #{tpu_custom_call.1} parent=11 // pred_check
          _
        $region234: #{tpu_custom_call.1} parent=11 // pred_check_branch
          %1001 = sbr.rel target = $region236
        $region235: #{tpu_custom_call.1} parent=11 // pred_region
          %1002 = sst [smem:[#allocation10]] [#allocation121]
          %1003 = sst [smem:[#allocation11]] [#allocation120]
        $region236: #{tpu_custom_call.1} parent=11 // pred_fallthru
          _
        %1005 = shalt.err (0)
        %s1007 = sshll.u32 %s998, 4
        %s1008 = int_to_ptr.vmem [resolvable:$true] %s1007
        %1010 = dma.hbm_to_vmem [thread:$0]  %s997, 16, %s1008, %s999
        %s1011 = sadd.s32 %s54, 7
        %s1012 = smul.u32 %s1011, 128
        %s1013 = sld [smem:[#allocation5 + %s1012]]
        %s1014 = smul.addr %s1013, 16
        %s1015 = scalar_lea.hbm %s1, %s1014
        %s1016 = scalar_lea.vmem [#allocation2], 7
        %s1017 = scalar_lea.sflag [#allocation3], 7
        // Predicated region
        $region237: #{tpu_custom_call.1} parent=11 // pred_check
          _
        $region238: #{tpu_custom_call.1} parent=11 // pred_check_branch
          %1019 = sbr.rel target = $region240
        $region239: #{tpu_custom_call.1} parent=11 // pred_region
          %1020 = sst [smem:[#allocation10]] [#allocation123]
          %1021 = sst [smem:[#allocation11]] [#allocation122]
        $region240: #{tpu_custom_call.1} parent=11 // pred_fallthru
          _
        %1023 = shalt.err (0)
        %s1025 = sshll.u32 %s1016, 4
        %s1026 = int_to_ptr.vmem [resolvable:$true] %s1025
        %1028 = dma.hbm_to_vmem [thread:$0]  %s1015, 16, %s1026, %s1017
        %s1029 = sadd.s32 %s1012, 1
        %s1030 = sld [smem:[#allocation5 + %s1029]]
        %s1031 = smul.addr %s1030, 16
        %s1032 = scalar_lea.hbm %s1, %s1031
        %s1033 = scalar_lea.vmem [#allocation2], 15
        %s1034 = scalar_lea.sflag [#allocation3], 15
        // Predicated region
        $region241: #{tpu_custom_call.1} parent=11 // pred_check
          _
        $region242: #{tpu_custom_call.1} parent=11 // pred_check_branch
          %1036 = sbr.rel target = $region244
        $region243: #{tpu_custom_call.1} parent=11 // pred_region
          %1037 = sst [smem:[#allocation10]] [#allocation125]
          %1038 = sst [smem:[#allocation11]] [#allocation124]
        $region244: #{tpu_custom_call.1} parent=11 // pred_fallthru
          _
        %1040 = shalt.err (0)
        %s1042 = sshll.u32 %s1033, 4
        %s1043 = int_to_ptr.vmem [resolvable:$true] %s1042
        %1045 = dma.hbm_to_vmem [thread:$0]  %s1032, 16, %s1043, %s1034
        %s1046 = sadd.s32 %s1012, 2
        %s1047 = sld [smem:[#allocation5 + %s1046]]
        %s1048 = smul.addr %s1047, 16
        %s1049 = scalar_lea.hbm %s1, %s1048
        %s1050 = scalar_lea.vmem [#allocation2], 23
        %s1051 = scalar_lea.sflag [#allocation3], 23
        // Predicated region
        $region245: #{tpu_custom_call.1} parent=11 // pred_check
          _
        $region246: #{tpu_custom_call.1} parent=11 // pred_check_branch
          %1053 = sbr.rel target = $region248
        $region247: #{tpu_custom_call.1} parent=11 // pred_region
          %1054 = sst [smem:[#allocation10]] [#allocation127]
          %1055 = sst [smem:[#allocation11]] [#allocation126]
        $region248: #{tpu_custom_call.1} parent=11 // pred_fallthru
          _
        %1057 = shalt.err (0)
        %s1059 = sshll.u32 %s1050, 4
        %s1060 = int_to_ptr.vmem [resolvable:$true] %s1059
        %1062 = dma.hbm_to_vmem [thread:$0]  %s1049, 16, %s1060, %s1051
        %s1063 = sadd.s32 %s1012, 3
        %s1064 = sld [smem:[#allocation5 + %s1063]]
        %s1065 = smul.addr %s1064, 16
        %s1066 = scalar_lea.hbm %s1, %s1065
        %s1067 = scalar_lea.vmem [#allocation2], 31
        %s1068 = scalar_lea.sflag [#allocation3], 31
        // Predicated region
        $region249: #{tpu_custom_call.1} parent=11 // pred_check
          _
        $region250: #{tpu_custom_call.1} parent=11 // pred_check_branch
          %1070 = sbr.rel target = $region252
        $region251: #{tpu_custom_call.1} parent=11 // pred_region
          %1071 = sst [smem:[#allocation10]] [#allocation129]
          %1072 = sst [smem:[#allocation11]] [#allocation128]
        $region252: #{tpu_custom_call.1} parent=11 // pred_fallthru
          _
        %1074 = shalt.err (0)
        %s1076 = sshll.u32 %s1067, 4
        %s1077 = int_to_ptr.vmem [resolvable:$true] %s1076
        %1079 = dma.hbm_to_vmem [thread:$0]  %s1066, 16, %s1077, %s1068
        %s1080 = sadd.s32 %s1012, 4
        %s1081 = sld [smem:[#allocation5 + %s1080]]
        %s1082 = smul.addr %s1081, 16
        %s1083 = scalar_lea.hbm %s1, %s1082
        %s1084 = scalar_lea.vmem [#allocation2], 39
        %s1085 = scalar_lea.sflag [#allocation3], 39
        // Predicated region
        $region253: #{tpu_custom_call.1} parent=11 // pred_check
          _
        $region254: #{tpu_custom_call.1} parent=11 // pred_check_branch
          %1087 = sbr.rel target = $region256
        $region255: #{tpu_custom_call.1} parent=11 // pred_region
          %1088 = sst [smem:[#allocation10]] [#allocation131]
          %1089 = sst [smem:[#allocation11]] [#allocation130]
        $region256: #{tpu_custom_call.1} parent=11 // pred_fallthru
          _
        %1091 = shalt.err (0)
        %s1093 = sshll.u32 %s1084, 4
        %s1094 = int_to_ptr.vmem [resolvable:$true] %s1093
        %1096 = dma.hbm_to_vmem [thread:$0]  %s1083, 16, %s1094, %s1085
        %s1097 = sadd.s32 %s1012, 5
        %s1098 = sld [smem:[#allocation5 + %s1097]]
        %s1099 = smul.addr %s1098, 16
        %s1100 = scalar_lea.hbm %s1, %s1099
        %s1101 = scalar_lea.vmem [#allocation2], 47
        %s1102 = scalar_lea.sflag [#allocation3], 47
        // Predicated region
        $region257: #{tpu_custom_call.1} parent=11 // pred_check
          _
        $region258: #{tpu_custom_call.1} parent=11 // pred_check_branch
          %1104 = sbr.rel target = $region260
        $region259: #{tpu_custom_call.1} parent=11 // pred_region
          %1105 = sst [smem:[#allocation10]] [#allocation133]
          %1106 = sst [smem:[#allocation11]] [#allocation132]
        $region260: #{tpu_custom_call.1} parent=11 // pred_fallthru
          _
        %1108 = shalt.err (0)
        %s1110 = sshll.u32 %s1101, 4
        %s1111 = int_to_ptr.vmem [resolvable:$true] %s1110
        %1113 = dma.hbm_to_vmem [thread:$0]  %s1100, 16, %s1111, %s1102
        %s1114 = sadd.s32 %s1012, 6
        %s1115 = sld [smem:[#allocation5 + %s1114]]
        %s1116 = smul.addr %s1115, 16
        %s1117 = scalar_lea.hbm %s1, %s1116
        %s1118 = scalar_lea.vmem [#allocation2], 55
        %s1119 = scalar_lea.sflag [#allocation3], 55
        // Predicated region
        $region261: #{tpu_custom_call.1} parent=11 // pred_check
          _
        $region262: #{tpu_custom_call.1} parent=11 // pred_check_branch
          %1121 = sbr.rel target = $region264
        $region263: #{tpu_custom_call.1} parent=11 // pred_region
          %1122 = sst [smem:[#allocation10]] [#allocation135]
          %1123 = sst [smem:[#allocation11]] [#allocation134]
        $region264: #{tpu_custom_call.1} parent=11 // pred_fallthru
          _
        %1125 = shalt.err (0)
        %s1127 = sshll.u32 %s1118, 4
        %s1128 = int_to_ptr.vmem [resolvable:$true] %s1127
        %1130 = dma.hbm_to_vmem [thread:$0]  %s1117, 16, %s1128, %s1119
        %s1131 = sadd.s32 %s1012, 7
        %s1132 = sld [smem:[#allocation5 + %s1131]]
        %s1133 = smul.addr %s1132, 16
        %s1134 = scalar_lea.hbm %s1, %s1133
        %s1135 = scalar_lea.vmem [#allocation2], 63
        %s1136 = scalar_lea.sflag [#allocation3], 63
        // Predicated region
        $region265: #{tpu_custom_call.1} parent=11 // pred_check
          _
        $region266: #{tpu_custom_call.1} parent=11 // pred_check_branch
          %1138 = sbr.rel target = $region268
        $region267: #{tpu_custom_call.1} parent=11 // pred_region
          %1139 = sst [smem:[#allocation10]] [#allocation137]
          %1140 = sst [smem:[#allocation11]] [#allocation136]
        $region268: #{tpu_custom_call.1} parent=11 // pred_fallthru
          _
        %1142 = shalt.err (0)
        %s1144 = sshll.u32 %s1135, 4
        %s1145 = int_to_ptr.vmem [resolvable:$true] %s1144
        %1147 = dma.hbm_to_vmem [thread:$0]  %s1134, 16, %s1145, %s1136
        %s1148 = smul.u32 1, 1
        %s1149 = sshll.u32 %s1148, 4
        %1150 = dma.done [#allocation3], %s1149
        %s1151 = sshll.u32 %s1148, 4
        %1152 = dma.done %s75, %s1151
        %s1153 = sshll.u32 %s1148, 4
        %1154 = dma.done %s92, %s1153
        %s1155 = sshll.u32 %s1148, 4
        %1156 = dma.done %s109, %s1155
        %s1157 = sshll.u32 %s1148, 4
        %1158 = dma.done %s126, %s1157
        %s1159 = sshll.u32 %s1148, 4
        %1160 = dma.done %s143, %s1159
        %s1161 = sshll.u32 %s1148, 4
        %1162 = dma.done %s160, %s1161
        %s1163 = sshll.u32 %s1148, 4
        %1164 = dma.done %s177, %s1163
        %s1165 = sshll.u32 %s1148, 4
        %1166 = dma.done %s195, %s1165
        %s1167 = sshll.u32 %s1148, 4
        %1168 = dma.done %s212, %s1167
        %s1169 = sshll.u32 %s1148, 4
        %1170 = dma.done %s229, %s1169
        %s1171 = sshll.u32 %s1148, 4
        %1172 = dma.done %s246, %s1171
        %s1173 = sshll.u32 %s1148, 4
        %1174 = dma.done %s263, %s1173
        %s1175 = sshll.u32 %s1148, 4
        %1176 = dma.done %s280, %s1175
        %s1177 = sshll.u32 %s1148, 4
        %1178 = dma.done %s297, %s1177
        %s1179 = sshll.u32 %s1148, 4
        %1180 = dma.done %s314, %s1179
        %s1181 = sshll.u32 %s1148, 4
        %1182 = dma.done %s332, %s1181
        %s1183 = sshll.u32 %s1148, 4
        %1184 = dma.done %s349, %s1183
        %s1185 = sshll.u32 %s1148, 4
        %1186 = dma.done %s366, %s1185
        %s1187 = sshll.u32 %s1148, 4
        %1188 = dma.done %s383, %s1187
        %s1189 = sshll.u32 %s1148, 4
        %1190 = dma.done %s400, %s1189
        %s1191 = sshll.u32 %s1148, 4
        %1192 = dma.done %s417, %s1191
        %s1193 = sshll.u32 %s1148, 4
        %1194 = dma.done %s434, %s1193
        %s1195 = sshll.u32 %s1148, 4
        %1196 = dma.done %s451, %s1195
        %s1197 = sshll.u32 %s1148, 4
        %1198 = dma.done %s469, %s1197
        %s1199 = sshll.u32 %s1148, 4
        %1200 = dma.done %s486, %s1199
        %s1201 = sshll.u32 %s1148, 4
        %1202 = dma.done %s503, %s1201
        %s1203 = sshll.u32 %s1148, 4
        %1204 = dma.done %s520, %s1203
        %s1205 = sshll.u32 %s1148, 4
        %1206 = dma.done %s537, %s1205
        %s1207 = sshll.u32 %s1148, 4
        %1208 = dma.done %s554, %s1207
        %s1209 = sshll.u32 %s1148, 4
        %1210 = dma.done %s571, %s1209
        %s1211 = sshll.u32 %s1148, 4
        %1212 = dma.done %s588, %s1211
        %s1213 = sshll.u32 %s1148, 4
        %1214 = dma.done %s606, %s1213
        %s1215 = sshll.u32 %s1148, 4
        %1216 = dma.done %s623, %s1215
        %s1217 = sshll.u32 %s1148, 4
        %1218 = dma.done %s640, %s1217
        %s1219 = sshll.u32 %s1148, 4
        %1220 = dma.done %s657, %s1219
        %s1221 = sshll.u32 %s1148, 4
        %1222 = dma.done %s674, %s1221
        %s1223 = sshll.u32 %s1148, 4
        %1224 = dma.done %s691, %s1223
        %s1225 = sshll.u32 %s1148, 4
        %1226 = dma.done %s708, %s1225
        %s1227 = sshll.u32 %s1148, 4
        %1228 = dma.done %s725, %s1227
        %s1229 = sshll.u32 %s1148, 4
        %1230 = dma.done %s743, %s1229
        %s1231 = sshll.u32 %s1148, 4
        %1232 = dma.done %s760, %s1231
        %s1233 = sshll.u32 %s1148, 4
        %1234 = dma.done %s777, %s1233
        %s1235 = sshll.u32 %s1148, 4
        %1236 = dma.done %s794, %s1235
        %s1237 = sshll.u32 %s1148, 4
        %1238 = dma.done %s811, %s1237
        %s1239 = sshll.u32 %s1148, 4
        %1240 = dma.done %s828, %s1239
        %s1241 = sshll.u32 %s1148, 4
        %1242 = dma.done %s845, %s1241
        %s1243 = sshll.u32 %s1148, 4
        %1244 = dma.done %s862, %s1243
        %s1245 = sshll.u32 %s1148, 4
        %1246 = dma.done %s880, %s1245
        %s1247 = sshll.u32 %s1148, 4
        %1248 = dma.done %s897, %s1247
        %s1249 = sshll.u32 %s1148, 4
        %1250 = dma.done %s914, %s1249
        %s1251 = sshll.u32 %s1148, 4
        %1252 = dma.done %s931, %s1251
        %s1253 = sshll.u32 %s1148, 4
        %1254 = dma.done %s948, %s1253
        %s1255 = sshll.u32 %s1148, 4
        %1256 = dma.done %s965, %s1255
        %s1257 = sshll.u32 %s1148, 4
        %1258 = dma.done %s982, %s1257
        %s1259 = sshll.u32 %s1148, 4
        %1260 = dma.done %s999, %s1259
        %s1261 = sshll.u32 %s1148, 4
        %1262 = dma.done %s1017, %s1261
        %s1263 = sshll.u32 %s1148, 4
        %1264 = dma.done %s1034, %s1263
        %s1265 = sshll.u32 %s1148, 4
        %1266 = dma.done %s1051, %s1265
        %s1267 = sshll.u32 %s1148, 4
        %1268 = dma.done %s1068, %s1267
        %s1269 = sshll.u32 %s1148, 4
        %1270 = dma.done %s1085, %s1269
        %s1271 = sshll.u32 %s1148, 4
        %1272 = dma.done %s1102, %s1271
        %s1273 = sshll.u32 %s1148, 4
        %1274 = dma.done %s1119, %s1273
        %s1275 = sshll.u32 %s1148, 4
        %1276 = dma.done %s1136, %s1275
        %v1277 = vld [vmem:[#allocation2] sm:$0xff]
        %v1278 = vld [vmem:[#allocation2 + $0x8] sm:$0xff]
        %v1279 = vld [vmem:[#allocation2 + $0x10] sm:$0xff]
        %v1280 = vld [vmem:[#allocation2 + $0x18] sm:$0xff]
        %v1281 = vld [vmem:[#allocation2 + $0x20] sm:$0xff]
        %v1282 = vld [vmem:[#allocation2 + $0x28] sm:$0xff]
        %v1283 = vld [vmem:[#allocation2 + $0x30] sm:$0xff]
        %v1284 = vld [vmem:[#allocation2 + $0x38] sm:$0xff]
        %v1285 = vmul.f32 %v1277, %v1277
        %v1286 = vmul.f32 %v1278, %v1278
        %v1287 = vmul.f32 %v1279, %v1279
        %v1288 = vmul.f32 %v1280, %v1280
        %v1289 = vmul.f32 %v1281, %v1281
        %v1290 = vmul.f32 %v1282, %v1282
        %v1291 = vmul.f32 %v1283, %v1283
        %v1292 = vmul.f32 %v1284, %v1284
        %1293 = vadd.xlane.f32.xlu0 %v1285
        %v1294 = vpop.xlane.xlu0 %1293
        %1295 = vadd.xlane.f32.xlu0 %v1286
        %v1296 = vpop.xlane.xlu0 %1295
        %1297 = vadd.xlane.f32.xlu0 %v1287
        %v1298 = vpop.xlane.xlu0 %1297
        %1299 = vadd.xlane.f32.xlu0 %v1288
        %v1300 = vpop.xlane.xlu0 %1299
        %1301 = vadd.xlane.f32.xlu0 %v1289
        %v1302 = vpop.xlane.xlu0 %1301
        %1303 = vadd.xlane.f32.xlu0 %v1290
        %v1304 = vpop.xlane.xlu0 %1303
        %1305 = vadd.xlane.f32.xlu0 %v1291
        %v1306 = vpop.xlane.xlu0 %1305
        %1307 = vadd.xlane.f32.xlu0 %v1292
        %v1308 = vpop.xlane.xlu0 %1307
        %v1309 = vrsqrt.pop %v1294
        %v1310 = vmul.f32 %v1294, %v1309
        %vm1311 = vcmp.eq.f32.partialorder %v1294, inf
        %v1312 = vsel %vm1311, %v1294, %v1310
        %vm1313 = vcmp.eq.f32.partialorder %v1294, 0.0
        %v1314 = vand.u32 %v1294, 2147483648
        %v1315 = vsel %vm1313, %v1314, %v1312
        %v1316 = vrsqrt.pop %v1296
        %v1317 = vmul.f32 %v1296, %v1316
        %vm1318 = vcmp.eq.f32.partialorder %v1296, inf
        %v1319 = vsel %vm1318, %v1296, %v1317
        %vm1320 = vcmp.eq.f32.partialorder %v1296, 0.0
        %v1321 = vand.u32 %v1296, 2147483648
        %v1322 = vsel %vm1320, %v1321, %v1319
        %v1323 = vrsqrt.pop %v1298
        %v1324 = vmul.f32 %v1298, %v1323
        %vm1325 = vcmp.eq.f32.partialorder %v1298, inf
        %v1326 = vsel %vm1325, %v1298, %v1324
        %vm1327 = vcmp.eq.f32.partialorder %v1298, 0.0
        %v1328 = vand.u32 %v1298, 2147483648
        %v1329 = vsel %vm1327, %v1328, %v1326
        %v1330 = vrsqrt.pop %v1300
        %v1331 = vmul.f32 %v1300, %v1330
        %vm1332 = vcmp.eq.f32.partialorder %v1300, inf
        %v1333 = vsel %vm1332, %v1300, %v1331
        %vm1334 = vcmp.eq.f32.partialorder %v1300, 0.0
        %v1335 = vand.u32 %v1300, 2147483648
        %v1336 = vsel %vm1334, %v1335, %v1333
        %v1337 = vrsqrt.pop %v1302
        %v1338 = vmul.f32 %v1302, %v1337
        %vm1339 = vcmp.eq.f32.partialorder %v1302, inf
        %v1340 = vsel %vm1339, %v1302, %v1338
        %vm1341 = vcmp.eq.f32.partialorder %v1302, 0.0
        %v1342 = vand.u32 %v1302, 2147483648
        %v1343 = vsel %vm1341, %v1342, %v1340
        %v1344 = vrsqrt.pop %v1304
        %v1345 = vmul.f32 %v1304, %v1344
        %vm1346 = vcmp.eq.f32.partialorder %v1304, inf
        %v1347 = vsel %vm1346, %v1304, %v1345
        %vm1348 = vcmp.eq.f32.partialorder %v1304, 0.0
        %v1349 = vand.u32 %v1304, 2147483648
        %v1350 = vsel %vm1348, %v1349, %v1347
        %v1351 = vrsqrt.pop %v1306
        %v1352 = vmul.f32 %v1306, %v1351
        %vm1353 = vcmp.eq.f32.partialorder %v1306, inf
        %v1354 = vsel %vm1353, %v1306, %v1352
        %vm1355 = vcmp.eq.f32.partialorder %v1306, 0.0
        %v1356 = vand.u32 %v1306, 2147483648
        %v1357 = vsel %vm1355, %v1356, %v1354
        %v1358 = vrsqrt.pop %v1308
        %v1359 = vmul.f32 %v1308, %v1358
        %vm1360 = vcmp.eq.f32.partialorder %v1308, inf
        %v1361 = vsel %vm1360, %v1308, %v1359
        %vm1362 = vcmp.eq.f32.partialorder %v1308, 0.0
        %v1363 = vand.u32 %v1308, 2147483648
        %v1364 = vsel %vm1362, %v1363, %v1361
        %vm1365 = vcmp.gt.f32.partialorder %v1315, 1.0
        %vm1366 = vcmp.gt.f32.partialorder %v1322, 1.0
        %vm1367 = vcmp.gt.f32.partialorder %v1329, 1.0
        %vm1368 = vcmp.gt.f32.partialorder %v1336, 1.0
        %vm1369 = vcmp.gt.f32.partialorder %v1343, 1.0
        %vm1370 = vcmp.gt.f32.partialorder %v1350, 1.0
        %vm1371 = vcmp.gt.f32.partialorder %v1357, 1.0
        %vm1372 = vcmp.gt.f32.partialorder %v1364, 1.0
        %v1373 = vadd.f32 %v1315, 1e-07
        %v1374 = vadd.f32 %v1322, 1e-07
        %v1375 = vadd.f32 %v1329, 1e-07
        %v1376 = vadd.f32 %v1336, 1e-07
        %v1377 = vadd.f32 %v1343, 1e-07
        %v1378 = vadd.f32 %v1350, 1e-07
        %v1379 = vadd.f32 %v1357, 1e-07
        %v1380 = vadd.f32 %v1364, 1e-07
        %v1381 = vrcp.pop %v1373
        %v1382 = vmul.f32 1.0, %v1381
        %v1383 = vrcp.pop %v1374
        %v1384 = vmul.f32 1.0, %v1383
        %v1385 = vrcp.pop %v1375
        %v1386 = vmul.f32 1.0, %v1385
        %v1387 = vrcp.pop %v1376
        %v1388 = vmul.f32 1.0, %v1387
        %v1389 = vrcp.pop %v1377
        %v1390 = vmul.f32 1.0, %v1389
        %v1391 = vrcp.pop %v1378
        %v1392 = vmul.f32 1.0, %v1391
        %v1393 = vrcp.pop %v1379
        %v1394 = vmul.f32 1.0, %v1393
        %v1395 = vrcp.pop %v1380
        %v1396 = vmul.f32 1.0, %v1395
        %v1397 = vsel %vm1365, %v1382, 1.0
        %v1398 = vsel %vm1366, %v1384, 1.0
        %v1399 = vsel %vm1367, %v1386, 1.0
        %v1400 = vsel %vm1368, %v1388, 1.0
        %v1401 = vsel %vm1369, %v1390, 1.0
        %v1402 = vsel %vm1370, %v1392, 1.0
        %v1403 = vsel %vm1371, %v1394, 1.0
        %v1404 = vsel %vm1372, %v1396, 1.0
        %v1405 = vmul.f32 %v1277, %v1397
        %v1406 = vmul.f32 %v1278, %v1398
        %v1407 = vmul.f32 %v1279, %v1399
        %v1408 = vmul.f32 %v1280, %v1400
        %v1409 = vmul.f32 %v1281, %v1401
        %v1410 = vmul.f32 %v1282, %v1402
        %v1411 = vmul.f32 %v1283, %v1403
        %v1412 = vmul.f32 %v1284, %v1404
        %v1413 = vadd.f32 %v1405, %v1406
        %v1414 = vadd.f32 %v1413, %v1407
        %v1415 = vadd.f32 %v1414, %v1408
        %v1416 = vadd.f32 %v1415, %v1409
        %v1417 = vadd.f32 %v1416, %v1410
        %v1418 = vadd.f32 %v1417, %v1411
        %v1419 = vadd.f32 %v1418, %v1412
        %v1420 = vrcp.pop 8.0
        %v1421 = vmul.f32 %v1419, %v1420
        %1422 = vst [vmem:[%s53] sm:$0xff] %v1421
        %s1423 = sand.u32 %s26, 1
        %s1424 = scalar_lea.sflag [#allocation7], %s1423
        %s1425 = sand.u32 %s26, 1
        %s1426 = smul.addr %s1425, 8
        %s1427 = scalar_lea.vmem [#allocation6], %s1426
        // Predicated region
        $region269: #{tpu_custom_call.1} parent=11 // pred_check
          %p1428 = pneg %p32
        $region270: #{tpu_custom_call.1} parent=11 // pred_check_branch
          %1430 = sbr.rel (%p1428) target = $region272
        $region271: #{tpu_custom_call.1} parent=11 // pred_region
          %s1432 = ssub.s32 128, 128
          %1433 = vsyncadd %s1424, %s1432
          %s1434 = smul.addr %s17, 128
          %s1435 = scalar_lea.hbm %s2, %s1434
          %s1437 = sshll.u32 %s1427, 4
          %s1438 = int_to_ptr.vmem [resolvable:$true] %s1437
          %1440 = dma.vmem_to_hbm [thread:$0]  %s1438, 128, %s1435, %s1424
        $region272: #{tpu_custom_call.1} parent=11 // pred_fallthru
          _
      $region12: #{tpu_custom_call.1} parent=5 // pred_fallthru
        _
      %p1441 = scmp.le.s32.totalorder 1, %s17
      // Predicated region
      $region273: #{tpu_custom_call.1} parent=5 // pred_check
        %p1442 = pneg %p1441
      $region274: #{tpu_custom_call.1} parent=5 // pred_check_branch
        %1444 = sbr.rel (%p1442) target = $region276
      $region275: #{tpu_custom_call.1} parent=5 // pred_region
        %s1445 = ssub.s32 %s17, 1
        // Predicated region
        $region277: #{tpu_custom_call.1} parent=275 // pred_check
          %p1446 = pneg %p38
        $region278: #{tpu_custom_call.1} parent=275 // pred_check_branch
          %1448 = sbr.rel (%p1446) target = $region280
        $region279: #{tpu_custom_call.1} parent=275 // pred_region
          %s1449 = sand.u32 %s29, 1
          %s1450 = scalar_lea.sflag [#allocation7], %s1449
          %s1451 = sand.u32 %s29, 1
          %s1452 = smul.addr %s1451, 8
          %s1453 = scalar_lea.vmem [#allocation6], %s1452
          %1454 = dma.done %s1450, 128
        $region280: #{tpu_custom_call.1} parent=275 // pred_fallthru
          _
      $region276: #{tpu_custom_call.1} parent=5 // pred_fallthru
        _
    $region6: #{tpu_custom_call.1} parent=1 // loop_footer
      %s21 = sadd.s32 1, %s17
    $region7: #{tpu_custom_call.1} parent=1 // loop_footer_branch
      %16 = sbr.rel target = $region3
    $region8: #{tpu_custom_call.1} parent=1 // loop_exit
      _
    %1455 = vsyncpa [#allocation7], 1
    %s1456 = scalar_lea.sflag [#allocation7], 1
    %1457 = vsyncpa %s1456, 1
  %1458 = vsyncmov [#allocation3]
  %s1459 = vpop.sfrf %1458
  %p1460 = scmp.eq.s32.totalorder %s1459, 0
  %p1461 = pneg %p1460
  %1463 = shalt.err (%p1461)
  %s1464 = scalar_lea.sflag [#allocation3], 1
  %1465 = vsyncmov %s1464
  %s1466 = vpop.sfrf %1465
  %p1467 = scmp.eq.s32.totalorder %s1466, 0
  %p1468 = pneg %p1467
  %1470 = shalt.err (%p1468)
  %s1471 = scalar_lea.sflag [#allocation3], 2
  %1472 = vsyncmov %s1471
  %s1473 = vpop.sfrf %1472
  %p1474 = scmp.eq.s32.totalorder %s1473, 0
  %p1475 = pneg %p1474
  %1477 = shalt.err (%p1475)
  %s1478 = scalar_lea.sflag [#allocation3], 3
  %1479 = vsyncmov %s1478
  %s1480 = vpop.sfrf %1479
  %p1481 = scmp.eq.s32.totalorder %s1480, 0
  %p1482 = pneg %p1481
  %1484 = shalt.err (%p1482)
  %s1485 = scalar_lea.sflag [#allocation3], 4
  %1486 = vsyncmov %s1485
  %s1487 = vpop.sfrf %1486
  %p1488 = scmp.eq.s32.totalorder %s1487, 0
  %p1489 = pneg %p1488
  %1491 = shalt.err (%p1489)
  %s1492 = scalar_lea.sflag [#allocation3], 5
  %1493 = vsyncmov %s1492
  %s1494 = vpop.sfrf %1493
  %p1495 = scmp.eq.s32.totalorder %s1494, 0
  %p1496 = pneg %p1495
  %1498 = shalt.err (%p1496)
  %s1499 = scalar_lea.sflag [#allocation3], 6
  %1500 = vsyncmov %s1499
  %s1501 = vpop.sfrf %1500
  %p1502 = scmp.eq.s32.totalorder %s1501, 0
  %p1503 = pneg %p1502
  %1505 = shalt.err (%p1503)
  %s1506 = scalar_lea.sflag [#allocation3], 7
  %1507 = vsyncmov %s1506
  %s1508 = vpop.sfrf %1507
  %p1509 = scmp.eq.s32.totalorder %s1508, 0
  %p1510 = pneg %p1509
  %1512 = shalt.err (%p1510)
  %s1513 = scalar_lea.sflag [#allocation3], 8
  %1514 = vsyncmov %s1513
  %s1515 = vpop.sfrf %1514
  %p1516 = scmp.eq.s32.totalorder %s1515, 0
  %p1517 = pneg %p1516
  %1519 = shalt.err (%p1517)
  %s1520 = scalar_lea.sflag [#allocation3], 9
  %1521 = vsyncmov %s1520
  %s1522 = vpop.sfrf %1521
  %p1523 = scmp.eq.s32.totalorder %s1522, 0
  %p1524 = pneg %p1523
  %1526 = shalt.err (%p1524)
  %s1527 = scalar_lea.sflag [#allocation3], 10
  %1528 = vsyncmov %s1527
  %s1529 = vpop.sfrf %1528
  %p1530 = scmp.eq.s32.totalorder %s1529, 0
  %p1531 = pneg %p1530
  %1533 = shalt.err (%p1531)
  %s1534 = scalar_lea.sflag [#allocation3], 11
  %1535 = vsyncmov %s1534
  %s1536 = vpop.sfrf %1535
  %p1537 = scmp.eq.s32.totalorder %s1536, 0
  %p1538 = pneg %p1537
  %1540 = shalt.err (%p1538)
  %s1541 = scalar_lea.sflag [#allocation3], 12
  %1542 = vsyncmov %s1541
  %s1543 = vpop.sfrf %1542
  %p1544 = scmp.eq.s32.totalorder %s1543, 0
  %p1545 = pneg %p1544
  %1547 = shalt.err (%p1545)
  %s1548 = scalar_lea.sflag [#allocation3], 13
  %1549 = vsyncmov %s1548
  %s1550 = vpop.sfrf %1549
  %p1551 = scmp.eq.s32.totalorder %s1550, 0
  %p1552 = pneg %p1551
  %1554 = shalt.err (%p1552)
  %s1555 = scalar_lea.sflag [#allocation3], 14
  %1556 = vsyncmov %s1555
  %s1557 = vpop.sfrf %1556
  %p1558 = scmp.eq.s32.totalorder %s1557, 0
  %p1559 = pneg %p1558
  %1561 = shalt.err (%p1559)
  %s1562 = scalar_lea.sflag [#allocation3], 15
  %1563 = vsyncmov %s1562
  %s1564 = vpop.sfrf %1563
  %p1565 = scmp.eq.s32.totalorder %s1564, 0
  %p1566 = pneg %p1565
  %1568 = shalt.err (%p1566)
  %s1569 = scalar_lea.sflag [#allocation3], 16
  %1570 = vsyncmov %s1569
  %s1571 = vpop.sfrf %1570
  %p1572 = scmp.eq.s32.totalorder %s1571, 0
  %p1573 = pneg %p1572
  %1575 = shalt.err (%p1573)
  %s1576 = scalar_lea.sflag [#allocation3], 17
  %1577 = vsyncmov %s1576
  %s1578 = vpop.sfrf %1577
  %p1579 = scmp.eq.s32.totalorder %s1578, 0
  %p1580 = pneg %p1579
  %1582 = shalt.err (%p1580)
  %s1583 = scalar_lea.sflag [#allocation3], 18
  %1584 = vsyncmov %s1583
  %s1585 = vpop.sfrf %1584
  %p1586 = scmp.eq.s32.totalorder %s1585, 0
  %p1587 = pneg %p1586
  %1589 = shalt.err (%p1587)
  %s1590 = scalar_lea.sflag [#allocation3], 19
  %1591 = vsyncmov %s1590
  %s1592 = vpop.sfrf %1591
  %p1593 = scmp.eq.s32.totalorder %s1592, 0
  %p1594 = pneg %p1593
  %1596 = shalt.err (%p1594)
  %s1597 = scalar_lea.sflag [#allocation3], 20
  %1598 = vsyncmov %s1597
  %s1599 = vpop.sfrf %1598
  %p1600 = scmp.eq.s32.totalorder %s1599, 0
  %p1601 = pneg %p1600
  %1603 = shalt.err (%p1601)
  %s1604 = scalar_lea.sflag [#allocation3], 21
  %1605 = vsyncmov %s1604
  %s1606 = vpop.sfrf %1605
  %p1607 = scmp.eq.s32.totalorder %s1606, 0
  %p1608 = pneg %p1607
  %1610 = shalt.err (%p1608)
  %s1611 = scalar_lea.sflag [#allocation3], 22
  %1612 = vsyncmov %s1611
  %s1613 = vpop.sfrf %1612
  %p1614 = scmp.eq.s32.totalorder %s1613, 0
  %p1615 = pneg %p1614
  %1617 = shalt.err (%p1615)
  %s1618 = scalar_lea.sflag [#allocation3], 23
  %1619 = vsyncmov %s1618
  %s1620 = vpop.sfrf %1619
  %p1621 = scmp.eq.s32.totalorder %s1620, 0
  %p1622 = pneg %p1621
  %1624 = shalt.err (%p1622)
  %s1625 = scalar_lea.sflag [#allocation3], 24
  %1626 = vsyncmov %s1625
  %s1627 = vpop.sfrf %1626
  %p1628 = scmp.eq.s32.totalorder %s1627, 0
  %p1629 = pneg %p1628
  %1631 = shalt.err (%p1629)
  %s1632 = scalar_lea.sflag [#allocation3], 25
  %1633 = vsyncmov %s1632
  %s1634 = vpop.sfrf %1633
  %p1635 = scmp.eq.s32.totalorder %s1634, 0
  %p1636 = pneg %p1635
  %1638 = shalt.err (%p1636)
  %s1639 = scalar_lea.sflag [#allocation3], 26
  %1640 = vsyncmov %s1639
  %s1641 = vpop.sfrf %1640
  %p1642 = scmp.eq.s32.totalorder %s1641, 0
  %p1643 = pneg %p1642
  %1645 = shalt.err (%p1643)
  %s1646 = scalar_lea.sflag [#allocation3], 27
  %1647 = vsyncmov %s1646
  %s1648 = vpop.sfrf %1647
  %p1649 = scmp.eq.s32.totalorder %s1648, 0
  %p1650 = pneg %p1649
  %1652 = shalt.err (%p1650)
  %s1653 = scalar_lea.sflag [#allocation3], 28
  %1654 = vsyncmov %s1653
  %s1655 = vpop.sfrf %1654
  %p1656 = scmp.eq.s32.totalorder %s1655, 0
  %p1657 = pneg %p1656
  %1659 = shalt.err (%p1657)
  %s1660 = scalar_lea.sflag [#allocation3], 29
  %1661 = vsyncmov %s1660
  %s1662 = vpop.sfrf %1661
  %p1663 = scmp.eq.s32.totalorder %s1662, 0
  %p1664 = pneg %p1663
  %1666 = shalt.err (%p1664)
  %s1667 = scalar_lea.sflag [#allocation3], 30
  %1668 = vsyncmov %s1667
  %s1669 = vpop.sfrf %1668
  %p1670 = scmp.eq.s32.totalorder %s1669, 0
  %p1671 = pneg %p1670
  %1673 = shalt.err (%p1671)
  %s1674 = scalar_lea.sflag [#allocation3], 31
  %1675 = vsyncmov %s1674
  %s1676 = vpop.sfrf %1675
  %p1677 = scmp.eq.s32.totalorder %s1676, 0
  %p1678 = pneg %p1677
  %1680 = shalt.err (%p1678)
  %s1681 = scalar_lea.sflag [#allocation3], 32
  %1682 = vsyncmov %s1681
  %s1683 = vpop.sfrf %1682
  %p1684 = scmp.eq.s32.totalorder %s1683, 0
  %p1685 = pneg %p1684
  %1687 = shalt.err (%p1685)
  %s1688 = scalar_lea.sflag [#allocation3], 33
  %1689 = vsyncmov %s1688
  %s1690 = vpop.sfrf %1689
  %p1691 = scmp.eq.s32.totalorder %s1690, 0
  %p1692 = pneg %p1691
  %1694 = shalt.err (%p1692)
  %s1695 = scalar_lea.sflag [#allocation3], 34
  %1696 = vsyncmov %s1695
  %s1697 = vpop.sfrf %1696
  %p1698 = scmp.eq.s32.totalorder %s1697, 0
  %p1699 = pneg %p1698
  %1701 = shalt.err (%p1699)
  %s1702 = scalar_lea.sflag [#allocation3], 35
  %1703 = vsyncmov %s1702
  %s1704 = vpop.sfrf %1703
  %p1705 = scmp.eq.s32.totalorder %s1704, 0
  %p1706 = pneg %p1705
  %1708 = shalt.err (%p1706)
  %s1709 = scalar_lea.sflag [#allocation3], 36
  %1710 = vsyncmov %s1709
  %s1711 = vpop.sfrf %1710
  %p1712 = scmp.eq.s32.totalorder %s1711, 0
  %p1713 = pneg %p1712
  %1715 = shalt.err (%p1713)
  %s1716 = scalar_lea.sflag [#allocation3], 37
  %1717 = vsyncmov %s1716
  %s1718 = vpop.sfrf %1717
  %p1719 = scmp.eq.s32.totalorder %s1718, 0
  %p1720 = pneg %p1719
  %1722 = shalt.err (%p1720)
  %s1723 = scalar_lea.sflag [#allocation3], 38
  %1724 = vsyncmov %s1723
  %s1725 = vpop.sfrf %1724
  %p1726 = scmp.eq.s32.totalorder %s1725, 0
  %p1727 = pneg %p1726
  %1729 = shalt.err (%p1727)
  %s1730 = scalar_lea.sflag [#allocation3], 39
  %1731 = vsyncmov %s1730
  %s1732 = vpop.sfrf %1731
  %p1733 = scmp.eq.s32.totalorder %s1732, 0
  %p1734 = pneg %p1733
  %1736 = shalt.err (%p1734)
  %s1737 = scalar_lea.sflag [#allocation3], 40
  %1738 = vsyncmov %s1737
  %s1739 = vpop.sfrf %1738
  %p1740 = scmp.eq.s32.totalorder %s1739, 0
  %p1741 = pneg %p1740
  %1743 = shalt.err (%p1741)
  %s1744 = scalar_lea.sflag [#allocation3], 41
  %1745 = vsyncmov %s1744
  %s1746 = vpop.sfrf %1745
  %p1747 = scmp.eq.s32.totalorder %s1746, 0
  %p1748 = pneg %p1747
  %1750 = shalt.err (%p1748)
  %s1751 = scalar_lea.sflag [#allocation3], 42
  %1752 = vsyncmov %s1751
  %s1753 = vpop.sfrf %1752
  %p1754 = scmp.eq.s32.totalorder %s1753, 0
  %p1755 = pneg %p1754
  %1757 = shalt.err (%p1755)
  %s1758 = scalar_lea.sflag [#allocation3], 43
  %1759 = vsyncmov %s1758
  %s1760 = vpop.sfrf %1759
  %p1761 = scmp.eq.s32.totalorder %s1760, 0
  %p1762 = pneg %p1761
  %1764 = shalt.err (%p1762)
  %s1765 = scalar_lea.sflag [#allocation3], 44
  %1766 = vsyncmov %s1765
  %s1767 = vpop.sfrf %1766
  %p1768 = scmp.eq.s32.totalorder %s1767, 0
  %p1769 = pneg %p1768
  %1771 = shalt.err (%p1769)
  %s1772 = scalar_lea.sflag [#allocation3], 45
  %1773 = vsyncmov %s1772
  %s1774 = vpop.sfrf %1773
  %p1775 = scmp.eq.s32.totalorder %s1774, 0
  %p1776 = pneg %p1775
  %1778 = shalt.err (%p1776)
  %s1779 = scalar_lea.sflag [#allocation3], 46
  %1780 = vsyncmov %s1779
  %s1781 = vpop.sfrf %1780
  %p1782 = scmp.eq.s32.totalorder %s1781, 0
  %p1783 = pneg %p1782
  %1785 = shalt.err (%p1783)
  %s1786 = scalar_lea.sflag [#allocation3], 47
  %1787 = vsyncmov %s1786
  %s1788 = vpop.sfrf %1787
  %p1789 = scmp.eq.s32.totalorder %s1788, 0
  %p1790 = pneg %p1789
  %1792 = shalt.err (%p1790)
  %s1793 = scalar_lea.sflag [#allocation3], 48
  %1794 = vsyncmov %s1793
  %s1795 = vpop.sfrf %1794
  %p1796 = scmp.eq.s32.totalorder %s1795, 0
  %p1797 = pneg %p1796
  %1799 = shalt.err (%p1797)
  %s1800 = scalar_lea.sflag [#allocation3], 49
  %1801 = vsyncmov %s1800
  %s1802 = vpop.sfrf %1801
  %p1803 = scmp.eq.s32.totalorder %s1802, 0
  %p1804 = pneg %p1803
  %1806 = shalt.err (%p1804)
  %s1807 = scalar_lea.sflag [#allocation3], 50
  %1808 = vsyncmov %s1807
  %s1809 = vpop.sfrf %1808
  %p1810 = scmp.eq.s32.totalorder %s1809, 0
  %p1811 = pneg %p1810
  %1813 = shalt.err (%p1811)
  %s1814 = scalar_lea.sflag [#allocation3], 51
  %1815 = vsyncmov %s1814
  %s1816 = vpop.sfrf %1815
  %p1817 = scmp.eq.s32.totalorder %s1816, 0
  %p1818 = pneg %p1817
  %1820 = shalt.err (%p1818)
  %s1821 = scalar_lea.sflag [#allocation3], 52
  %1822 = vsyncmov %s1821
  %s1823 = vpop.sfrf %1822
  %p1824 = scmp.eq.s32.totalorder %s1823, 0
  %p1825 = pneg %p1824
  %1827 = shalt.err (%p1825)
  %s1828 = scalar_lea.sflag [#allocation3], 53
  %1829 = vsyncmov %s1828
  %s1830 = vpop.sfrf %1829
  %p1831 = scmp.eq.s32.totalorder %s1830, 0
  %p1832 = pneg %p1831
  %1834 = shalt.err (%p1832)
  %s1835 = scalar_lea.sflag [#allocation3], 54
  %1836 = vsyncmov %s1835
  %s1837 = vpop.sfrf %1836
  %p1838 = scmp.eq.s32.totalorder %s1837, 0
  %p1839 = pneg %p1838
  %1841 = shalt.err (%p1839)
  %s1842 = scalar_lea.sflag [#allocation3], 55
  %1843 = vsyncmov %s1842
  %s1844 = vpop.sfrf %1843
  %p1845 = scmp.eq.s32.totalorder %s1844, 0
  %p1846 = pneg %p1845
  %1848 = shalt.err (%p1846)
  %s1849 = scalar_lea.sflag [#allocation3], 56
  %1850 = vsyncmov %s1849
  %s1851 = vpop.sfrf %1850
  %p1852 = scmp.eq.s32.totalorder %s1851, 0
  %p1853 = pneg %p1852
  %1855 = shalt.err (%p1853)
  %s1856 = scalar_lea.sflag [#allocation3], 57
  %1857 = vsyncmov %s1856
  %s1858 = vpop.sfrf %1857
  %p1859 = scmp.eq.s32.totalorder %s1858, 0
  %p1860 = pneg %p1859
  %1862 = shalt.err (%p1860)
  %s1863 = scalar_lea.sflag [#allocation3], 58
  %1864 = vsyncmov %s1863
  %s1865 = vpop.sfrf %1864
  %p1866 = scmp.eq.s32.totalorder %s1865, 0
  %p1867 = pneg %p1866
  %1869 = shalt.err (%p1867)
  %s1870 = scalar_lea.sflag [#allocation3], 59
  %1871 = vsyncmov %s1870
  %s1872 = vpop.sfrf %1871
  %p1873 = scmp.eq.s32.totalorder %s1872, 0
  %p1874 = pneg %p1873
  %1876 = shalt.err (%p1874)
  %s1877 = scalar_lea.sflag [#allocation3], 60
  %1878 = vsyncmov %s1877
  %s1879 = vpop.sfrf %1878
  %p1880 = scmp.eq.s32.totalorder %s1879, 0
  %p1881 = pneg %p1880
  %1883 = shalt.err (%p1881)
  %s1884 = scalar_lea.sflag [#allocation3], 61
  %1885 = vsyncmov %s1884
  %s1886 = vpop.sfrf %1885
  %p1887 = scmp.eq.s32.totalorder %s1886, 0
  %p1888 = pneg %p1887
  %1890 = shalt.err (%p1888)
  %s1891 = scalar_lea.sflag [#allocation3], 62
  %1892 = vsyncmov %s1891
  %s1893 = vpop.sfrf %1892
  %p1894 = scmp.eq.s32.totalorder %s1893, 0
  %p1895 = pneg %p1894
  %1897 = shalt.err (%p1895)
  %s1898 = scalar_lea.sflag [#allocation3], 63
  %1899 = vsyncmov %s1898
  %s1900 = vpop.sfrf %1899
  %p1901 = scmp.eq.s32.totalorder %s1900, 0
  %p1902 = pneg %p1901
  %1904 = shalt.err (%p1902)

</llo_original>
